<compile_context>
chip_gen: v6e
topology: v6e:2x2x1
jax: 0.10.0
libtpu: 0.0.40
codegen_flags: <defaults>
</compile_context>

<pallas_src>
import math
import functools

import jax
import jax.numpy as jnp
from jax.experimental import pallas as pl
from jax.experimental.pallas import tpu as pltpu


# ----------------------------------------------------------------------------------------------
# Shared prologue: LN1 -> attention (q=k=v=q_linear(xn)) -> out proj -> residual -> LN2
# Works on a (bpg, S, D) block; all row-wise matmuls are done on the folded (bpg*S, D) view.
# Returns x2 (f32, folded), xn2 (bf16, folded), p (f32 attention probs, (bpg, S, S)).
# ----------------------------------------------------------------------------------------------
def _attention_prologue(x_ref, mask_ref, g1_ref, be1_ref, wq_ref, bq_ref,
                        wo_ref, bo_ref, g2_ref, be2_ref, *, d_model, bpg, seq):
    eps = 1e-5
    rows = bpg * seq
    inv_sqrt_d = 1.0 / math.sqrt(d_model)

    x = x_ref[...].astype(jnp.float32).reshape(rows, d_model)          # fold batch into rows
    # Additive mask: 0 where kept, -1e9 where mask == 0 (replaces cmp+select per element).
    neg = (mask_ref[...].astype(jnp.float32) - 1.0) * 1.0e9            # (bpg, 1, S)

    # LayerNorm 1 (biased variance, PyTorch semantics)
    mu = jnp.mean(x, axis=-1, keepdims=True)
    var = jnp.mean((x - mu) ** 2, axis=-1, keepdims=True)
    xn = (x - mu) * jax.lax.rsqrt(var + eps) * g1_ref[...] + be1_ref[...]

    # q = k = v = q_linear(x_norm), per the reference module.
    h = jnp.dot(xn.astype(jnp.bfloat16), wq_ref[...],
                preferred_element_type=jnp.float32) + bq_ref[...]       # (rows, D) f32
    h_b = h.astype(jnp.bfloat16).reshape(bpg, seq, d_model)

    # scores = h @ h^T per batch: contract last dims directly (no explicit transpose).
    scores = jax.lax.dot_general(h_b, h_b, (((2,), (2,)), ((0,), (0,))),
                                 preferred_element_type=jnp.float32)    # (bpg, S, S)
    scores = scores * inv_sqrt_d + neg

    # Softmax over keys. Exact normalization: the probabilities are an exported output.
    s_max = jnp.max(scores, axis=-1, keepdims=True)
    e = jnp.exp(scores - s_max)
    p = e / jnp.sum(e, axis=-1, keepdims=True)                          # (bpg, S, S) f32

    ctx = jax.lax.dot_general(p.astype(jnp.bfloat16), h_b,
                              (((2,), (1,)), ((0,), (0,))),
                              preferred_element_type=jnp.float32)       # (bpg, S, D)
    o = jnp.dot(ctx.reshape(rows, d_model).astype(jnp.bfloat16), wo_ref[...],
                preferred_element_type=jnp.float32) + bo_ref[...]

    # residual 1 (dropout_1 == identity)
    x2 = x + o

    # LayerNorm 2
    mu2 = jnp.mean(x2, axis=-1, keepdims=True)
    var2 = jnp.mean((x2 - mu2) ** 2, axis=-1, keepdims=True)
    xn2 = (x2 - mu2) * jax.lax.rsqrt(var2 + eps) * g2_ref[...] + be2_ref[...]

    return x2, xn2.astype(jnp.bfloat16), p


# ----------------------------------------------------------------------------------------------
# Fused kernel: one grid step per batch group; full FF weights resident in VMEM.
# ----------------------------------------------------------------------------------------------
def _block_fused_kernel(x_ref, mask_ref, g1_ref, be1_ref, wq_ref, bq_ref,
                        wo_ref, bo_ref, g2_ref, be2_ref, w1_ref, b1_ref,
                        w2_ref, b2_ref, out_ref, attn_ref, *, d_model, bpg, seq):
    x2, xn2, p = _attention_prologue(
        x_ref, mask_ref, g1_ref, be1_ref, wq_ref, bq_ref, wo_ref, bo_ref,
        g2_ref, be2_ref, d_model=d_model, bpg=bpg, seq=seq)

    attn_ref[...] = p.astype(attn_ref.dtype)

    # FeedForward: relu(xn2 @ W1 + b1) @ W2 + b2   (dropout == identity)
    ff = jnp.dot(xn2, w1_ref[...], preferred_element_type=jnp.float32) + b1_ref[...]
    ff = jnp.maximum(ff, 0.0)
    ff = jnp.dot(ff.astype(jnp.bfloat16), w2_ref[...],
                 preferred_element_type=jnp.float32) + b2_ref[...]

    # residual 2
    out_ref[...] = (x2 + ff).reshape(bpg, seq, d_model).astype(out_ref.dtype)


# ----------------------------------------------------------------------------------------------
# Streamed fallback: grid = (groups, n_kf); FF weights DMA'd in (D,tile_f)/(tile_f,D) tiles and
# accumulated directly into the resident out_ref block (no accumulator scratch).
# ----------------------------------------------------------------------------------------------
def _block_streamed_kernel(x_ref, mask_ref, g1_ref, be1_ref, wq_ref, bq_ref,
                           wo_ref, bo_ref, g2_ref, be2_ref, w1_ref, b1_ref,
                           w2_ref, b2_ref, out_ref, attn_ref, xn2_s,
                           *, d_model, bpg, seq):
    kf = pl.program_id(1)

    @pl.when(kf == 0)
    def _():
        x2, xn2, p = _attention_prologue(
            x_ref, mask_ref, g1_ref, be1_ref, wq_ref, bq_ref, wo_ref, bo_ref,
            g2_ref, be2_ref, d_model=d_model, bpg=bpg, seq=seq)
        xn2_s[...] = xn2
        attn_ref[...] = p.astype(attn_ref.dtype)
        # Seed the resident output block with the residual and the final FF bias; the FF matmul
        # contribution is accumulated into out_ref across the kf steps below.
        out_ref[...] = (x2 + b2_ref[...]).reshape(bpg, seq, d_model).astype(out_ref.dtype)

    ff = jnp.dot(xn2_s[...], w1_ref[...], preferred_element_type=jnp.float32) + b1_ref[...]
    ff = jnp.maximum(ff, 0.0)
    inc = jnp.dot(ff.astype(jnp.bfloat16), w2_ref[...], preferred_element_type=jnp.float32)
    out_ref[...] += inc.reshape(bpg, seq, d_model).astype(out_ref.dtype)


# ----------------------------------------------------------------------------------------------
# Wrapper
# ----------------------------------------------------------------------------------------------
def transformer_block(x, mask, params, *, groups=None, ff_fuse_vmem_bytes=20 * 1024 * 1024):
    """x: (B, S, D) f32, mask: (B, S) (0 => masked). Weights bf16, biases/LN params f32."""
    B, S, D = x.shape
    if mask.ndim == 2:
        mask = mask[:, None, :]                      # PyTorch mask.unsqueeze(1)
    d_ff = params["w1"].shape[1]

    # Batch grouping: keep >= 2 parallel grid steps when possible (v7x dual TensorCores),
    # fold the rest of the batch into the matmul row dimension inside each step.
    if groups is None:
        if B <= 1:
            groups = 1
        elif B % 2 == 0:
            groups = 2
        else:
            groups = B
    assert B % groups == 0, "batch must be divisible by the number of groups"
    bpg = B // groups

    # Fuse decision: full FF weights resident in VMEM (bf16, single-buffered) vs kf-streamed.
    fused = 2 * 2 * D * d_ff <= ff_fuse_vmem_bytes

    w1, b1, w2 = params["w1"], params["bb1"], params["w2"]
    tile_f = n_kf = None
    if not fused:
        # Harden tile_f: multiple of 256 (MXU fill on v6e/v7x), bounded VMEM (v7x = 64 MiB).
        if d_ff % 512 == 0:
            tile_f = 512
        elif d_ff % 256 == 0:
            tile_f = 256
        else:
            pad = (-d_ff) % 256                       # zero-pad: relu(0)=0 and zero W2 rows -> no-op
            w1 = jnp.pad(w1, ((0, 0), (0, pad)))
            b1 = jnp.pad(b1, ((0, 0), (0, pad)))
            w2 = jnp.pad(w2, ((0, pad), (0, 0)))
            d_ff = d_ff + pad
            tile_f = 512 if d_ff % 512 == 0 else 256
        n_kf = d_ff // tile_f

    ff_cols = d_ff if fused else tile_f
    out_shape = (jax.ShapeDtypeStruct((B, S, D), x.dtype),
                 jax.ShapeDtypeStruct((B, S, S), jnp.float32))

    def build(single_buffer_consts):
        pm = dict(pipeline_mode=pl.Buffered(1)) if single_buffer_consts else {}

        if fused:
            const = lambda shape: pl.BlockSpec(shape, lambda g: (0,) * len(shape), **pm)
            in_specs = [
                pl.BlockSpec((bpg, S, D), lambda g: (g, 0, 0)),     # x
                pl.BlockSpec((bpg, 1, S), lambda g: (g, 0, 0)),     # mask
                const((1, D)), const((1, D)),                       # ln1 gamma/beta
                const((D, D)), const((1, D)),                       # Wq, bq
                const((D, D)), const((1, D)),                       # Wo, bo
                const((1, D)), const((1, D)),                       # ln2 gamma/beta
                const((D, d_ff)), const((1, d_ff)),                 # W1, b1 (full)
                const((d_ff, D)), const((1, D)),                    # W2, b2 (full)
            ]
            out_specs = (pl.BlockSpec((bpg, S, D), lambda g: (g, 0, 0)),
                         pl.BlockSpec((bpg, S, S), lambda g: (g, 0, 0)))
            grid = (groups,)
            scratch = []
            semantics = ("parallel",)
            kernel = functools.partial(_block_fused_kernel, d_model=D, bpg=bpg, seq=S)
        else:
            const = lambda shape: pl.BlockSpec(shape, lambda g, kf: (0,) * len(shape), **pm)
            in_specs = [
                pl.BlockSpec((bpg, S, D), lambda g, kf: (g, 0, 0)),
                pl.BlockSpec((bpg, 1, S), lambda g, kf: (g, 0, 0)),
                const((1, D)), const((1, D)),
                const((D, D)), const((1, D)),
                const((D, D)), const((1, D)),
                const((1, D)), const((1, D)),
                pl.BlockSpec((D, tile_f), lambda g, kf: (0, kf)),   # W1 tile (double-buffered)
                pl.BlockSpec((1, tile_f), lambda g, kf: (0, kf)),   # b1 tile
                pl.BlockSpec((tile_f, D), lambda g, kf: (kf, 0)),   # W2 tile
                const((1, D)),                                      # b2
            ]
            out_specs = (pl.BlockSpec((bpg, S, D), lambda g, kf: (g, 0, 0)),
                         pl.BlockSpec((bpg, S, S), lambda g, kf: (g, 0, 0)))
            grid = (groups, n_kf)
            scratch = [pltpu.VMEM((bpg * S, D), jnp.bfloat16)]      # xn2 (MXU feed across kf)
            semantics = ("parallel", "arbitrary")
            kernel = functools.partial(_block_streamed_kernel, d_model=D, bpg=bpg, seq=S)

        # Rough per-step VMEM estimate (bytes): grid-varying blocks double-buffered, constants 1x.
        vary = (bpg * S * D * x.dtype.itemsize        # x block
                + bpg * S * 4                         # mask
                + bpg * S * D * x.dtype.itemsize      # out block
                + bpg * S * S * 4                     # attn block
                + (0 if fused else bpg * S * D * 2))  # xn2 scratch
        consts = 2 * (2 * D * D + 2 * D * ff_cols) + 4 * (6 * D + ff_cols)
        est = 2 * vary + (1 if single_buffer_consts else 2) * consts
        # 32 MiB scoped default is safe on every generation; only raise when needed, and never
        # past ~48 MiB (v7x physical VMEM is 64 MiB; v5e/v6e have 128 MiB headroom).
        vmem_limit = int(min(48 * 1024 * 1024, max(32 * 1024 * 1024, 3 * est)))

        return pl.pallas_call(
            kernel,
            out_shape=out_shape,
            grid_spec=pltpu.PrefetchScalarGridSpec(
                num_scalar_prefetch=0,
                grid=grid,
                in_specs=in_specs,
                out_specs=out_specs,
                scratch_shapes=scratch,
            ),
            compiler_params=pltpu.CompilerParams(
                dimension_semantics=semantics,
                vmem_limit_bytes=vmem_limit,
            ),
        )

    args = (x, mask,
            params["g1"], params["be1"],
            params["wq"], params["bq"],
            params["wo"], params["bo"],
            params["g2"], params["be2"],
            w1, b1, w2, params["bb2"])

    try:
        return build(single_buffer_consts=True)(*args)
    except Exception:
        # Fallback: some jax versions may not honor pipeline_mode=Buffered(1) on the main
        # pallas_call pipeline; retry with default double-buffering of the constant operands.
        return build(single_buffer_consts=False)(*args)


# ----------------------------------------------------------------------------------------------
# Parameters / reference
# ----------------------------------------------------------------------------------------------
def init_params(key, d_model, d_ff):
    ks = jax.random.split(key, 4)

    def linear(k, fan_in, fan_out):
        bound = 1.0 / math.sqrt(fan_in)
        kw, kb = jax.random.split(k)
        w = jax.random.uniform(kw, (fan_in, fan_out), jnp.float32, -bound, bound)
        b = jax.random.uniform(kb, (1, fan_out), jnp.float32, -bound, bound)
        return w.astype(jnp.bfloat16), b              # weight bf16 (MXU), bias f32

    wq, bq = linear(ks[0], d_model, d_model)
    wo, bo = linear(ks[1], d_model, d_model)
    w1, bb1 = linear(ks[2], d_model, d_ff)
    w2, bb2 = linear(ks[3], d_ff, d_model)

    return dict(
        g1=jnp.ones((1, d_model), jnp.float32), be1=jnp.zeros((1, d_model), jnp.float32),
        g2=jnp.ones((1, d_model), jnp.float32), be2=jnp.zeros((1, d_model), jnp.float32),
        wq=wq, bq=bq, wo=wo, bo=bo,
        w1=w1, bb1=bb1, w2=w2, bb2=bb2,
    )


def _reference(x, mask, p, eps=1e-5):
    # Pure-JAX reference mirroring the PyTorch forward (dropout = identity) with the same
    # bf16-operand / f32-accumulation numerics the kernel uses.
    bf = lambda a: a.astype(jnp.bfloat16)
    mask = mask[:, None, :]                           # (B, 1, S), PyTorch unsqueeze(1)

    def ln(z, g, b):
        mu = jnp.mean(z, axis=-1, keepdims=True)
        var = jnp.mean((z - mu) ** 2, axis=-1, keepdims=True)
        return (z - mu) / jnp.sqrt(var + eps) * g + b

    D = x.shape[-1]
    xn = ln(x, p["g1"], p["be1"])
    h = jnp.einsum("bsd,de->bse", bf(xn), p["wq"],
                   preferred_element_type=jnp.float32) + p["bq"]
    hb = bf(h)
    scores = jnp.einsum("bqd,bkd->bqk", hb, hb,
                        preferred_element_type=jnp.float32) * (1.0 / math.sqrt(D))
    scores = jnp.where(mask == 0.0, -1.0e9, scores)
    w = jax.nn.softmax(scores, axis=-1)
    attn_out = jnp.einsum("bqk,bkd->bqd", bf(w), hb,
                          preferred_element_type=jnp.float32)
    o = jnp.einsum("bsd,de->bse", bf(attn_out), p["wo"],
                   preferred_element_type=jnp.float32) + p["bo"]
    x2 = x + o
    xn2 = ln(x2, p["g2"], p["be2"])
    ffh = jnp.maximum(jnp.einsum("bsd,df->bsf", bf(xn2), p["w1"],
                                 preferred_element_type=jnp.float32) + p["bb1"], 0.0)
    ff = jnp.einsum("bsf,fd->bsd", bf(ffh), p["w2"],
                    preferred_element_type=jnp.float32) + p["bb2"]
    return x2 + ff, w


if __name__ == "__main__":
    # d_model=128 keeps output stores lane-dense and MXU contraction dims aligned.
    B, S, D, D_FF = 2, 8, 128, 1024                   # FeedForward default d_ff=1024

    key = jax.random.PRNGKey(0)
    kx, km, kp = jax.random.split(key, 3)

    x = jax.random.normal(kx, (B, S, D), jnp.float32)
    # mask: (B, S); mostly ones with a few masked (0) key positions.
    mask = (jax.random.uniform(km, (B, S)) > 0.2).astype(jnp.float32)
    params = init_params(kp, D, D_FF)

    out, attn = transformer_block(x, mask, params)
    out = jax.block_until_ready(out)
    attn = jax.block_until_ready(attn)

    ref_out, ref_attn = _reference(x, mask, params)
    assert out.shape == (B, S, D) and attn.shape == (B, S, S)
    assert jnp.allclose(out, ref_out, atol=2e-2, rtol=2e-2), "out mismatch"
    assert jnp.allclose(attn, ref_attn, atol=1e-2, rtol=1e-2), "attn mismatch"

    print("KERNEL_OK")
</pallas_src>

<mosaic_0001>
module attributes {stable_mosaic.version = 11 : i64} {
  func.func @_block_fused_kernel(%arg0: i32, %arg1: memref<1x8x128xf32, #tpu.memory_space<vmem>>, %arg2: memref<1x1x8xf32, #tpu.memory_space<vmem>>, %arg3: memref<1x128xf32, #tpu.memory_space<vmem>>, %arg4: memref<1x128xf32, #tpu.memory_space<vmem>>, %arg5: memref<128x128xbf16, #tpu.memory_space<vmem>>, %arg6: memref<1x128xf32, #tpu.memory_space<vmem>>, %arg7: memref<128x128xbf16, #tpu.memory_space<vmem>>, %arg8: memref<1x128xf32, #tpu.memory_space<vmem>>, %arg9: memref<1x128xf32, #tpu.memory_space<vmem>>, %arg10: memref<1x128xf32, #tpu.memory_space<vmem>>, %arg11: memref<128x1024xbf16, #tpu.memory_space<vmem>>, %arg12: memref<1x1024xf32, #tpu.memory_space<vmem>>, %arg13: memref<1024x128xbf16, #tpu.memory_space<vmem>>, %arg14: memref<1x128xf32, #tpu.memory_space<vmem>>, %arg15: memref<1x8x128xf32, #tpu.memory_space<vmem>>, %arg16: memref<1x8x8xf32, #tpu.memory_space<vmem>>) attributes {dimension_semantics = [#tpu.dimension_semantics<parallel>], iteration_bounds = array<i64: 2>, scalar_prefetch = 0 : i64, scratch_operands = 0 : i64, tpu.core_type = #tpu.core_type<tc>, window_params = [{transform_indices = @transform_0, window_bounds = array<i64: 1, 8, 128>}, {transform_indices = @transform_1, window_bounds = array<i64: 1, 1, 8>}, {pipeline_mode = #tpu.pipeline_mode<synchronous>, transform_indices = @transform_2, window_bounds = array<i64: 1, 128>}, {pipeline_mode = #tpu.pipeline_mode<synchronous>, transform_indices = @transform_3, window_bounds = array<i64: 1, 128>}, {pipeline_mode = #tpu.pipeline_mode<synchronous>, transform_indices = @transform_4, window_bounds = array<i64: 128, 128>}, {pipeline_mode = #tpu.pipeline_mode<synchronous>, transform_indices = @transform_5, window_bounds = array<i64: 1, 128>}, {pipeline_mode = #tpu.pipeline_mode<synchronous>, transform_indices = @transform_6, window_bounds = array<i64: 128, 128>}, {pipeline_mode = #tpu.pipeline_mode<synchronous>, transform_indices = @transform_7, window_bounds = array<i64: 1, 128>}, {pipeline_mode = #tpu.pipeline_mode<synchronous>, transform_indices = @transform_8, window_bounds = array<i64: 1, 128>}, {pipeline_mode = #tpu.pipeline_mode<synchronous>, transform_indices = @transform_9, window_bounds = array<i64: 1, 128>}, {pipeline_mode = #tpu.pipeline_mode<synchronous>, transform_indices = @transform_10, window_bounds = array<i64: 128, 1024>}, {pipeline_mode = #tpu.pipeline_mode<synchronous>, transform_indices = @transform_11, window_bounds = array<i64: 1, 1024>}, {pipeline_mode = #tpu.pipeline_mode<synchronous>, transform_indices = @transform_12, window_bounds = array<i64: 1024, 128>}, {pipeline_mode = #tpu.pipeline_mode<synchronous>, transform_indices = @transform_13, window_bounds = array<i64: 1, 128>}, {transform_indices = @transform_14, window_bounds = array<i64: 1, 8, 128>}, {transform_indices = @transform_15, window_bounds = array<i64: 1, 8, 8>}]} {
    %c0 = arith.constant 0 : index
    %c0_0 = arith.constant 0 : index
    %c0_1 = arith.constant 0 : index
    %0 = vector.load %arg1[%c0, %c0_0, %c0_1] : memref<1x8x128xf32, #tpu.memory_space<vmem>>, vector<1x8x128xf32>
    %1 = vector.shape_cast %0 : vector<1x8x128xf32> to vector<8x128xf32>
    %c0_2 = arith.constant 0 : index
    %c0_3 = arith.constant 0 : index
    %c0_4 = arith.constant 0 : index
    %2 = vector.load %arg2[%c0_2, %c0_3, %c0_4] : memref<1x1x8xf32, #tpu.memory_space<vmem>>, vector<1x1x8xf32>
    %cst = arith.constant 1.000000e+00 : f32
    %3 = vector.broadcast %cst : f32 to vector<1x1x8xf32>
    %4 = arith.subf %2, %3 : vector<1x1x8xf32>
    %cst_5 = arith.constant 1.000000e+09 : f32
    %5 = vector.broadcast %cst_5 : f32 to vector<1x1x8xf32>
    %6 = arith.mulf %4, %5 : vector<1x1x8xf32>
    %cst_6 = arith.constant dense<0.000000e+00> : vector<8xf32>
    %7 = vector.multi_reduction <add>, %1, %cst_6 [1] : vector<8x128xf32> to vector<8xf32>
    %8 = vector.shape_cast %7 : vector<8xf32> to vector<8x1xf32>
    %cst_7 = arith.constant 1.280000e+02 : f32
    %9 = vector.broadcast %cst_7 : f32 to vector<8x1xf32>
    %10 = arith.divf %8, %9 : vector<8x1xf32>
    %11 = vector.broadcast %10 : vector<8x1xf32> to vector<8x128xf32>
    %12 = arith.subf %1, %11 : vector<8x128xf32>
    %13 = arith.mulf %12, %12 : vector<8x128xf32>
    %cst_8 = arith.constant dense<0.000000e+00> : vector<8xf32>
    %14 = vector.multi_reduction <add>, %13, %cst_8 [1] : vector<8x128xf32> to vector<8xf32>
    %15 = vector.shape_cast %14 : vector<8xf32> to vector<8x1xf32>
    %cst_9 = arith.constant 1.280000e+02 : f32
    %16 = vector.broadcast %cst_9 : f32 to vector<8x1xf32>
    %17 = arith.divf %15, %16 : vector<8x1xf32>
    %18 = vector.broadcast %10 : vector<8x1xf32> to vector<8x128xf32>
    %19 = arith.subf %1, %18 : vector<8x128xf32>
    %cst_10 = arith.constant 9.99999974E-6 : f32
    %20 = vector.broadcast %cst_10 : f32 to vector<8x1xf32>
    %21 = arith.addf %17, %20 : vector<8x1xf32>
    %22 = math.rsqrt %21 : vector<8x1xf32>
    %23 = vector.broadcast %22 : vector<8x1xf32> to vector<8x128xf32>
    %24 = arith.mulf %19, %23 : vector<8x128xf32>
    %c0_11 = arith.constant 0 : index
    %c0_12 = arith.constant 0 : index
    %25 = vector.load %arg3[%c0_11, %c0_12] : memref<1x128xf32, #tpu.memory_space<vmem>>, vector<1x128xf32>
    %26 = vector.broadcast %25 : vector<1x128xf32> to vector<8x128xf32>
    %27 = arith.mulf %24, %26 : vector<8x128xf32>
    %c0_13 = arith.constant 0 : index
    %c0_14 = arith.constant 0 : index
    %28 = vector.load %arg4[%c0_13, %c0_14] : memref<1x128xf32, #tpu.memory_space<vmem>>, vector<1x128xf32>
    %29 = vector.broadcast %28 : vector<1x128xf32> to vector<8x128xf32>
    %30 = arith.addf %27, %29 : vector<8x128xf32>
    %31 = arith.truncf %30 : vector<8x128xf32> to vector<8x128xbf16>
    %c0_15 = arith.constant 0 : index
    %c0_16 = arith.constant 0 : index
    %32 = vector.load %arg5[%c0_15, %c0_16] : memref<128x128xbf16, #tpu.memory_space<vmem>>, vector<128x128xbf16>
    %cst_17 = arith.constant dense<0.000000e+00> : vector<8x128xf32>
    %33 = tpu.matmul %31, %32, %cst_17 {dimension_numbers = #tpu.dot_dimension_numbers<[1], [0], [0], [1], [0, 0, 1, 1], [], []>} : vector<8x128xbf16>, vector<128x128xbf16>, vector<8x128xf32> -> vector<8x128xf32>
    %c0_18 = arith.constant 0 : index
    %c0_19 = arith.constant 0 : index
    %34 = vector.load %arg6[%c0_18, %c0_19] : memref<1x128xf32, #tpu.memory_space<vmem>>, vector<1x128xf32>
    %35 = vector.broadcast %34 : vector<1x128xf32> to vector<8x128xf32>
    %36 = arith.addf %33, %35 : vector<8x128xf32>
    %37 = arith.truncf %36 : vector<8x128xf32> to vector<8x128xbf16>
    %38 = vector.shape_cast %37 : vector<8x128xbf16> to vector<1x8x128xbf16>
    %cst_20 = arith.constant dense<0.000000e+00> : vector<1x8x8xf32>
    %39 = tpu.matmul %38, %38, %cst_20 {dimension_numbers = #tpu.dot_dimension_numbers<[2], [2], [1], [1], [0, 0, 0, 1, 1, 1], [0], [0]>} : vector<1x8x128xbf16>, vector<1x8x128xbf16>, vector<1x8x8xf32> -> vector<1x8x8xf32>
    %cst_21 = arith.constant 0.0883883461 : f32
    %40 = vector.broadcast %cst_21 : f32 to vector<1x8x8xf32>
    %41 = arith.mulf %39, %40 : vector<1x8x8xf32>
    %42 = vector.broadcast %6 : vector<1x1x8xf32> to vector<1x8x8xf32>
    %43 = arith.addf %41, %42 : vector<1x8x8xf32>
    %cst_22 = arith.constant dense<0xFF800000> : vector<1x8xf32>
    %44 = vector.multi_reduction <maximumf>, %43, %cst_22 [2] : vector<1x8x8xf32> to vector<1x8xf32>
    %45 = vector.shape_cast %44 : vector<1x8xf32> to vector<1x8x1xf32>
    %46 = vector.broadcast %45 : vector<1x8x1xf32> to vector<1x8x8xf32>
    %47 = arith.subf %43, %46 : vector<1x8x8xf32>
    %48 = math.exp %47 : vector<1x8x8xf32>
    %cst_23 = arith.constant dense<0.000000e+00> : vector<1x8xf32>
    %49 = vector.multi_reduction <add>, %48, %cst_23 [2] : vector<1x8x8xf32> to vector<1x8xf32>
    %50 = vector.shape_cast %49 : vector<1x8xf32> to vector<1x8x1xf32>
    %51 = vector.broadcast %50 : vector<1x8x1xf32> to vector<1x8x8xf32>
    %52 = arith.divf %48, %51 : vector<1x8x8xf32>
    %53 = arith.truncf %52 : vector<1x8x8xf32> to vector<1x8x8xbf16>
    %cst_24 = arith.constant dense<0.000000e+00> : vector<1x8x128xf32>
    %54 = tpu.matmul %53, %38, %cst_24 {dimension_numbers = #tpu.dot_dimension_numbers<[2], [1], [1], [2], [0, 0, 0, 1, 1, 2], [0], [0]>} : vector<1x8x8xbf16>, vector<1x8x128xbf16>, vector<1x8x128xf32> -> vector<1x8x128xf32>
    %55 = vector.shape_cast %54 : vector<1x8x128xf32> to vector<8x128xf32>
    %56 = arith.truncf %55 : vector<8x128xf32> to vector<8x128xbf16>
    %c0_25 = arith.constant 0 : index
    %c0_26 = arith.constant 0 : index
    %57 = vector.load %arg7[%c0_25, %c0_26] : memref<128x128xbf16, #tpu.memory_space<vmem>>, vector<128x128xbf16>
    %cst_27 = arith.constant dense<0.000000e+00> : vector<8x128xf32>
    %58 = tpu.matmul %56, %57, %cst_27 {dimension_numbers = #tpu.dot_dimension_numbers<[1], [0], [0], [1], [0, 0, 1, 1], [], []>} : vector<8x128xbf16>, vector<128x128xbf16>, vector<8x128xf32> -> vector<8x128xf32>
    %c0_28 = arith.constant 0 : index
    %c0_29 = arith.constant 0 : index
    %59 = vector.load %arg8[%c0_28, %c0_29] : memref<1x128xf32, #tpu.memory_space<vmem>>, vector<1x128xf32>
    %60 = vector.broadcast %59 : vector<1x128xf32> to vector<8x128xf32>
    %61 = arith.addf %58, %60 : vector<8x128xf32>
    %62 = arith.addf %1, %61 : vector<8x128xf32>
    %cst_30 = arith.constant dense<0.000000e+00> : vector<8xf32>
    %63 = vector.multi_reduction <add>, %62, %cst_30 [1] : vector<8x128xf32> to vector<8xf32>
    %64 = vector.shape_cast %63 : vector<8xf32> to vector<8x1xf32>
    %cst_31 = arith.constant 1.280000e+02 : f32
    %65 = vector.broadcast %cst_31 : f32 to vector<8x1xf32>
    %66 = arith.divf %64, %65 : vector<8x1xf32>
    %67 = vector.broadcast %66 : vector<8x1xf32> to vector<8x128xf32>
    %68 = arith.subf %62, %67 : vector<8x128xf32>
    %69 = arith.mulf %68, %68 : vector<8x128xf32>
    %cst_32 = arith.constant dense<0.000000e+00> : vector<8xf32>
    %70 = vector.multi_reduction <add>, %69, %cst_32 [1] : vector<8x128xf32> to vector<8xf32>
    %71 = vector.shape_cast %70 : vector<8xf32> to vector<8x1xf32>
    %cst_33 = arith.constant 1.280000e+02 : f32
    %72 = vector.broadcast %cst_33 : f32 to vector<8x1xf32>
    %73 = arith.divf %71, %72 : vector<8x1xf32>
    %74 = vector.broadcast %66 : vector<8x1xf32> to vector<8x128xf32>
    %75 = arith.subf %62, %74 : vector<8x128xf32>
    %cst_34 = arith.constant 9.99999974E-6 : f32
    %76 = vector.broadcast %cst_34 : f32 to vector<8x1xf32>
    %77 = arith.addf %73, %76 : vector<8x1xf32>
    %78 = math.rsqrt %77 : vector<8x1xf32>
    %79 = vector.broadcast %78 : vector<8x1xf32> to vector<8x128xf32>
    %80 = arith.mulf %75, %79 : vector<8x128xf32>
    %c0_35 = arith.constant 0 : index
    %c0_36 = arith.constant 0 : index
    %81 = vector.load %arg9[%c0_35, %c0_36] : memref<1x128xf32, #tpu.memory_space<vmem>>, vector<1x128xf32>
    %82 = vector.broadcast %81 : vector<1x128xf32> to vector<8x128xf32>
    %83 = arith.mulf %80, %82 : vector<8x128xf32>
    %c0_37 = arith.constant 0 : index
    %c0_38 = arith.constant 0 : index
    %84 = vector.load %arg10[%c0_37, %c0_38] : memref<1x128xf32, #tpu.memory_space<vmem>>, vector<1x128xf32>
    %85 = vector.broadcast %84 : vector<1x128xf32> to vector<8x128xf32>
    %86 = arith.addf %83, %85 : vector<8x128xf32>
    %87 = arith.truncf %86 : vector<8x128xf32> to vector<8x128xbf16>
    %c0_39 = arith.constant 0 : index
    %c0_40 = arith.constant 0 : index
    %c0_41 = arith.constant 0 : index
    %88 = vector.load %arg16[%c0_39, %c0_40, %c0_41] : memref<1x8x8xf32, #tpu.memory_space<vmem>>, vector<1x8x8xf32>
    tpu.vector_store %arg16[%c0_39, %c0_40, %c0_41], %52 {strides = array<i32>} : memref<1x8x8xf32, #tpu.memory_space<vmem>>, vector<1x8x8xf32>,
    %c0_42 = arith.constant 0 : index
    %c0_43 = arith.constant 0 : index
    %89 = vector.load %arg11[%c0_42, %c0_43] : memref<128x1024xbf16, #tpu.memory_space<vmem>>, vector<128x1024xbf16>
    %cst_44 = arith.constant dense<0.000000e+00> : vector<8x1024xf32>
    %90 = tpu.matmul %87, %89, %cst_44 {dimension_numbers = #tpu.dot_dimension_numbers<[1], [0], [0], [1], [0, 0, 1, 1], [], []>} : vector<8x128xbf16>, vector<128x1024xbf16>, vector<8x1024xf32> -> vector<8x1024xf32>
    %c0_45 = arith.constant 0 : index
    %c0_46 = arith.constant 0 : index
    %91 = vector.load %arg12[%c0_45, %c0_46] : memref<1x1024xf32, #tpu.memory_space<vmem>>, vector<1x1024xf32>
    %92 = vector.broadcast %91 : vector<1x1024xf32> to vector<8x1024xf32>
    %93 = arith.addf %90, %92 : vector<8x1024xf32>
    %cst_47 = arith.constant 0.000000e+00 : f32
    %94 = vector.broadcast %cst_47 : f32 to vector<8x1024xf32>
    %95 = arith.maximumf %93, %94 : vector<8x1024xf32>
    %96 = arith.truncf %95 : vector<8x1024xf32> to vector<8x1024xbf16>
    %c0_48 = arith.constant 0 : index
    %c0_49 = arith.constant 0 : index
    %97 = vector.load %arg13[%c0_48, %c0_49] : memref<1024x128xbf16, #tpu.memory_space<vmem>>, vector<1024x128xbf16>
    %cst_50 = arith.constant dense<0.000000e+00> : vector<8x128xf32>
    %98 = tpu.matmul %96, %97, %cst_50 {dimension_numbers = #tpu.dot_dimension_numbers<[1], [0], [0], [1], [0, 0, 1, 1], [], []>} : vector<8x1024xbf16>, vector<1024x128xbf16>, vector<8x128xf32> -> vector<8x128xf32>
    %c0_51 = arith.constant 0 : index
    %c0_52 = arith.constant 0 : index
    %99 = vector.load %arg14[%c0_51, %c0_52] : memref<1x128xf32, #tpu.memory_space<vmem>>, vector<1x128xf32>
    %100 = vector.broadcast %99 : vector<1x128xf32> to vector<8x128xf32>
    %101 = arith.addf %98, %100 : vector<8x128xf32>
    %102 = arith.addf %62, %101 : vector<8x128xf32>
    %103 = vector.shape_cast %102 : vector<8x128xf32> to vector<1x8x128xf32>
    %c0_53 = arith.constant 0 : index
    %c0_54 = arith.constant 0 : index
    %c0_55 = arith.constant 0 : index
    %104 = vector.load %arg15[%c0_53, %c0_54, %c0_55] : memref<1x8x128xf32, #tpu.memory_space<vmem>>, vector<1x8x128xf32>
    tpu.vector_store %arg15[%c0_53, %c0_54, %c0_55], %103 {strides = array<i32>} : memref<1x8x128xf32, #tpu.memory_space<vmem>>, vector<1x8x128xf32>,
    return
  }
  func.func @transform_0(%arg0: i32) -> (i32, i32, i32) {
    %c0_i32 = arith.constant 0 : i32
    %c0_i32_0 = arith.constant 0 : i32
    %c0_i32_1 = arith.constant 0 : i32
    return %arg0, %c0_i32, %c0_i32_0 : i32, i32, i32
  }
  func.func @transform_1(%arg0: i32) -> (i32, i32, i32) {
    %c0_i32 = arith.constant 0 : i32
    %c0_i32_0 = arith.constant 0 : i32
    %c0_i32_1 = arith.constant 0 : i32
    return %arg0, %c0_i32, %c0_i32_0 : i32, i32, i32
  }
  func.func @transform_2(%arg0: i32) -> (i32, i32) {
    %c0_i32 = arith.constant 0 : i32
    %c0_i32_0 = arith.constant 0 : i32
    %c0_i32_1 = arith.constant 0 : i32
    return %c0_i32, %c0_i32_0 : i32, i32
  }
  func.func @transform_3(%arg0: i32) -> (i32, i32) {
    %c0_i32 = arith.constant 0 : i32
    %c0_i32_0 = arith.constant 0 : i32
    %c0_i32_1 = arith.constant 0 : i32
    return %c0_i32, %c0_i32_0 : i32, i32
  }
  func.func @transform_4(%arg0: i32) -> (i32, i32) {
    %c0_i32 = arith.constant 0 : i32
    %c0_i32_0 = arith.constant 0 : i32
    %c0_i32_1 = arith.constant 0 : i32
    return %c0_i32, %c0_i32_0 : i32, i32
  }
  func.func @transform_5(%arg0: i32) -> (i32, i32) {
    %c0_i32 = arith.constant 0 : i32
    %c0_i32_0 = arith.constant 0 : i32
    %c0_i32_1 = arith.constant 0 : i32
    return %c0_i32, %c0_i32_0 : i32, i32
  }
  func.func @transform_6(%arg0: i32) -> (i32, i32) {
    %c0_i32 = arith.constant 0 : i32
    %c0_i32_0 = arith.constant 0 : i32
    %c0_i32_1 = arith.constant 0 : i32
    return %c0_i32, %c0_i32_0 : i32, i32
  }
  func.func @transform_7(%arg0: i32) -> (i32, i32) {
    %c0_i32 = arith.constant 0 : i32
    %c0_i32_0 = arith.constant 0 : i32
    %c0_i32_1 = arith.constant 0 : i32
    return %c0_i32, %c0_i32_0 : i32, i32
  }
  func.func @transform_8(%arg0: i32) -> (i32, i32) {
    %c0_i32 = arith.constant 0 : i32
    %c0_i32_0 = arith.constant 0 : i32
    %c0_i32_1 = arith.constant 0 : i32
    return %c0_i32, %c0_i32_0 : i32, i32
  }
  func.func @transform_9(%arg0: i32) -> (i32, i32) {
    %c0_i32 = arith.constant 0 : i32
    %c0_i32_0 = arith.constant 0 : i32
    %c0_i32_1 = arith.constant 0 : i32
    return %c0_i32, %c0_i32_0 : i32, i32
  }
  func.func @transform_10(%arg0: i32) -> (i32, i32) {
    %c0_i32 = arith.constant 0 : i32
    %c0_i32_0 = arith.constant 0 : i32
    %c0_i32_1 = arith.constant 0 : i32
    return %c0_i32, %c0_i32_0 : i32, i32
  }
  func.func @transform_11(%arg0: i32) -> (i32, i32) {
    %c0_i32 = arith.constant 0 : i32
    %c0_i32_0 = arith.constant 0 : i32
    %c0_i32_1 = arith.constant 0 : i32
    return %c0_i32, %c0_i32_0 : i32, i32
  }
  func.func @transform_12(%arg0: i32) -> (i32, i32) {
    %c0_i32 = arith.constant 0 : i32
    %c0_i32_0 = arith.constant 0 : i32
    %c0_i32_1 = arith.constant 0 : i32
    return %c0_i32, %c0_i32_0 : i32, i32
  }
  func.func @transform_13(%arg0: i32) -> (i32, i32) {
    %c0_i32 = arith.constant 0 : i32
    %c0_i32_0 = arith.constant 0 : i32
    %c0_i32_1 = arith.constant 0 : i32
    return %c0_i32, %c0_i32_0 : i32, i32
  }
  func.func @transform_14(%arg0: i32) -> (i32, i32, i32) {
    %c0_i32 = arith.constant 0 : i32
    %c0_i32_0 = arith.constant 0 : i32
    %c0_i32_1 = arith.constant 0 : i32
    return %arg0, %c0_i32, %c0_i32_0 : i32, i32, i32
  }
  func.func @transform_15(%arg0: i32) -> (i32, i32, i32) {
    %c0_i32 = arith.constant 0 : i32
    %c0_i32_0 = arith.constant 0 : i32
    %c0_i32_1 = arith.constant 0 : i32
    return %arg0, %c0_i32, %c0_i32_0 : i32, i32, i32
  }
}

module attributes {stable_mosaic.version = 11 : i64} {
  func.func @_block_fused_kernel(%arg0: i32, %arg1: memref<1x8x128xf32, #tpu.memory_space<vmem>>, %arg2: memref<1x1x8xf32, #tpu.memory_space<vmem>>, %arg3: memref<1x128xf32, #tpu.memory_space<vmem>>, %arg4: memref<1x128xf32, #tpu.memory_space<vmem>>, %arg5: memref<128x128xbf16, #tpu.memory_space<vmem>>, %arg6: memref<1x128xf32, #tpu.memory_space<vmem>>, %arg7: memref<128x128xbf16, #tpu.memory_space<vmem>>, %arg8: memref<1x128xf32, #tpu.memory_space<vmem>>, %arg9: memref<1x128xf32, #tpu.memory_space<vmem>>, %arg10: memref<1x128xf32, #tpu.memory_space<vmem>>, %arg11: memref<128x1024xbf16, #tpu.memory_space<vmem>>, %arg12: memref<1x1024xf32, #tpu.memory_space<vmem>>, %arg13: memref<1024x128xbf16, #tpu.memory_space<vmem>>, %arg14: memref<1x128xf32, #tpu.memory_space<vmem>>, %arg15: memref<1x8x128xf32, #tpu.memory_space<vmem>>, %arg16: memref<1x8x8xf32, #tpu.memory_space<vmem>>) attributes {dimension_semantics = [#tpu.dimension_semantics<parallel>], iteration_bounds = array<i64: 2>, scalar_prefetch = 0 : i64, scratch_operands = 0 : i64, tpu.core_type = #tpu.core_type<tc>, window_params = [{transform_indices = @transform_0, window_bounds = array<i64: 1, 8, 128>}, {transform_indices = @transform_1, window_bounds = array<i64: 1, 1, 8>}, {pipeline_mode = #tpu.pipeline_mode<synchronous>, transform_indices = @transform_2, window_bounds = array<i64: 1, 128>}, {pipeline_mode = #tpu.pipeline_mode<synchronous>, transform_indices = @transform_3, window_bounds = array<i64: 1, 128>}, {pipeline_mode = #tpu.pipeline_mode<synchronous>, transform_indices = @transform_4, window_bounds = array<i64: 128, 128>}, {pipeline_mode = #tpu.pipeline_mode<synchronous>, transform_indices = @transform_5, window_bounds = array<i64: 1, 128>}, {pipeline_mode = #tpu.pipeline_mode<synchronous>, transform_indices = @transform_6, window_bounds = array<i64: 128, 128>}, {pipeline_mode = #tpu.pipeline_mode<synchronous>, transform_indices = @transform_7, window_bounds = array<i64: 1, 128>}, {pipeline_mode = #tpu.pipeline_mode<synchronous>, transform_indices = @transform_8, window_bounds = array<i64: 1, 128>}, {pipeline_mode = #tpu.pipeline_mode<synchronous>, transform_indices = @transform_9, window_bounds = array<i64: 1, 128>}, {pipeline_mode = #tpu.pipeline_mode<synchronous>, transform_indices = @transform_10, window_bounds = array<i64: 128, 1024>}, {pipeline_mode = #tpu.pipeline_mode<synchronous>, transform_indices = @transform_11, window_bounds = array<i64: 1, 1024>}, {pipeline_mode = #tpu.pipeline_mode<synchronous>, transform_indices = @transform_12, window_bounds = array<i64: 1024, 128>}, {pipeline_mode = #tpu.pipeline_mode<synchronous>, transform_indices = @transform_13, window_bounds = array<i64: 1, 128>}, {transform_indices = @transform_14, window_bounds = array<i64: 1, 8, 128>}, {transform_indices = @transform_15, window_bounds = array<i64: 1, 8, 8>}]} {
    %c0 = arith.constant 0 : index
    %c0_0 = arith.constant 0 : index
    %c0_1 = arith.constant 0 : index
    %0 = vector.load %arg1[%c0, %c0_0, %c0_1] : memref<1x8x128xf32, #tpu.memory_space<vmem>>, vector<1x8x128xf32>
    %1 = vector.shape_cast %0 : vector<1x8x128xf32> to vector<8x128xf32>
    %c0_2 = arith.constant 0 : index
    %c0_3 = arith.constant 0 : index
    %c0_4 = arith.constant 0 : index
    %2 = vector.load %arg2[%c0_2, %c0_3, %c0_4] : memref<1x1x8xf32, #tpu.memory_space<vmem>>, vector<1x1x8xf32>
    %cst = arith.constant 1.000000e+00 : f32
    %3 = vector.broadcast %cst : f32 to vector<1x1x8xf32>
    %4 = arith.subf %2, %3 : vector<1x1x8xf32>
    %cst_5 = arith.constant 1.000000e+09 : f32
    %5 = vector.broadcast %cst_5 : f32 to vector<1x1x8xf32>
    %6 = arith.mulf %4, %5 : vector<1x1x8xf32>
    %cst_6 = arith.constant dense<0.000000e+00> : vector<8xf32>
    %7 = vector.multi_reduction <add>, %1, %cst_6 [1] : vector<8x128xf32> to vector<8xf32>
    %8 = vector.shape_cast %7 : vector<8xf32> to vector<8x1xf32>
    %cst_7 = arith.constant 1.280000e+02 : f32
    %9 = vector.broadcast %cst_7 : f32 to vector<8x1xf32>
    %10 = arith.divf %8, %9 : vector<8x1xf32>
    %11 = vector.broadcast %10 : vector<8x1xf32> to vector<8x128xf32>
    %12 = arith.subf %1, %11 : vector<8x128xf32>
    %13 = arith.mulf %12, %12 : vector<8x128xf32>
    %cst_8 = arith.constant dense<0.000000e+00> : vector<8xf32>
    %14 = vector.multi_reduction <add>, %13, %cst_8 [1] : vector<8x128xf32> to vector<8xf32>
    %15 = vector.shape_cast %14 : vector<8xf32> to vector<8x1xf32>
    %cst_9 = arith.constant 1.280000e+02 : f32
    %16 = vector.broadcast %cst_9 : f32 to vector<8x1xf32>
    %17 = arith.divf %15, %16 : vector<8x1xf32>
    %18 = vector.broadcast %10 : vector<8x1xf32> to vector<8x128xf32>
    %19 = arith.subf %1, %18 : vector<8x128xf32>
    %cst_10 = arith.constant 9.99999974E-6 : f32
    %20 = vector.broadcast %cst_10 : f32 to vector<8x1xf32>
    %21 = arith.addf %17, %20 : vector<8x1xf32>
    %22 = math.rsqrt %21 : vector<8x1xf32>
    %23 = vector.broadcast %22 : vector<8x1xf32> to vector<8x128xf32>
    %24 = arith.mulf %19, %23 : vector<8x128xf32>
    %c0_11 = arith.constant 0 : index
    %c0_12 = arith.constant 0 : index
    %25 = vector.load %arg3[%c0_11, %c0_12] : memref<1x128xf32, #tpu.memory_space<vmem>>, vector<1x128xf32>
    %26 = vector.broadcast %25 : vector<1x128xf32> to vector<8x128xf32>
    %27 = arith.mulf %24, %26 : vector<8x128xf32>
    %c0_13 = arith.constant 0 : index
    %c0_14 = arith.constant 0 : index
    %28 = vector.load %arg4[%c0_13, %c0_14] : memref<1x128xf32, #tpu.memory_space<vmem>>, vector<1x128xf32>
    %29 = vector.broadcast %28 : vector<1x128xf32> to vector<8x128xf32>
    %30 = arith.addf %27, %29 : vector<8x128xf32>
    %31 = arith.truncf %30 : vector<8x128xf32> to vector<8x128xbf16>
    %c0_15 = arith.constant 0 : index
    %c0_16 = arith.constant 0 : index
    %32 = vector.load %arg5[%c0_15, %c0_16] : memref<128x128xbf16, #tpu.memory_space<vmem>>, vector<128x128xbf16>
    %cst_17 = arith.constant dense<0.000000e+00> : vector<8x128xf32>
    %33 = tpu.matmul %31, %32, %cst_17 {dimension_numbers = #tpu.dot_dimension_numbers<[1], [0], [0], [1], [0, 0, 1, 1], [], []>} : vector<8x128xbf16>, vector<128x128xbf16>, vector<8x128xf32> -> vector<8x128xf32>
    %c0_18 = arith.constant 0 : index
    %c0_19 = arith.constant 0 : index
    %34 = vector.load %arg6[%c0_18, %c0_19] : memref<1x128xf32, #tpu.memory_space<vmem>>, vector<1x128xf32>
    %35 = vector.broadcast %34 : vector<1x128xf32> to vector<8x128xf32>
    %36 = arith.addf %33, %35 : vector<8x128xf32>
    %37 = arith.truncf %36 : vector<8x128xf32> to vector<8x128xbf16>
    %38 = vector.shape_cast %37 : vector<8x128xbf16> to vector<1x8x128xbf16>
    %cst_20 = arith.constant dense<0.000000e+00> : vector<1x8x8xf32>
    %39 = tpu.matmul %38, %38, %cst_20 {dimension_numbers = #tpu.dot_dimension_numbers<[2], [2], [1], [1], [0, 0, 0, 1, 1, 1], [0], [0]>} : vector<1x8x128xbf16>, vector<1x8x128xbf16>, vector<1x8x8xf32> -> vector<1x8x8xf32>
    %cst_21 = arith.constant 0.0883883461 : f32
    %40 = vector.broadcast %cst_21 : f32 to vector<1x8x8xf32>
    %41 = arith.mulf %39, %40 : vector<1x8x8xf32>
    %42 = vector.broadcast %6 : vector<1x1x8xf32> to vector<1x8x8xf32>
    %43 = arith.addf %41, %42 : vector<1x8x8xf32>
    %cst_22 = arith.constant dense<0xFF800000> : vector<1x8xf32>
    %44 = vector.multi_reduction <maximumf>, %43, %cst_22 [2] : vector<1x8x8xf32> to vector<1x8xf32>
    %45 = vector.shape_cast %44 : vector<1x8xf32> to vector<1x8x1xf32>
    %46 = vector.broadcast %45 : vector<1x8x1xf32> to vector<1x8x8xf32>
    %47 = arith.subf %43, %46 : vector<1x8x8xf32>
    %48 = math.exp %47 : vector<1x8x8xf32>
    %cst_23 = arith.constant dense<0.000000e+00> : vector<1x8xf32>
    %49 = vector.multi_reduction <add>, %48, %cst_23 [2] : vector<1x8x8xf32> to vector<1x8xf32>
    %50 = vector.shape_cast %49 : vector<1x8xf32> to vector<1x8x1xf32>
    %51 = vector.broadcast %50 : vector<1x8x1xf32> to vector<1x8x8xf32>
    %52 = arith.divf %48, %51 : vector<1x8x8xf32>
    %53 = arith.truncf %52 : vector<1x8x8xf32> to vector<1x8x8xbf16>
    %cst_24 = arith.constant dense<0.000000e+00> : vector<1x8x128xf32>
    %54 = tpu.matmul %53, %38, %cst_24 {dimension_numbers = #tpu.dot_dimension_numbers<[2], [1], [1], [2], [0, 0, 0, 1, 1, 2], [0], [0]>} : vector<1x8x8xbf16>, vector<1x8x128xbf16>, vector<1x8x128xf32> -> vector<1x8x128xf32>
    %55 = vector.shape_cast %54 : vector<1x8x128xf32> to vector<8x128xf32>
    %56 = arith.truncf %55 : vector<8x128xf32> to vector<8x128xbf16>
    %c0_25 = arith.constant 0 : index
    %c0_26 = arith.constant 0 : index
    %57 = vector.load %arg7[%c0_25, %c0_26] : memref<128x128xbf16, #tpu.memory_space<vmem>>, vector<128x128xbf16>
    %cst_27 = arith.constant dense<0.000000e+00> : vector<8x128xf32>
    %58 = tpu.matmul %56, %57, %cst_27 {dimension_numbers = #tpu.dot_dimension_numbers<[1], [0], [0], [1], [0, 0, 1, 1], [], []>} : vector<8x128xbf16>, vector<128x128xbf16>, vector<8x128xf32> -> vector<8x128xf32>
    %c0_28 = arith.constant 0 : index
    %c0_29 = arith.constant 0 : index
    %59 = vector.load %arg8[%c0_28, %c0_29] : memref<1x128xf32, #tpu.memory_space<vmem>>, vector<1x128xf32>
    %60 = vector.broadcast %59 : vector<1x128xf32> to vector<8x128xf32>
    %61 = arith.addf %58, %60 : vector<8x128xf32>
    %62 = arith.addf %1, %61 : vector<8x128xf32>
    %cst_30 = arith.constant dense<0.000000e+00> : vector<8xf32>
    %63 = vector.multi_reduction <add>, %62, %cst_30 [1] : vector<8x128xf32> to vector<8xf32>
    %64 = vector.shape_cast %63 : vector<8xf32> to vector<8x1xf32>
    %cst_31 = arith.constant 1.280000e+02 : f32
    %65 = vector.broadcast %cst_31 : f32 to vector<8x1xf32>
    %66 = arith.divf %64, %65 : vector<8x1xf32>
    %67 = vector.broadcast %66 : vector<8x1xf32> to vector<8x128xf32>
    %68 = arith.subf %62, %67 : vector<8x128xf32>
    %69 = arith.mulf %68, %68 : vector<8x128xf32>
    %cst_32 = arith.constant dense<0.000000e+00> : vector<8xf32>
    %70 = vector.multi_reduction <add>, %69, %cst_32 [1] : vector<8x128xf32> to vector<8xf32>
    %71 = vector.shape_cast %70 : vector<8xf32> to vector<8x1xf32>
    %cst_33 = arith.constant 1.280000e+02 : f32
    %72 = vector.broadcast %cst_33 : f32 to vector<8x1xf32>
    %73 = arith.divf %71, %72 : vector<8x1xf32>
    %74 = vector.broadcast %66 : vector<8x1xf32> to vector<8x128xf32>
    %75 = arith.subf %62, %74 : vector<8x128xf32>
    %cst_34 = arith.constant 9.99999974E-6 : f32
    %76 = vector.broadcast %cst_34 : f32 to vector<8x1xf32>
    %77 = arith.addf %73, %76 : vector<8x1xf32>
    %78 = math.rsqrt %77 : vector<8x1xf32>
    %79 = vector.broadcast %78 : vector<8x1xf32> to vector<8x128xf32>
    %80 = arith.mulf %75, %79 : vector<8x128xf32>
    %c0_35 = arith.constant 0 : index
    %c0_36 = arith.constant 0 : index
    %81 = vector.load %arg9[%c0_35, %c0_36] : memref<1x128xf32, #tpu.memory_space<vmem>>, vector<1x128xf32>
    %82 = vector.broadcast %81 : vector<1x128xf32> to vector<8x128xf32>
    %83 = arith.mulf %80, %82 : vector<8x128xf32>
    %c0_37 = arith.constant 0 : index
    %c0_38 = arith.constant 0 : index
    %84 = vector.load %arg10[%c0_37, %c0_38] : memref<1x128xf32, #tpu.memory_space<vmem>>, vector<1x128xf32>
    %85 = vector.broadcast %84 : vector<1x128xf32> to vector<8x128xf32>
    %86 = arith.addf %83, %85 : vector<8x128xf32>
    %87 = arith.truncf %86 : vector<8x128xf32> to vector<8x128xbf16>
    %c0_39 = arith.constant 0 : index
    %c0_40 = arith.constant 0 : index
    %c0_41 = arith.constant 0 : index
    %88 = vector.load %arg16[%c0_39, %c0_40, %c0_41] : memref<1x8x8xf32, #tpu.memory_space<vmem>>, vector<1x8x8xf32>
    tpu.vector_store %arg16[%c0_39, %c0_40, %c0_41], %52 {strides = array<i32>} : memref<1x8x8xf32, #tpu.memory_space<vmem>>, vector<1x8x8xf32>,
    %c0_42 = arith.constant 0 : index
    %c0_43 = arith.constant 0 : index
    %89 = vector.load %arg11[%c0_42, %c0_43] : memref<128x1024xbf16, #tpu.memory_space<vmem>>, vector<128x1024xbf16>
    %cst_44 = arith.constant dense<0.000000e+00> : vector<8x1024xf32>
    %90 = tpu.matmul %87, %89, %cst_44 {dimension_numbers = #tpu.dot_dimension_numbers<[1], [0], [0], [1], [0, 0, 1, 1], [], []>} : vector<8x128xbf16>, vector<128x1024xbf16>, vector<8x1024xf32> -> vector<8x1024xf32>
    %c0_45 = arith.constant 0 : index
    %c0_46 = arith.constant 0 : index
    %91 = vector.load %arg12[%c0_45, %c0_46] : memref<1x1024xf32, #tpu.memory_space<vmem>>, vector<1x1024xf32>
    %92 = vector.broadcast %91 : vector<1x1024xf32> to vector<8x1024xf32>
    %93 = arith.addf %90, %92 : vector<8x1024xf32>
    %cst_47 = arith.constant 0.000000e+00 : f32
    %94 = vector.broadcast %cst_47 : f32 to vector<8x1024xf32>
    %95 = arith.maximumf %93, %94 : vector<8x1024xf32>
    %96 = arith.truncf %95 : vector<8x1024xf32> to vector<8x1024xbf16>
    %c0_48 = arith.constant 0 : index
    %c0_49 = arith.constant 0 : index
    %97 = vector.load %arg13[%c0_48, %c0_49] : memref<1024x128xbf16, #tpu.memory_space<vmem>>, vector<1024x128xbf16>
    %cst_50 = arith.constant dense<0.000000e+00> : vector<8x128xf32>
    %98 = tpu.matmul %96, %97, %cst_50 {dimension_numbers = #tpu.dot_dimension_numbers<[1], [0], [0], [1], [0, 0, 1, 1], [], []>} : vector<8x1024xbf16>, vector<1024x128xbf16>, vector<8x128xf32> -> vector<8x128xf32>
    %c0_51 = arith.constant 0 : index
    %c0_52 = arith.constant 0 : index
    %99 = vector.load %arg14[%c0_51, %c0_52] : memref<1x128xf32, #tpu.memory_space<vmem>>, vector<1x128xf32>
    %100 = vector.broadcast %99 : vector<1x128xf32> to vector<8x128xf32>
    %101 = arith.addf %98, %100 : vector<8x128xf32>
    %102 = arith.addf %62, %101 : vector<8x128xf32>
    %103 = vector.shape_cast %102 : vector<8x128xf32> to vector<1x8x128xf32>
    %c0_53 = arith.constant 0 : index
    %c0_54 = arith.constant 0 : index
    %c0_55 = arith.constant 0 : index
    %104 = vector.load %arg15[%c0_53, %c0_54, %c0_55] : memref<1x8x128xf32, #tpu.memory_space<vmem>>, vector<1x8x128xf32>
    tpu.vector_store %arg15[%c0_53, %c0_54, %c0_55], %103 {strides = array<i32>} : memref<1x8x128xf32, #tpu.memory_space<vmem>>, vector<1x8x128xf32>,
    return
  }
  func.func @transform_0(%arg0: i32) -> (i32, i32, i32) {
    %c0_i32 = arith.constant 0 : i32
    %c0_i32_0 = arith.constant 0 : i32
    %c0_i32_1 = arith.constant 0 : i32
    return %arg0, %c0_i32, %c0_i32_0 : i32, i32, i32
  }
  func.func @transform_1(%arg0: i32) -> (i32, i32, i32) {
    %c0_i32 = arith.constant 0 : i32
    %c0_i32_0 = arith.constant 0 : i32
    %c0_i32_1 = arith.constant 0 : i32
    return %arg0, %c0_i32, %c0_i32_0 : i32, i32, i32
  }
  func.func @transform_2(%arg0: i32) -> (i32, i32) {
    %c0_i32 = arith.constant 0 : i32
    %c0_i32_0 = arith.constant 0 : i32
    %c0_i32_1 = arith.constant 0 : i32
    return %c0_i32, %c0_i32_0 : i32, i32
  }
  func.func @transform_3(%arg0: i32) -> (i32, i32) {
    %c0_i32 = arith.constant 0 : i32
    %c0_i32_0 = arith.constant 0 : i32
    %c0_i32_1 = arith.constant 0 : i32
    return %c0_i32, %c0_i32_0 : i32, i32
  }
  func.func @transform_4(%arg0: i32) -> (i32, i32) {
    %c0_i32 = arith.constant 0 : i32
    %c0_i32_0 = arith.constant 0 : i32
    %c0_i32_1 = arith.constant 0 : i32
    return %c0_i32, %c0_i32_0 : i32, i32
  }
  func.func @transform_5(%arg0: i32) -> (i32, i32) {
    %c0_i32 = arith.constant 0 : i32
    %c0_i32_0 = arith.constant 0 : i32
    %c0_i32_1 = arith.constant 0 : i32
    return %c0_i32, %c0_i32_0 : i32, i32
  }
  func.func @transform_6(%arg0: i32) -> (i32, i32) {
    %c0_i32 = arith.constant 0 : i32
    %c0_i32_0 = arith.constant 0 : i32
    %c0_i32_1 = arith.constant 0 : i32
    return %c0_i32, %c0_i32_0 : i32, i32
  }
  func.func @transform_7(%arg0: i32) -> (i32, i32) {
    %c0_i32 = arith.constant 0 : i32
    %c0_i32_0 = arith.constant 0 : i32
    %c0_i32_1 = arith.constant 0 : i32
    return %c0_i32, %c0_i32_0 : i32, i32
  }
  func.func @transform_8(%arg0: i32) -> (i32, i32) {
    %c0_i32 = arith.constant 0 : i32
    %c0_i32_0 = arith.constant 0 : i32
    %c0_i32_1 = arith.constant 0 : i32
    return %c0_i32, %c0_i32_0 : i32, i32
  }
  func.func @transform_9(%arg0: i32) -> (i32, i32) {
    %c0_i32 = arith.constant 0 : i32
    %c0_i32_0 = arith.constant 0 : i32
    %c0_i32_1 = arith.constant 0 : i32
    return %c0_i32, %c0_i32_0 : i32, i32
  }
  func.func @transform_10(%arg0: i32) -> (i32, i32) {
    %c0_i32 = arith.constant 0 : i32
    %c0_i32_0 = arith.constant 0 : i32
    %c0_i32_1 = arith.constant 0 : i32
    return %c0_i32, %c0_i32_0 : i32, i32
  }
  func.func @transform_11(%arg0: i32) -> (i32, i32) {
    %c0_i32 = arith.constant 0 : i32
    %c0_i32_0 = arith.constant 0 : i32
    %c0_i32_1 = arith.constant 0 : i32
    return %c0_i32, %c0_i32_0 : i32, i32
  }
  func.func @transform_12(%arg0: i32) -> (i32, i32) {
    %c0_i32 = arith.constant 0 : i32
    %c0_i32_0 = arith.constant 0 : i32
    %c0_i32_1 = arith.constant 0 : i32
    return %c0_i32, %c0_i32_0 : i32, i32
  }
  func.func @transform_13(%arg0: i32) -> (i32, i32) {
    %c0_i32 = arith.constant 0 : i32
    %c0_i32_0 = arith.constant 0 : i32
    %c0_i32_1 = arith.constant 0 : i32
    return %c0_i32, %c0_i32_0 : i32, i32
  }
  func.func @transform_14(%arg0: i32) -> (i32, i32, i32) {
    %c0_i32 = arith.constant 0 : i32
    %c0_i32_0 = arith.constant 0 : i32
    %c0_i32_1 = arith.constant 0 : i32
    return %arg0, %c0_i32, %c0_i32_0 : i32, i32, i32
  }
  func.func @transform_15(%arg0: i32) -> (i32, i32, i32) {
    %c0_i32 = arith.constant 0 : i32
    %c0_i32_0 = arith.constant 0 : i32
    %c0_i32_1 = arith.constant 0 : i32
    return %arg0, %c0_i32, %c0_i32_0 : i32, i32, i32
  }
}

</mosaic_0001>

<llo_original>
// kernel: tpu_custom_call.1
$region0: #{tpu_custom_call.1}
  #allocation0 [shape = 'u32[]', space=smem, size = 0x4, offset = 0x4, fixed_abs, tag = 'smem constant byte address 0x4 - core index']
  #allocation1 [shape = 'u32[144,128]{1,0:T(1,128)}', space=vmem, size = 0x12000, scoped, tag = 'internal scratch']
  %s0 = inlined_call_operand.hbm [shape: f32[2,8,128], index: 0, kind: input, shape index: {}]
  %s1 = inlined_call_operand.hbm [shape: f32[2,1,8], index: 1, kind: input, shape index: {}]
  %s2 = inlined_call_operand.vmem [shape: f32[1,128], index: 2, kind: input, shape index: {}]
  %s3 = inlined_call_operand.vmem [shape: f32[1,128], index: 3, kind: input, shape index: {}]
  %s4 = inlined_call_operand.hbm [shape: bf16[128,128], index: 4, kind: input, shape index: {}]
  %s5 = inlined_call_operand.vmem [shape: f32[1,128], index: 5, kind: input, shape index: {}]
  %s6 = inlined_call_operand.hbm [shape: bf16[128,128], index: 6, kind: input, shape index: {}]
  %s7 = inlined_call_operand.vmem [shape: f32[1,128], index: 7, kind: input, shape index: {}]
  %s8 = inlined_call_operand.vmem [shape: f32[1,128], index: 8, kind: input, shape index: {}]
  %s9 = inlined_call_operand.vmem [shape: f32[1,128], index: 9, kind: input, shape index: {}]
  %s10 = inlined_call_operand.hbm [shape: bf16[128,1024], index: 10, kind: input, shape index: {}]
  %s11 = inlined_call_operand.vmem [shape: f32[1,1024], index: 11, kind: input, shape index: {}]
  %s12 = inlined_call_operand.hbm [shape: bf16[1024,128], index: 12, kind: input, shape index: {}]
  %s13 = inlined_call_operand.vmem [shape: f32[1,128], index: 13, kind: input, shape index: {}]
  %s14 = inlined_call_operand.hbm [shape: f32[2,8,128], index: 14, kind: output, shape index: {0}]
  %s15 = inlined_call_operand.hbm [shape: f32[2,8,8], index: 15, kind: output, shape index: {1}]
  %16 = xla_tuple %s14, %s15
  %s17 = sld [smem:[#allocation0]]
  $region121: #{tpu_custom_call.1} parent=0
    _
  %s19 = ssub.s32 1, %s17
  %s20 = scalar_select 0, %s19, %s17
  $region1: #{tpu_custom_call.1} parent=0
    #allocation2 [shape = 'u8[8192]{0}', space=vmem, size = 0x2000, scoped, tag = 'input window, operand 0']
    #allocation3 [shape = 's32[2]{0}', space=sflag, size = 0x8, scoped, tag = 'scoped memory for tpu_custom_call.1']
    #allocation4 [shape = 's32[2]{0}', space=sflag, size = 0x8, scoped, tag = 'scoped memory for tpu_custom_call.1']
    #allocation5 [shape = 'u8[1024]{0}', space=vmem, size = 0x400, scoped, tag = 'input window, operand 1']
    #allocation6 [shape = 's32[2]{0}', space=sflag, size = 0x8, scoped, tag = 'scoped memory for tpu_custom_call.1']
    #allocation7 [shape = 'u8[32768]{0}', space=vmem, size = 0x8000, scoped, tag = 'input window, operand 4, single buffered']
    #allocation8 [shape = 'u8[32768]{0}', space=vmem, size = 0x8000, scoped, tag = 'input window, operand 6, single buffered']
    #allocation9 [shape = 's32[1]{0}', space=sflag, size = 0x4, scoped, tag = 'scoped memory for tpu_custom_call.1']
    #allocation10 [shape = 'u8[262144]{0}', space=vmem, size = 0x40000, scoped, tag = 'input window, operand 10, single buffered']
    #allocation11 [shape = 'u8[262144]{0}', space=vmem, size = 0x40000, scoped, tag = 'input window, operand 12, single buffered']
    #allocation12 [shape = 's32[1]{0}', space=sflag, size = 0x4, scoped, tag = 'scoped memory for tpu_custom_call.1']
    #allocation13 [shape = 'u8[8192]{0}', space=vmem, size = 0x2000, scoped, tag = 'output window, operand 0']
    #allocation14 [shape = 'u8[8192]{0}', space=vmem, size = 0x2000, scoped, tag = 'output window, operand 1']
    #allocation15 [shape = 's32[2]{0}', space=sflag, size = 0x8, scoped, tag = 'scoped memory for tpu_custom_call.1']
    %21 = vsyncpa [#allocation3], 0
    %s22 = scalar_lea.sflag [#allocation3], 1
    %23 = vsyncpa %s22, 0
    %24 = vsyncpa [#allocation6], 0
    %s25 = scalar_lea.sflag [#allocation6], 1
    %26 = vsyncpa %s25, 0
    %27 = vsyncpa [#allocation9], 0
    %28 = vsyncpa [#allocation12], 0
    %29 = vsyncpa [#allocation4], 0
    %s30 = scalar_lea.sflag [#allocation4], 1
    %31 = vsyncpa %s30, 0
    %32 = vsyncpa [#allocation15], 0
    %s33 = scalar_lea.sflag [#allocation15], 1
    %34 = vsyncpa %s33, 0
    loop: start=0, step=1, limit=4
    $region2: #{tpu_custom_call.1} parent=1 // loop_pre_header
      _
    $region3: #{tpu_custom_call.1} parent=1 // loop_header
      %s36 = sphi 0, %s40
      %p37 = scmp.ge.s32.totalorder %s36, 4
      %s46 = sphi 0, %s48
      %s49 = sphi 0, %s46
      %s50 = sphi 0, %s49
      %s66 = sphi 0, %s50
      %s72 = sphi 0, %s74
      %s75 = sphi 0, %s72
      %s76 = sphi 0, %s75
      %s92 = sphi 0, %s76
      %s96 = sphi 0, %s96
      %s98 = sphi 0, %s96
      %s99 = sphi 0, %s98
      %s113 = sphi 0, %s99
      %s117 = sphi 0, %s117
      %s119 = sphi 0, %s117
      %s120 = sphi 0, %s119
      %s134 = sphi 0, %s120
      %s138 = sphi 0, %s138
      %s140 = sphi 0, %s138
      %s141 = sphi 0, %s140
      %s155 = sphi 0, %s141
      %s159 = sphi 0, %s159
      %s161 = sphi 0, %s159
      %s162 = sphi 0, %s161
      %s176 = sphi 0, %s162
      %s180 = sphi 0, %s180
      %s182 = sphi 0, %s180
      %s183 = sphi 0, %s182
      %s197 = sphi 0, %s183
      %s201 = sphi 0, %s201
      %s203 = sphi 0, %s201
      %s204 = sphi 0, %s203
      %s218 = sphi 0, %s204
      %s222 = sphi 0, %s222
      %s224 = sphi 0, %s222
      %s225 = sphi 0, %s224
      %s239 = sphi 0, %s225
      %s243 = sphi 0, %s243
      %s245 = sphi 0, %s243
      %s246 = sphi 0, %s245
      %s260 = sphi 0, %s246
      %s264 = sphi 0, %s264
      %s266 = sphi 0, %s264
      %s267 = sphi 0, %s266
      %s281 = sphi 0, %s267
      %s285 = sphi 0, %s285
      %s287 = sphi 0, %s285
      %s288 = sphi 0, %s287
      %s302 = sphi 0, %s288
      %s306 = sphi 0, %s306
      %s308 = sphi 0, %s306
      %s309 = sphi 0, %s308
      %s323 = sphi 0, %s309
      %s327 = sphi 0, %s327
      %s329 = sphi 0, %s327
      %s330 = sphi 0, %s329
      %s344 = sphi 0, %s330
      %s350 = sphi 0, %s352
      %s353 = sphi 0, %s350
      %s354 = sphi 0, %s353
      %s370 = sphi 0, %s354
      %s376 = sphi 0, %s378
      %s379 = sphi 0, %s376
      %s380 = sphi 0, %s379
      %s396 = sphi 0, %s380
    $region4: #{tpu_custom_call.1} parent=1 // loop_header_branch
      %39 = sbr.rel (%p37) target = $region8
    $region5: #{tpu_custom_call.1} parent=1 // loop_body
      %s41 = ssub.s32 %s36, 1
      %s42 = ssub.s32 %s36, 2
      %s43 = sadd.s32 %s36, 1
      %s44 = ssub.s32 %s36, %s43
      %p45 = scmp.eq.s32.totalorder %s44, 0
      %s47 = sadd.s32 %s46, 1
      %s48 = scalar_select %p45, %s46, %s47
      %p51 = pneg %p45
      %p52 = scmp.eq.s32.totalorder %s36, 1
      %p53 = por %p51, %p52
      %p54 = scmp.ne.s32.totalorder %s46, %s49
      %p55 = scmp.eq.s32.totalorder %s36, 0
      %p56 = por %p54, %p55
      %p57 = scmp.ne.s32.totalorder %s46, %s49
      %p58 = scmp.eq.s32.totalorder %s41, 1
      %p59 = por %p57, %p58
      %p60 = scmp.ne.s32.totalorder %s49, %s50
      %p61 = scmp.eq.s32.totalorder %s41, 0
      %p62 = por %p60, %p61
      %p63 = scmp.ne.s32.totalorder %s49, %s50
      %p64 = scmp.eq.s32.totalorder %s42, 1
      %p65 = por %p63, %p64
      %p67 = scmp.ne.s32.totalorder %s50, %s66
      %p68 = scmp.eq.s32.totalorder %s42, 0
      %p69 = por %p67, %p68
      %s70 = ssub.s32 %s36, %s43
      %p71 = scmp.eq.s32.totalorder %s70, 0
      %s73 = sadd.s32 %s72, 1
      %s74 = scalar_select %p71, %s72, %s73
      %p77 = pneg %p71
      %p78 = scmp.eq.s32.totalorder %s36, 1
      %p79 = por %p77, %p78
      %p80 = scmp.ne.s32.totalorder %s72, %s75
      %p81 = scmp.eq.s32.totalorder %s36, 0
      %p82 = por %p80, %p81
      %p83 = scmp.ne.s32.totalorder %s72, %s75
      %p84 = scmp.eq.s32.totalorder %s41, 1
      %p85 = por %p83, %p84
      %p86 = scmp.ne.s32.totalorder %s75, %s76
      %p87 = scmp.eq.s32.totalorder %s41, 0
      %p88 = por %p86, %p87
      %p89 = scmp.ne.s32.totalorder %s75, %s76
      %p90 = scmp.eq.s32.totalorder %s42, 1
      %p91 = por %p89, %p90
      %p93 = scmp.ne.s32.totalorder %s76, %s92
      %p94 = scmp.eq.s32.totalorder %s42, 0
      %p95 = por %p93, %p94
      %s97 = sadd.s32 %s96, 1
      %p100 = scmp.eq.s32.totalorder %s36, 1
      %p101 = scmp.ne.s32.totalorder %s96, %s98
      %p102 = scmp.eq.s32.totalorder %s36, 0
      %p103 = por %p101, %p102
      %p104 = scmp.ne.s32.totalorder %s96, %s98
      %p105 = scmp.eq.s32.totalorder %s41, 1
      %p106 = por %p104, %p105
      %p107 = scmp.ne.s32.totalorder %s98, %s99
      %p108 = scmp.eq.s32.totalorder %s41, 0
      %p109 = por %p107, %p108
      %p110 = scmp.ne.s32.totalorder %s98, %s99
      %p111 = scmp.eq.s32.totalorder %s42, 1
      %p112 = por %p110, %p111
      %p114 = scmp.ne.s32.totalorder %s99, %s113
      %p115 = scmp.eq.s32.totalorder %s42, 0
      %p116 = por %p114, %p115
      %s118 = sadd.s32 %s117, 1
      %p121 = scmp.eq.s32.totalorder %s36, 1
      %p122 = scmp.ne.s32.totalorder %s117, %s119
      %p123 = scmp.eq.s32.totalorder %s36, 0
      %p124 = por %p122, %p123
      %p125 = scmp.ne.s32.totalorder %s117, %s119
      %p126 = scmp.eq.s32.totalorder %s41, 1
      %p127 = por %p125, %p126
      %p128 = scmp.ne.s32.totalorder %s119, %s120
      %p129 = scmp.eq.s32.totalorder %s41, 0
      %p130 = por %p128, %p129
      %p131 = scmp.ne.s32.totalorder %s119, %s120
      %p132 = scmp.eq.s32.totalorder %s42, 1
      %p133 = por %p131, %p132
      %p135 = scmp.ne.s32.totalorder %s120, %s134
      %p136 = scmp.eq.s32.totalorder %s42, 0
      %p137 = por %p135, %p136
      %s139 = sadd.s32 %s138, 1
      %p142 = scmp.eq.s32.totalorder %s36, 1
      %p143 = scmp.ne.s32.totalorder %s138, %s140
      %p144 = scmp.eq.s32.totalorder %s36, 0
      %p145 = por %p143, %p144
      %p146 = scmp.ne.s32.totalorder %s138, %s140
      %p147 = scmp.eq.s32.totalorder %s41, 1
      %p148 = por %p146, %p147
      %p149 = scmp.ne.s32.totalorder %s140, %s141
      %p150 = scmp.eq.s32.totalorder %s41, 0
      %p151 = por %p149, %p150
      %p152 = scmp.ne.s32.totalorder %s140, %s141
      %p153 = scmp.eq.s32.totalorder %s42, 1
      %p154 = por %p152, %p153
      %p156 = scmp.ne.s32.totalorder %s141, %s155
      %p157 = scmp.eq.s32.totalorder %s42, 0
      %p158 = por %p156, %p157
      %s160 = sadd.s32 %s159, 1
      %p163 = scmp.eq.s32.totalorder %s36, 1
      %p164 = scmp.ne.s32.totalorder %s159, %s161
      %p165 = scmp.eq.s32.totalorder %s36, 0
      %p166 = por %p164, %p165
      %p167 = scmp.ne.s32.totalorder %s159, %s161
      %p168 = scmp.eq.s32.totalorder %s41, 1
      %p169 = por %p167, %p168
      %p170 = scmp.ne.s32.totalorder %s161, %s162
      %p171 = scmp.eq.s32.totalorder %s41, 0
      %p172 = por %p170, %p171
      %p173 = scmp.ne.s32.totalorder %s161, %s162
      %p174 = scmp.eq.s32.totalorder %s42, 1
      %p175 = por %p173, %p174
      %p177 = scmp.ne.s32.totalorder %s162, %s176
      %p178 = scmp.eq.s32.totalorder %s42, 0
      %p179 = por %p177, %p178
      %s181 = sadd.s32 %s180, 1
      %p184 = scmp.eq.s32.totalorder %s36, 1
      %p185 = scmp.ne.s32.totalorder %s180, %s182
      %p186 = scmp.eq.s32.totalorder %s36, 0
      %p187 = por %p185, %p186
      %p188 = scmp.ne.s32.totalorder %s180, %s182
      %p189 = scmp.eq.s32.totalorder %s41, 1
      %p190 = por %p188, %p189
      %p191 = scmp.ne.s32.totalorder %s182, %s183
      %p192 = scmp.eq.s32.totalorder %s41, 0
      %p193 = por %p191, %p192
      %p194 = scmp.ne.s32.totalorder %s182, %s183
      %p195 = scmp.eq.s32.totalorder %s42, 1
      %p196 = por %p194, %p195
      %p198 = scmp.ne.s32.totalorder %s183, %s197
      %p199 = scmp.eq.s32.totalorder %s42, 0
      %p200 = por %p198, %p199
      %s202 = sadd.s32 %s201, 1
      %p205 = scmp.eq.s32.totalorder %s36, 1
      %p206 = scmp.ne.s32.totalorder %s201, %s203
      %p207 = scmp.eq.s32.totalorder %s36, 0
      %p208 = por %p206, %p207
      %p209 = scmp.ne.s32.totalorder %s201, %s203
      %p210 = scmp.eq.s32.totalorder %s41, 1
      %p211 = por %p209, %p210
      %p212 = scmp.ne.s32.totalorder %s203, %s204
      %p213 = scmp.eq.s32.totalorder %s41, 0
      %p214 = por %p212, %p213
      %p215 = scmp.ne.s32.totalorder %s203, %s204
      %p216 = scmp.eq.s32.totalorder %s42, 1
      %p217 = por %p215, %p216
      %p219 = scmp.ne.s32.totalorder %s204, %s218
      %p220 = scmp.eq.s32.totalorder %s42, 0
      %p221 = por %p219, %p220
      %s223 = sadd.s32 %s222, 1
      %p226 = scmp.eq.s32.totalorder %s36, 1
      %p227 = scmp.ne.s32.totalorder %s222, %s224
      %p228 = scmp.eq.s32.totalorder %s36, 0
      %p229 = por %p227, %p228
      %p230 = scmp.ne.s32.totalorder %s222, %s224
      %p231 = scmp.eq.s32.totalorder %s41, 1
      %p232 = por %p230, %p231
      %p233 = scmp.ne.s32.totalorder %s224, %s225
      %p234 = scmp.eq.s32.totalorder %s41, 0
      %p235 = por %p233, %p234
      %p236 = scmp.ne.s32.totalorder %s224, %s225
      %p237 = scmp.eq.s32.totalorder %s42, 1
      %p238 = por %p236, %p237
      %p240 = scmp.ne.s32.totalorder %s225, %s239
      %p241 = scmp.eq.s32.totalorder %s42, 0
      %p242 = por %p240, %p241
      %s244 = sadd.s32 %s243, 1
      %p247 = scmp.eq.s32.totalorder %s36, 1
      %p248 = scmp.ne.s32.totalorder %s243, %s245
      %p249 = scmp.eq.s32.totalorder %s36, 0
      %p250 = por %p248, %p249
      %p251 = scmp.ne.s32.totalorder %s243, %s245
      %p252 = scmp.eq.s32.totalorder %s41, 1
      %p253 = por %p251, %p252
      %p254 = scmp.ne.s32.totalorder %s245, %s246
      %p255 = scmp.eq.s32.totalorder %s41, 0
      %p256 = por %p254, %p255
      %p257 = scmp.ne.s32.totalorder %s245, %s246
      %p258 = scmp.eq.s32.totalorder %s42, 1
      %p259 = por %p257, %p258
      %p261 = scmp.ne.s32.totalorder %s246, %s260
      %p262 = scmp.eq.s32.totalorder %s42, 0
      %p263 = por %p261, %p262
      %s265 = sadd.s32 %s264, 1
      %p268 = scmp.eq.s32.totalorder %s36, 1
      %p269 = scmp.ne.s32.totalorder %s264, %s266
      %p270 = scmp.eq.s32.totalorder %s36, 0
      %p271 = por %p269, %p270
      %p272 = scmp.ne.s32.totalorder %s264, %s266
      %p273 = scmp.eq.s32.totalorder %s41, 1
      %p274 = por %p272, %p273
      %p275 = scmp.ne.s32.totalorder %s266, %s267
      %p276 = scmp.eq.s32.totalorder %s41, 0
      %p277 = por %p275, %p276
      %p278 = scmp.ne.s32.totalorder %s266, %s267
      %p279 = scmp.eq.s32.totalorder %s42, 1
      %p280 = por %p278, %p279
      %p282 = scmp.ne.s32.totalorder %s267, %s281
      %p283 = scmp.eq.s32.totalorder %s42, 0
      %p284 = por %p282, %p283
      %s286 = sadd.s32 %s285, 1
      %p289 = scmp.eq.s32.totalorder %s36, 1
      %p290 = scmp.ne.s32.totalorder %s285, %s287
      %p291 = scmp.eq.s32.totalorder %s36, 0
      %p292 = por %p290, %p291
      %p293 = scmp.ne.s32.totalorder %s285, %s287
      %p294 = scmp.eq.s32.totalorder %s41, 1
      %p295 = por %p293, %p294
      %p296 = scmp.ne.s32.totalorder %s287, %s288
      %p297 = scmp.eq.s32.totalorder %s41, 0
      %p298 = por %p296, %p297
      %p299 = scmp.ne.s32.totalorder %s287, %s288
      %p300 = scmp.eq.s32.totalorder %s42, 1
      %p301 = por %p299, %p300
      %p303 = scmp.ne.s32.totalorder %s288, %s302
      %p304 = scmp.eq.s32.totalorder %s42, 0
      %p305 = por %p303, %p304
      %s307 = sadd.s32 %s306, 1
      %p310 = scmp.eq.s32.totalorder %s36, 1
      %p311 = scmp.ne.s32.totalorder %s306, %s308
      %p312 = scmp.eq.s32.totalorder %s36, 0
      %p313 = por %p311, %p312
      %p314 = scmp.ne.s32.totalorder %s306, %s308
      %p315 = scmp.eq.s32.totalorder %s41, 1
      %p316 = por %p314, %p315
      %p317 = scmp.ne.s32.totalorder %s308, %s309
      %p318 = scmp.eq.s32.totalorder %s41, 0
      %p319 = por %p317, %p318
      %p320 = scmp.ne.s32.totalorder %s308, %s309
      %p321 = scmp.eq.s32.totalorder %s42, 1
      %p322 = por %p320, %p321
      %p324 = scmp.ne.s32.totalorder %s309, %s323
      %p325 = scmp.eq.s32.totalorder %s42, 0
      %p326 = por %p324, %p325
      %s328 = sadd.s32 %s327, 1
      %p331 = scmp.eq.s32.totalorder %s36, 1
      %p332 = scmp.ne.s32.totalorder %s327, %s329
      %p333 = scmp.eq.s32.totalorder %s36, 0
      %p334 = por %p332, %p333
      %p335 = scmp.ne.s32.totalorder %s327, %s329
      %p336 = scmp.eq.s32.totalorder %s41, 1
      %p337 = por %p335, %p336
      %p338 = scmp.ne.s32.totalorder %s329, %s330
      %p339 = scmp.eq.s32.totalorder %s41, 0
      %p340 = por %p338, %p339
      %p341 = scmp.ne.s32.totalorder %s329, %s330
      %p342 = scmp.eq.s32.totalorder %s42, 1
      %p343 = por %p341, %p342
      %p345 = scmp.ne.s32.totalorder %s330, %s344
      %p346 = scmp.eq.s32.totalorder %s42, 0
      %p347 = por %p345, %p346
      %s348 = ssub.s32 %s36, %s43
      %p349 = scmp.eq.s32.totalorder %s348, 0
      %s351 = sadd.s32 %s350, 1
      %s352 = scalar_select %p349, %s350, %s351
      %p355 = pneg %p349
      %p356 = scmp.eq.s32.totalorder %s36, 1
      %p357 = por %p355, %p356
      %p358 = scmp.ne.s32.totalorder %s350, %s353
      %p359 = scmp.eq.s32.totalorder %s36, 0
      %p360 = por %p358, %p359
      %p361 = scmp.ne.s32.totalorder %s350, %s353
      %p362 = scmp.eq.s32.totalorder %s41, 1
      %p363 = por %p361, %p362
      %p364 = scmp.ne.s32.totalorder %s353, %s354
      %p365 = scmp.eq.s32.totalorder %s41, 0
      %p366 = por %p364, %p365
      %p367 = scmp.ne.s32.totalorder %s353, %s354
      %p368 = scmp.eq.s32.totalorder %s42, 1
      %p369 = por %p367, %p368
      %p371 = scmp.ne.s32.totalorder %s354, %s370
      %p372 = scmp.eq.s32.totalorder %s42, 0
      %p373 = por %p371, %p372
      %s374 = ssub.s32 %s36, %s43
      %p375 = scmp.eq.s32.totalorder %s374, 0
      %s377 = sadd.s32 %s376, 1
      %s378 = scalar_select %p375, %s376, %s377
      %p381 = pneg %p375
      %p382 = scmp.eq.s32.totalorder %s36, 1
      %p383 = por %p381, %p382
      %p384 = scmp.ne.s32.totalorder %s376, %s379
      %p385 = scmp.eq.s32.totalorder %s36, 0
      %p386 = por %p384, %p385
      %p387 = scmp.ne.s32.totalorder %s376, %s379
      %p388 = scmp.eq.s32.totalorder %s41, 1
      %p389 = por %p387, %p388
      %p390 = scmp.ne.s32.totalorder %s379, %s380
      %p391 = scmp.eq.s32.totalorder %s41, 0
      %p392 = por %p390, %p391
      %p393 = scmp.ne.s32.totalorder %s379, %s380
      %p394 = scmp.eq.s32.totalorder %s42, 1
      %p395 = por %p393, %p394
      %p397 = scmp.ne.s32.totalorder %s380, %s396
      %p398 = scmp.eq.s32.totalorder %s42, 0
      %p399 = por %p397, %p398
      %p400 = scmp.le.s32.totalorder 1, %s36
      %p401 = scmp.lt.s32.totalorder %s36, 3
      %p402 = pnand %p400, %p401
      %p403 = pneg %p402
      // Predicated region
      $region9: #{tpu_custom_call.1} parent=5 // pred_check
        _
      $region10: #{tpu_custom_call.1} parent=5 // pred_check_branch
        %405 = sbr.rel (%p402) target = $region12
      $region11: #{tpu_custom_call.1} parent=5 // pred_region
        %s406 = ssub.s32 %s36, 1
        // Predicated region
        $region13: #{tpu_custom_call.1} parent=11 // pred_check
          %p407 = pneg %p109
        $region14: #{tpu_custom_call.1} parent=11 // pred_check_branch
          %409 = sbr.rel (%p407) target = $region16
        $region15: #{tpu_custom_call.1} parent=11 // pred_region
          _
        $region16: #{tpu_custom_call.1} parent=11 // pred_fallthru
          _
        // Predicated region
        $region17: #{tpu_custom_call.1} parent=11 // pred_check
          %p410 = pneg %p130
        $region18: #{tpu_custom_call.1} parent=11 // pred_check_branch
          %412 = sbr.rel (%p410) target = $region20
        $region19: #{tpu_custom_call.1} parent=11 // pred_region
          _
        $region20: #{tpu_custom_call.1} parent=11 // pred_fallthru
          _
        // Predicated region
        $region21: #{tpu_custom_call.1} parent=11 // pred_check
          %p413 = pneg %p151
        $region22: #{tpu_custom_call.1} parent=11 // pred_check_branch
          %415 = sbr.rel (%p413) target = $region24
        $region23: #{tpu_custom_call.1} parent=11 // pred_region
          %s417 = ssub.s32 1024, 1024
          %418 = vsyncadd [#allocation6], %s417
          %s419 = sshll.u32 [#allocation7], 4
          %s420 = int_to_ptr.vmem [resolvable:$true] %s419
          %425 = dma.hbm_to_vmem [thread:$0]  %s4, 1024, %s420, [#allocation6], 64, 64, 4
        $region24: #{tpu_custom_call.1} parent=11 // pred_fallthru
          _
        // Predicated region
        $region25: #{tpu_custom_call.1} parent=11 // pred_check
          %p426 = pneg %p172
        $region26: #{tpu_custom_call.1} parent=11 // pred_check_branch
          %428 = sbr.rel (%p426) target = $region28
        $region27: #{tpu_custom_call.1} parent=11 // pred_region
          _
        $region28: #{tpu_custom_call.1} parent=11 // pred_fallthru
          _
        // Predicated region
        $region29: #{tpu_custom_call.1} parent=11 // pred_check
          %p429 = pneg %p193
        $region30: #{tpu_custom_call.1} parent=11 // pred_check_branch
          %431 = sbr.rel (%p429) target = $region32
        $region31: #{tpu_custom_call.1} parent=11 // pred_region
          %s433 = ssub.s32 1024, 1024
          %434 = vsyncadd [#allocation9], %s433
          %s435 = sshll.u32 [#allocation8], 4
          %s436 = int_to_ptr.vmem [resolvable:$true] %s435
          %441 = dma.hbm_to_vmem [thread:$0]  %s6, 1024, %s436, [#allocation9], 64, 64, 4
        $region32: #{tpu_custom_call.1} parent=11 // pred_fallthru
          _
        // Predicated region
        $region33: #{tpu_custom_call.1} parent=11 // pred_check
          %p442 = pneg %p214
        $region34: #{tpu_custom_call.1} parent=11 // pred_check_branch
          %444 = sbr.rel (%p442) target = $region36
        $region35: #{tpu_custom_call.1} parent=11 // pred_region
          _
        $region36: #{tpu_custom_call.1} parent=11 // pred_fallthru
          _
        // Predicated region
        $region37: #{tpu_custom_call.1} parent=11 // pred_check
          %p445 = pneg %p235
        $region38: #{tpu_custom_call.1} parent=11 // pred_check_branch
          %447 = sbr.rel (%p445) target = $region40
        $region39: #{tpu_custom_call.1} parent=11 // pred_region
          _
        $region40: #{tpu_custom_call.1} parent=11 // pred_fallthru
          _
        // Predicated region
        $region41: #{tpu_custom_call.1} parent=11 // pred_check
          %p448 = pneg %p256
        $region42: #{tpu_custom_call.1} parent=11 // pred_check_branch
          %450 = sbr.rel (%p448) target = $region44
        $region43: #{tpu_custom_call.1} parent=11 // pred_region
          _
        $region44: #{tpu_custom_call.1} parent=11 // pred_fallthru
          _
        // Predicated region
        $region45: #{tpu_custom_call.1} parent=11 // pred_check
          %p451 = pneg %p277
        $region46: #{tpu_custom_call.1} parent=11 // pred_check_branch
          %453 = sbr.rel (%p451) target = $region48
        $region47: #{tpu_custom_call.1} parent=11 // pred_region
          %s455 = ssub.s32 8192, 8192
          %456 = vsyncadd [#allocation9], %s455
          %s457 = sshll.u32 [#allocation10], 4
          %s458 = int_to_ptr.vmem [resolvable:$true] %s457
          %463 = dma.hbm_to_vmem [thread:$0]  %s10, 8192, %s458, [#allocation9], 512, 512, 32
        $region48: #{tpu_custom_call.1} parent=11 // pred_fallthru
          _
        // Predicated region
        $region49: #{tpu_custom_call.1} parent=11 // pred_check
          %p464 = pneg %p298
        $region50: #{tpu_custom_call.1} parent=11 // pred_check_branch
          %466 = sbr.rel (%p464) target = $region52
        $region51: #{tpu_custom_call.1} parent=11 // pred_region
          _
        $region52: #{tpu_custom_call.1} parent=11 // pred_fallthru
          _
        // Predicated region
        $region53: #{tpu_custom_call.1} parent=11 // pred_check
          %p467 = pneg %p319
        $region54: #{tpu_custom_call.1} parent=11 // pred_check_branch
          %469 = sbr.rel (%p467) target = $region56
        $region55: #{tpu_custom_call.1} parent=11 // pred_region
          %s471 = ssub.s32 8192, 8192
          %472 = vsyncadd [#allocation12], %s471
          %s473 = sshll.u32 [#allocation11], 4
          %s474 = int_to_ptr.vmem [resolvable:$true] %s473
          %479 = dma.hbm_to_vmem [thread:$0]  %s12, 8192, %s474, [#allocation12], 64, 64, 4
        $region56: #{tpu_custom_call.1} parent=11 // pred_fallthru
          _
        // Predicated region
        $region57: #{tpu_custom_call.1} parent=11 // pred_check
          %p480 = pneg %p340
        $region58: #{tpu_custom_call.1} parent=11 // pred_check_branch
          %482 = sbr.rel (%p480) target = $region60
        $region59: #{tpu_custom_call.1} parent=11 // pred_region
          _
        $region60: #{tpu_custom_call.1} parent=11 // pred_fallthru
          _
      $region12: #{tpu_custom_call.1} parent=5 // pred_fallthru
        _
      %p483 = scmp.lt.s32.totalorder %s36, 2
      // Predicated region
      $region61: #{tpu_custom_call.1} parent=5 // pred_check
        %p484 = pneg %p483
      $region62: #{tpu_custom_call.1} parent=5 // pred_check_branch
        %486 = sbr.rel (%p484) target = $region64
      $region63: #{tpu_custom_call.1} parent=5 // pred_region
        // Predicated region
        $region65: #{tpu_custom_call.1} parent=63 // pred_check
          %p487 = pneg %p56
        $region66: #{tpu_custom_call.1} parent=63 // pred_check_branch
          %489 = sbr.rel (%p487) target = $region68
        $region67: #{tpu_custom_call.1} parent=63 // pred_region
          %s490 = sand.u32 %s46, 1
          %s491 = scalar_lea.sflag [#allocation3], %s490
          %s492 = sand.u32 %s46, 1
          %s493 = smul.addr %s492, 8
          %s494 = scalar_lea.vmem [#allocation2], %s493
          %s496 = ssub.s32 128, 128
          %497 = vsyncadd %s491, %s496
          %s498 = smul.addr %s36, 128
          %s499 = scalar_lea.hbm %s0, %s498
          %s501 = sshll.u32 %s494, 4
          %s502 = int_to_ptr.vmem [resolvable:$true] %s501
          %504 = dma.hbm_to_vmem [thread:$0]  %s499, 128, %s502, %s491
        $region68: #{tpu_custom_call.1} parent=63 // pred_fallthru
          _
        // Predicated region
        $region69: #{tpu_custom_call.1} parent=63 // pred_check
          %p505 = pneg %p82
        $region70: #{tpu_custom_call.1} parent=63 // pred_check_branch
          %507 = sbr.rel (%p505) target = $region72
        $region71: #{tpu_custom_call.1} parent=63 // pred_region
          %s508 = sand.u32 %s36, 1
          %s509 = scalar_lea.sflag [#allocation6], %s508
          %s510 = sand.u32 %s72, 1
          %s511 = scalar_lea.vmem [#allocation5], %s510
          %s513 = ssub.s32 16, 16
          %514 = vsyncadd %s509, %s513
          %s515 = smul.addr %s36, 16
          %s516 = scalar_lea.hbm %s1, %s515
          %s518 = sshll.u32 %s511, 4
          %s519 = int_to_ptr.vmem [resolvable:$true] %s518
          %521 = dma.hbm_to_vmem [thread:$0]  %s516, 16, %s519, %s509
        $region72: #{tpu_custom_call.1} parent=63 // pred_fallthru
          _
      $region64: #{tpu_custom_call.1} parent=5 // pred_fallthru
        _
      %p522 = scmp.le.s32.totalorder 1, %s36
      %p523 = scmp.lt.s32.totalorder %s36, 3
      %p524 = pnand %p522, %p523
      %p525 = pneg %p524
      // Predicated region
      $region73: #{tpu_custom_call.1} parent=5 // pred_check
        _
      $region74: #{tpu_custom_call.1} parent=5 // pred_check_branch
        %527 = sbr.rel (%p524) target = $region76
      $region75: #{tpu_custom_call.1} parent=5 // pred_region
        %s528 = ssub.s32 %s36, 1
        %s529 = sand.u32 %s49, 1
        %s530 = scalar_lea.sflag [#allocation3], %s529
        %s531 = sand.u32 %s49, 1
        %s532 = smul.addr %s531, 8
        %s533 = scalar_lea.vmem [#allocation2], %s532
        // Predicated region
        $region77: #{tpu_custom_call.1} parent=75 // pred_check
          %p534 = pneg %p62
        $region78: #{tpu_custom_call.1} parent=75 // pred_check_branch
          %536 = sbr.rel (%p534) target = $region80
        $region79: #{tpu_custom_call.1} parent=75 // pred_region
          %537 = dma.done %s530, 128
        $region80: #{tpu_custom_call.1} parent=75 // pred_fallthru
          _
        %s538 = sand.u32 %s41, 1
        %s539 = scalar_lea.sflag [#allocation6], %s538
        %s540 = sand.u32 %s75, 1
        %s541 = scalar_lea.vmem [#allocation5], %s540
        // Predicated region
        $region81: #{tpu_custom_call.1} parent=75 // pred_check
          %p542 = pneg %p88
        $region82: #{tpu_custom_call.1} parent=75 // pred_check_branch
          %544 = sbr.rel (%p542) target = $region84
        $region83: #{tpu_custom_call.1} parent=75 // pred_region
          %545 = dma.done %s539, 16
        $region84: #{tpu_custom_call.1} parent=75 // pred_fallthru
          _
        // Predicated region
        $region85: #{tpu_custom_call.1} parent=75 // pred_check
          %p546 = pneg %p151
        $region86: #{tpu_custom_call.1} parent=75 // pred_check_branch
          %548 = sbr.rel (%p546) target = $region88
        $region87: #{tpu_custom_call.1} parent=75 // pred_region
          %549 = dma.done [#allocation6], 1024
        $region88: #{tpu_custom_call.1} parent=75 // pred_fallthru
          _
        // Predicated region
        $region89: #{tpu_custom_call.1} parent=75 // pred_check
          %p550 = pneg %p193
        $region90: #{tpu_custom_call.1} parent=75 // pred_check_branch
          %552 = sbr.rel (%p550) target = $region92
        $region91: #{tpu_custom_call.1} parent=75 // pred_region
          %553 = dma.done [#allocation9], 1024
        $region92: #{tpu_custom_call.1} parent=75 // pred_fallthru
          _
        // Predicated region
        $region93: #{tpu_custom_call.1} parent=75 // pred_check
          %p554 = pneg %p277
        $region94: #{tpu_custom_call.1} parent=75 // pred_check_branch
          %556 = sbr.rel (%p554) target = $region96
        $region95: #{tpu_custom_call.1} parent=75 // pred_region
          %557 = dma.done [#allocation9], 8192
        $region96: #{tpu_custom_call.1} parent=75 // pred_fallthru
          _
        // Predicated region
        $region97: #{tpu_custom_call.1} parent=75 // pred_check
          %p558 = pneg %p319
        $region98: #{tpu_custom_call.1} parent=75 // pred_check_branch
          %560 = sbr.rel (%p558) target = $region100
        $region99: #{tpu_custom_call.1} parent=75 // pred_region
          %561 = dma.done [#allocation12], 8192
        $region100: #{tpu_custom_call.1} parent=75 // pred_fallthru
          _
        %s562 = sand.u32 %s49, 1
        %s563 = scalar_lea.sflag [#allocation3], %s562
        %s564 = sand.u32 %s49, 1
        %s565 = smul.addr %s564, 8
        %s566 = scalar_lea.vmem [#allocation2], %s565
        %p567 = pneg %p62
        %p568 = pneg %p59
        %s569 = sand.u32 %s41, 1
        %s570 = scalar_lea.sflag [#allocation6], %s569
        %s571 = sand.u32 %s75, 1
        %s572 = scalar_lea.vmem [#allocation5], %s571
        %p573 = pneg %p88
        %p574 = pneg %p85
        %p575 = pneg %p109
        %p576 = pneg %p106
        %p577 = pneg %p130
        %p578 = pneg %p127
        %p579 = pneg %p151
        %p580 = pneg %p148
        %p581 = pneg %p172
        %p582 = pneg %p169
        %p583 = pneg %p193
        %p584 = pneg %p190
        %p585 = pneg %p214
        %p586 = pneg %p211
        %p587 = pneg %p235
        %p588 = pneg %p232
        %p589 = pneg %p256
        %p590 = pneg %p253
        %p591 = pneg %p277
        %p592 = pneg %p274
        %p593 = pneg %p298
        %p594 = pneg %p295
        %p595 = pneg %p319
        %p596 = pneg %p316
        %p597 = pneg %p340
        %p598 = pneg %p337
        %p599 = pneg %p366
        %p600 = pneg %p363
        %s601 = sand.u32 %s353, 1
        %s602 = scalar_lea.sflag [#allocation4], %s601
        %s603 = sand.u32 %s353, 1
        %s604 = smul.addr %s603, 8
        %s605 = scalar_lea.vmem [#allocation13], %s604
        %p606 = pneg %p392
        %p607 = pneg %p389
        %s608 = sand.u32 %s379, 1
        %s609 = scalar_lea.sflag [#allocation15], %s608
        %s610 = sand.u32 %s379, 1
        %s611 = smul.addr %s610, 8
        %s612 = scalar_lea.vmem [#allocation14], %s611
        %v614 = vld [vmem:[%s533] sm:$0xff]
        %v615 = vld [vmem:[%s541] sm:$0x1]
        %v616 = vsub.f32 %v615, 1.0
        %v617 = vmul.f32 %v616, 1e+09
        %618 = vadd.xlane.f32.xlu0 %v614
        %v619 = vpop.xlane.xlu0 %618
        %v620 = vrcp.pop 128.0
        %v621 = vmul.f32 %v619, %v620
        %v622 = vsub.f32 %v614, %v621
        %v623 = vmul.f32 %v622, %v622
        %624 = vadd.xlane.f32.xlu0 %v623
        %v625 = vpop.xlane.xlu0 %624
        %v626 = vmul.f32 %v625, %v620
        %v627 = vadd.f32 %v626, 1e-05
        %v628 = vrsqrt.pop %v627
        %v629 = vmul.f32 %v622, %v628
        %v630 = vld [vmem:[%s2] sm:$0x1]
        %v632 = vlaneseq
        %v633 = vshrl.u32 %v632, 7
        %v634 = vsub.s32 0, %v633
        %v635 = vrot.slane %v630, %v634
        %v637 = vmul.f32 %v629, %v635
        %v638 = vld [vmem:[%s3] sm:$0x1]
        %v640 = vlaneseq
        %v641 = vshrl.u32 %v640, 7
        %v642 = vsub.s32 0, %v641
        %v643 = vrot.slane %v638, %v642
        %v645 = vadd.f32 %v637, %v643
        %v646 = vpack.c.bf16 %v645, %v645
        %v647 = vld [vmem:[#allocation7] sm:$0xf]
        %v648 = vld [vmem:[#allocation7 + $0x4] sm:$0xf]
        %v649 = vld [vmem:[#allocation7 + $0x8] sm:$0xf]
        %v650 = vld [vmem:[#allocation7 + $0xc] sm:$0xf]
        %v651 = vld [vmem:[#allocation7 + $0x10] sm:$0xf]
        %v652 = vld [vmem:[#allocation7 + $0x14] sm:$0xf]
        %v653 = vld [vmem:[#allocation7 + $0x18] sm:$0xf]
        %v654 = vld [vmem:[#allocation7 + $0x1c] sm:$0xf]
        %v655 = vld [vmem:[#allocation7 + $0x20] sm:$0xf]
        %v656 = vld [vmem:[#allocation7 + $0x24] sm:$0xf]
        %v657 = vld [vmem:[#allocation7 + $0x28] sm:$0xf]
        %v658 = vld [vmem:[#allocation7 + $0x2c] sm:$0xf]
        %v659 = vld [vmem:[#allocation7 + $0x30] sm:$0xf]
        %v660 = vld [vmem:[#allocation7 + $0x34] sm:$0xf]
        %v661 = vld [vmem:[#allocation7 + $0x38] sm:$0xf]
        %v662 = vld [vmem:[#allocation7 + $0x3c] sm:$0xf]
        %v663 = vld [vmem:[%s5] sm:$0x1]
        %v665 = vlaneseq
        %v666 = vshrl.u32 %v665, 7
        %v667 = vsub.s32 0, %v666
        %v668 = vrot.slane %v663, %v667
        %v686 = vunpack.c.l.b16 %v647
        %v687 = vunpack.c.l.b16 %v648
        %v688 = vunpack.c.l.b16 %v649
        %v689 = vunpack.c.l.b16 %v650
        %v690 = vunpack.c.l.b16 %v651
        %v691 = vunpack.c.l.b16 %v652
        %v692 = vunpack.c.l.b16 %v653
        %v693 = vunpack.c.l.b16 %v654
        %v694 = vunpack.c.l.b16 %v655
        %v695 = vunpack.c.l.b16 %v656
        %v696 = vunpack.c.l.b16 %v657
        %v697 = vunpack.c.l.b16 %v658
        %v698 = vunpack.c.l.b16 %v659
        %v699 = vunpack.c.l.b16 %v660
        %v700 = vunpack.c.l.b16 %v661
        %v701 = vunpack.c.l.b16 %v662
        %v702 = vpack.c.b16 %v687, %v686
        %v703 = vpack.c.b16 %v689, %v688
        %v704 = vpack.c.b16 %v691, %v690
        %v705 = vpack.c.b16 %v693, %v692
        %v706 = vpack.c.b16 %v695, %v694
        %v707 = vpack.c.b16 %v697, %v696
        %v708 = vpack.c.b16 %v699, %v698
        %v709 = vpack.c.b16 %v701, %v700
        %718 = vmatprep.subr.bf16.mxu0 0
        %719 = vmatpush1.bf16.msra.mxu0 %v709
        %720 = vmatprep.subr.bf16.mxu0 0
        %721 = vmatpush1.bf16.msra.mxu0 %v708
        %722 = vmatprep.subr.bf16.mxu0 0
        %723 = vmatpush1.bf16.msra.mxu0 %v707
        %724 = vmatprep.subr.bf16.mxu0 0
        %725 = vmatpush1.bf16.msra.mxu0 %v706
        %726 = vmatprep.subr.bf16.mxu0 0
        %727 = vmatpush1.bf16.msra.mxu0 %v705
        %728 = vmatprep.subr.bf16.mxu0 0
        %729 = vmatpush1.bf16.msra.mxu0 %v704
        %730 = vmatprep.subr.bf16.mxu0 0
        %731 = vmatpush1.bf16.msra.mxu0 %v703
        %732 = vmatprep.subr.bf16.mxu0 0
        %733 = vmatpush1.bf16.msra.mxu0 %v702
        %734 = vmatprep.subr.bf16.mxu0 0
        %735 = vmatpush2.bf16.msra.mxu0 0
        %736 = vmatprep.subr.bf16.mxu0 0
        %737 = vmatpush2.bf16.msra.mxu0 0
        %738 = vmatprep.subr.bf16.mxu0 0
        %739 = vmatpush2.bf16.msra.mxu0 0
        %740 = vmatprep.subr.bf16.mxu0 0
        %741 = vmatpush2.bf16.msra.mxu0 0
        %742 = vmatprep.subr.bf16.mxu0 0
        %743 = vmatpush2.bf16.msra.mxu0 0
        %744 = vmatprep.subr.bf16.mxu0 0
        %745 = vmatpush2.bf16.msra.mxu0 0
        %746 = vmatprep.subr.bf16.mxu0 0
        %747 = vmatpush2.bf16.msra.mxu0 0
        %748 = vmatprep.subr.bf16.mxu0 0
        %749 = vmatpush2.bf16.msra.mxu0 0
        %750 = vmatprep.mubr.bf16.mxu0 0
        %751 = vmatmul.mubr.bf16.gmra.mxu0 %v646
        %v752 = vpop.f32.mrf.mxu0
        %v753 = vadd.f32 %v668, %v752
        %v754 = vpop.f32.mrf.mxu0
        %v755 = vpop.f32.mrf.mxu0
        %v756 = vpop.f32.mrf.mxu0
        %757 = vdwg.mxu0
        %v758 = vpack.c.bf16 %v753, %v753
        %759 = vmatprep.subr.bf16.mxu0 0
        %760 = vmatpush1.bf16.xpose.msra.mxu0 0
        %761 = vmatprep.subr.bf16.mxu0 0
        %762 = vmatpush1.bf16.xpose.msra.mxu0 0
        %763 = vmatprep.subr.bf16.mxu0 0
        %764 = vmatpush1.bf16.xpose.msra.mxu0 0
        %765 = vmatprep.subr.bf16.mxu0 0
        %766 = vmatpush1.bf16.xpose.msra.mxu0 0
        %767 = vmatprep.subr.bf16.mxu0 0
        %768 = vmatpush1.bf16.xpose.msra.mxu0 0
        %769 = vmatprep.subr.bf16.mxu0 0
        %770 = vmatpush1.bf16.xpose.msra.mxu0 0
        %771 = vmatprep.subr.bf16.mxu0 0
        %772 = vmatpush1.bf16.xpose.msra.mxu0 0
        %773 = vmatprep.subr.bf16.mxu0 0
        %774 = vmatpush1.bf16.xpose.msra.mxu0 %v758
        %775 = vmatprep.subr.bf16.mxu0 0
        %776 = vmatpush2.bf16.xpose.msra.mxu0 0
        %777 = vmatprep.subr.bf16.mxu0 0
        %778 = vmatpush2.bf16.xpose.msra.mxu0 0
        %779 = vmatprep.subr.bf16.mxu0 0
        %780 = vmatpush2.bf16.xpose.msra.mxu0 0
        %781 = vmatprep.subr.bf16.mxu0 0
        %782 = vmatpush2.bf16.xpose.msra.mxu0 0
        %783 = vmatprep.subr.bf16.mxu0 0
        %784 = vmatpush2.bf16.xpose.msra.mxu0 0
        %785 = vmatprep.subr.bf16.mxu0 0
        %786 = vmatpush2.bf16.xpose.msra.mxu0 0
        %787 = vmatprep.subr.bf16.mxu0 0
        %788 = vmatpush2.bf16.xpose.msra.mxu0 0
        %789 = vmatprep.subr.bf16.mxu0 0
        %790 = vmatpush2.bf16.xpose.msra.mxu0 0
        %791 = vmatprep.mubr.bf16.mxu0 0
        %792 = vmatmul.mubr.bf16.gmra.mxu0 %v758
        %v793 = vpop.f32.mrf.mxu0
        %v794 = vadd.f32 0.0, %v793
        %v795 = vpop.f32.mrf.mxu0
        %v796 = vpop.f32.mrf.mxu0
        %v797 = vpop.f32.mrf.mxu0
        %798 = vdwg.mxu0
        %v799 = vmul.f32 %v794, 0.088388346
        %v801 = vlaneseq
        %v802 = vshrl.u32 %v801, 7
        %v803 = vsub.s32 0, %v802
        %v804 = vrot.slane %v617, %v803
        %v806 = vadd.f32 %v799, %v804
        %vm807 = vcmask 64512
        %v808 = vsel %vm807, %v806, -inf
        %809 = vmax.xlane.f32.xlu0 %v808
        %v810 = vpop.xlane.xlu0 %809
        %v811 = vsub.f32 %v806, %v810
        %v812 = vmul.f32 %v811, 1.442695
        %v813 = vpow.pop %v812
        %v814 = vsel %vm807, %v813, 0.0
        %815 = vadd.xlane.f32.xlu0 %v814
        %v816 = vpop.xlane.xlu0 %815
        %v817 = vrcp.pop %v816
        %v818 = vmul.f32 %v813, %v817
        %v819 = vpack.c.bf16 %v818, %v818
        %v821 = vsel %vm807, %v819, 0
        %vm823 = vcmask 1043456
        %v825 = vsel %vm823, %v758, 0
        %827 = vmatprep.subr.bf16.mxu0 0
        %828 = vmatpush1.bf16.msra.mxu0 0
        %829 = vmatprep.subr.bf16.mxu0 0
        %830 = vmatpush1.bf16.msra.mxu0 0
        %831 = vmatprep.subr.bf16.mxu0 0
        %832 = vmatpush1.bf16.msra.mxu0 0
        %833 = vmatprep.subr.bf16.mxu0 0
        %834 = vmatpush1.bf16.msra.mxu0 0
        %835 = vmatprep.subr.bf16.mxu0 0
        %836 = vmatpush1.bf16.msra.mxu0 0
        %837 = vmatprep.subr.bf16.mxu0 0
        %838 = vmatpush1.bf16.msra.mxu0 0
        %839 = vmatprep.subr.bf16.mxu0 0
        %840 = vmatpush1.bf16.msra.mxu0 0
        %841 = vmatprep.subr.bf16.mxu0 0
        %842 = vmatpush1.bf16.msra.mxu0 %v825
        %843 = vmatprep.subr.bf16.mxu0 0
        %844 = vmatpush2.bf16.msra.mxu0 0
        %845 = vmatprep.subr.bf16.mxu0 0
        %846 = vmatpush2.bf16.msra.mxu0 0
        %847 = vmatprep.subr.bf16.mxu0 0
        %848 = vmatpush2.bf16.msra.mxu0 0
        %849 = vmatprep.subr.bf16.mxu0 0
        %850 = vmatpush2.bf16.msra.mxu0 0
        %851 = vmatprep.subr.bf16.mxu0 0
        %852 = vmatpush2.bf16.msra.mxu0 0
        %853 = vmatprep.subr.bf16.mxu0 0
        %854 = vmatpush2.bf16.msra.mxu0 0
        %855 = vmatprep.subr.bf16.mxu0 0
        %856 = vmatpush2.bf16.msra.mxu0 0
        %857 = vmatprep.subr.bf16.mxu0 0
        %858 = vmatpush2.bf16.msra.mxu0 0
        %859 = vmatprep.mubr.bf16.mxu0 0
        %860 = vmatmul.mubr.bf16.gmra.mxu0 %v821
        %v861 = vpop.f32.mrf.mxu0
        %v862 = vadd.f32 0.0, %v861
        %v863 = vpop.f32.mrf.mxu0
        %v864 = vpop.f32.mrf.mxu0
        %v865 = vpop.f32.mrf.mxu0
        %866 = vdwg.mxu0
        %v867 = vpack.c.bf16 %v862, %v862
        %v868 = vld [vmem:[#allocation8] sm:$0xf]
        %v869 = vld [vmem:[#allocation8 + $0x4] sm:$0xf]
        %v870 = vld [vmem:[#allocation8 + $0x8] sm:$0xf]
        %v871 = vld [vmem:[#allocation8 + $0xc] sm:$0xf]
        %v872 = vld [vmem:[#allocation8 + $0x10] sm:$0xf]
        %v873 = vld [vmem:[#allocation8 + $0x14] sm:$0xf]
        %v874 = vld [vmem:[#allocation8 + $0x18] sm:$0xf]
        %v875 = vld [vmem:[#allocation8 + $0x1c] sm:$0xf]
        %v876 = vld [vmem:[#allocation8 + $0x20] sm:$0xf]
        %v877 = vld [vmem:[#allocation8 + $0x24] sm:$0xf]
        %v878 = vld [vmem:[#allocation8 + $0x28] sm:$0xf]
        %v879 = vld [vmem:[#allocation8 + $0x2c] sm:$0xf]
        %v880 = vld [vmem:[#allocation8 + $0x30] sm:$0xf]
        %v881 = vld [vmem:[#allocation8 + $0x34] sm:$0xf]
        %v882 = vld [vmem:[#allocation8 + $0x38] sm:$0xf]
        %v883 = vld [vmem:[#allocation8 + $0x3c] sm:$0xf]
        %v884 = vld [vmem:[%s7] sm:$0x1]
        %v886 = vlaneseq
        %v887 = vshrl.u32 %v886, 7
        %v888 = vsub.s32 0, %v887
        %v889 = vrot.slane %v884, %v888
        %v907 = vunpack.c.l.b16 %v868
        %v908 = vunpack.c.l.b16 %v869
        %v909 = vunpack.c.l.b16 %v870
        %v910 = vunpack.c.l.b16 %v871
        %v911 = vunpack.c.l.b16 %v872
        %v912 = vunpack.c.l.b16 %v873
        %v913 = vunpack.c.l.b16 %v874
        %v914 = vunpack.c.l.b16 %v875
        %v915 = vunpack.c.l.b16 %v876
        %v916 = vunpack.c.l.b16 %v877
        %v917 = vunpack.c.l.b16 %v878
        %v918 = vunpack.c.l.b16 %v879
        %v919 = vunpack.c.l.b16 %v880
        %v920 = vunpack.c.l.b16 %v881
        %v921 = vunpack.c.l.b16 %v882
        %v922 = vunpack.c.l.b16 %v883
        %v923 = vpack.c.b16 %v908, %v907
        %v924 = vpack.c.b16 %v910, %v909
        %v925 = vpack.c.b16 %v912, %v911
        %v926 = vpack.c.b16 %v914, %v913
        %v927 = vpack.c.b16 %v916, %v915
        %v928 = vpack.c.b16 %v918, %v917
        %v929 = vpack.c.b16 %v920, %v919
        %v930 = vpack.c.b16 %v922, %v921
        %939 = vmatprep.subr.bf16.mxu0 0
        %940 = vmatpush1.bf16.msra.mxu0 %v930
        %941 = vmatprep.subr.bf16.mxu0 0
        %942 = vmatpush1.bf16.msra.mxu0 %v929
        %943 = vmatprep.subr.bf16.mxu0 0
        %944 = vmatpush1.bf16.msra.mxu0 %v928
        %945 = vmatprep.subr.bf16.mxu0 0
        %946 = vmatpush1.bf16.msra.mxu0 %v927
        %947 = vmatprep.subr.bf16.mxu0 0
        %948 = vmatpush1.bf16.msra.mxu0 %v926
        %949 = vmatprep.subr.bf16.mxu0 0
        %950 = vmatpush1.bf16.msra.mxu0 %v925
        %951 = vmatprep.subr.bf16.mxu0 0
        %952 = vmatpush1.bf16.msra.mxu0 %v924
        %953 = vmatprep.subr.bf16.mxu0 0
        %954 = vmatpush1.bf16.msra.mxu0 %v923
        %955 = vmatprep.subr.bf16.mxu0 0
        %956 = vmatpush2.bf16.msra.mxu0 0
        %957 = vmatprep.subr.bf16.mxu0 0
        %958 = vmatpush2.bf16.msra.mxu0 0
        %959 = vmatprep.subr.bf16.mxu0 0
        %960 = vmatpush2.bf16.msra.mxu0 0
        %961 = vmatprep.subr.bf16.mxu0 0
        %962 = vmatpush2.bf16.msra.mxu0 0
        %963 = vmatprep.subr.bf16.mxu0 0
        %964 = vmatpush2.bf16.msra.mxu0 0
        %965 = vmatprep.subr.bf16.mxu0 0
        %966 = vmatpush2.bf16.msra.mxu0 0
        %967 = vmatprep.subr.bf16.mxu0 0
        %968 = vmatpush2.bf16.msra.mxu0 0
        %969 = vmatprep.subr.bf16.mxu0 0
        %970 = vmatpush2.bf16.msra.mxu0 0
        %971 = vmatprep.mubr.bf16.mxu0 0
        %972 = vmatmul.mubr.bf16.gmra.mxu0 %v867
        %v973 = vpop.f32.mrf.mxu0
        %v974 = vadd.f32 %v889, %v973
        %v975 = vpop.f32.mrf.mxu0
        %v976 = vpop.f32.mrf.mxu0
        %v977 = vpop.f32.mrf.mxu0
        %978 = vdwg.mxu0
        %v979 = vadd.f32 %v614, %v974
        %980 = vadd.xlane.f32.xlu0 %v979
        %v981 = vpop.xlane.xlu0 %980
        %v982 = vmul.f32 %v981, %v620
        %v983 = vsub.f32 %v979, %v982
        %v984 = vmul.f32 %v983, %v983
        %985 = vadd.xlane.f32.xlu0 %v984
        %v986 = vpop.xlane.xlu0 %985
        %v987 = vmul.f32 %v986, %v620
        %v988 = vadd.f32 %v987, 1e-05
        %v989 = vrsqrt.pop %v988
        %v990 = vmul.f32 %v983, %v989
        %v991 = vld [vmem:[%s8] sm:$0x1]
        %v993 = vlaneseq
        %v994 = vshrl.u32 %v993, 7
        %v995 = vsub.s32 0, %v994
        %v996 = vrot.slane %v991, %v995
        %v998 = vmul.f32 %v990, %v996
        %v999 = vld [vmem:[%s9] sm:$0x1]
        %v1001 = vlaneseq
        %v1002 = vshrl.u32 %v1001, 7
        %v1003 = vsub.s32 0, %v1002
        %v1004 = vrot.slane %v999, %v1003
        %v1006 = vadd.f32 %v998, %v1004
        %v1007 = vpack.c.bf16 %v1006, %v1006
        %1008 = vst.msk [vmem:[%s612] sm:$0xff] %vm807, %v818
        %v1009 = vld [vmem:[#allocation10] sm:$0xff]
        %v1010 = vld [vmem:[#allocation10 + $0x8] sm:$0xff]
        %v1011 = vld [vmem:[#allocation10 + $0x10] sm:$0xff]
        %v1012 = vld [vmem:[#allocation10 + $0x18] sm:$0xff]
        %v1013 = vld [vmem:[#allocation10 + $0x20] sm:$0xff]
        %v1014 = vld [vmem:[#allocation10 + $0x28] sm:$0xff]
        %v1015 = vld [vmem:[#allocation10 + $0x30] sm:$0xff]
        %v1016 = vld [vmem:[#allocation10 + $0x38] sm:$0xff]
        %v1017 = vld [vmem:[#allocation10 + $0x40] sm:$0xff]
        %v1018 = vld [vmem:[#allocation10 + $0x48] sm:$0xff]
        %v1019 = vld [vmem:[#allocation10 + $0x50] sm:$0xff]
        %v1020 = vld [vmem:[#allocation10 + $0x58] sm:$0xff]
        %v1021 = vld [vmem:[#allocation10 + $0x60] sm:$0xff]
        %v1022 = vld [vmem:[#allocation10 + $0x68] sm:$0xff]
        %v1023 = vld [vmem:[#allocation10 + $0x70] sm:$0xff]
        %v1024 = vld [vmem:[#allocation10 + $0x78] sm:$0xff]
        %v1025 = vld [vmem:[#allocation10 + $0x80] sm:$0xff]
        %v1026 = vld [vmem:[#allocation10 + $0x88] sm:$0xff]
        %v1027 = vld [vmem:[#allocation10 + $0x90] sm:$0xff]
        %v1028 = vld [vmem:[#allocation10 + $0x98] sm:$0xff]
        %v1029 = vld [vmem:[#allocation10 + $0xa0] sm:$0xff]
        %v1030 = vld [vmem:[#allocation10 + $0xa8] sm:$0xff]
        %v1031 = vld [vmem:[#allocation10 + $0xb0] sm:$0xff]
        %v1032 = vld [vmem:[#allocation10 + $0xb8] sm:$0xff]
        %v1033 = vld [vmem:[#allocation10 + $0xc0] sm:$0xff]
        %v1034 = vld [vmem:[#allocation10 + $0xc8] sm:$0xff]
        %v1035 = vld [vmem:[#allocation10 + $0xd0] sm:$0xff]
        %v1036 = vld [vmem:[#allocation10 + $0xd8] sm:$0xff]
        %v1037 = vld [vmem:[#allocation10 + $0xe0] sm:$0xff]
        %v1038 = vld [vmem:[#allocation10 + $0xe8] sm:$0xff]
        %v1039 = vld [vmem:[#allocation10 + $0xf0] sm:$0xff]
        %v1040 = vld [vmem:[#allocation10 + $0xf8] sm:$0xff]
        %v1041 = vld [vmem:[#allocation10 + $0x100] sm:$0xff]
        %v1042 = vld [vmem:[#allocation10 + $0x108] sm:$0xff]
        %v1043 = vld [vmem:[#allocation10 + $0x110] sm:$0xff]
        %v1044 = vld [vmem:[#allocation10 + $0x118] sm:$0xff]
        %v1045 = vld [vmem:[#allocation10 + $0x120] sm:$0xff]
        %v1046 = vld [vmem:[#allocation10 + $0x128] sm:$0xff]
        %v1047 = vld [vmem:[#allocation10 + $0x130] sm:$0xff]
        %v1048 = vld [vmem:[#allocation10 + $0x138] sm:$0xff]
        %v1049 = vld [vmem:[#allocation10 + $0x140] sm:$0xff]
        %v1050 = vld [vmem:[#allocation10 + $0x148] sm:$0xff]
        %v1051 = vld [vmem:[#allocation10 + $0x150] sm:$0xff]
        %v1052 = vld [vmem:[#allocation10 + $0x158] sm:$0xff]
        %v1053 = vld [vmem:[#allocation10 + $0x160] sm:$0xff]
        %v1054 = vld [vmem:[#allocation10 + $0x168] sm:$0xff]
        %v1055 = vld [vmem:[#allocation10 + $0x170] sm:$0xff]
        %v1056 = vld [vmem:[#allocation10 + $0x178] sm:$0xff]
        %v1057 = vld [vmem:[#allocation10 + $0x180] sm:$0xff]
        %v1058 = vld [vmem:[#allocation10 + $0x188] sm:$0xff]
        %v1059 = vld [vmem:[#allocation10 + $0x190] sm:$0xff]
        %v1060 = vld [vmem:[#allocation10 + $0x198] sm:$0xff]
        %v1061 = vld [vmem:[#allocation10 + $0x1a0] sm:$0xff]
        %v1062 = vld [vmem:[#allocation10 + $0x1a8] sm:$0xff]
        %v1063 = vld [vmem:[#allocation10 + $0x1b0] sm:$0xff]
        %v1064 = vld [vmem:[#allocation10 + $0x1b8] sm:$0xff]
        %v1065 = vld [vmem:[#allocation10 + $0x1c0] sm:$0xff]
        %v1066 = vld [vmem:[#allocation10 + $0x1c8] sm:$0xff]
        %v1067 = vld [vmem:[#allocation10 + $0x1d0] sm:$0xff]
        %v1068 = vld [vmem:[#allocation10 + $0x1d8] sm:$0xff]
        %v1069 = vld [vmem:[#allocation10 + $0x1e0] sm:$0xff]
        %v1070 = vld [vmem:[#allocation10 + $0x1e8] sm:$0xff]
        %v1071 = vld [vmem:[#allocation10 + $0x1f0] sm:$0xff]
        %v1072 = vld [vmem:[#allocation10 + $0x1f8] sm:$0xff]
        %v1073 = vld [vmem:[%s11] sm:$0xff]
        %v1075 = vlaneseq
        %v1076 = vshrl.u32 %v1075, 7
        %v1077 = vsub.s32 0, %v1076
        %v1078 = vrot.slane %v1073, %v1077
        %v1079 = vlaneseq
        %v1080 = vshrl.u32 %v1079, 7
        %v1081 = vsub.s32 1, %v1080
        %v1082 = vrot.slane %v1073, %v1081
        %v1083 = vlaneseq
        %v1084 = vshrl.u32 %v1083, 7
        %v1085 = vsub.s32 2, %v1084
        %v1086 = vrot.slane %v1073, %v1085
        %v1087 = vlaneseq
        %v1088 = vshrl.u32 %v1087, 7
        %v1089 = vsub.s32 3, %v1088
        %v1090 = vrot.slane %v1073, %v1089
        %v1091 = vlaneseq
        %v1092 = vshrl.u32 %v1091, 7
        %v1093 = vsub.s32 4, %v1092
        %v1094 = vrot.slane %v1073, %v1093
        %v1095 = vlaneseq
        %v1096 = vshrl.u32 %v1095, 7
        %v1097 = vsub.s32 5, %v1096
        %v1098 = vrot.slane %v1073, %v1097
        %v1099 = vlaneseq
        %v1100 = vshrl.u32 %v1099, 7
        %v1101 = vsub.s32 6, %v1100
        %v1102 = vrot.slane %v1073, %v1101
        %v1103 = vlaneseq
        %v1104 = vshrl.u32 %v1103, 7
        %v1105 = vsub.s32 7, %v1104
        %v1106 = vrot.slane %v1073, %v1105
        %v1179 = vunpack.c.l.b16 %v1009
        %v1180 = vunpack.c.h.b16 %v1009
        %v1181 = vunpack.c.l.b16 %v1010
        %v1182 = vunpack.c.h.b16 %v1010
        %v1183 = vunpack.c.l.b16 %v1011
        %v1184 = vunpack.c.h.b16 %v1011
        %v1185 = vunpack.c.l.b16 %v1012
        %v1186 = vunpack.c.h.b16 %v1012
        %v1187 = vunpack.c.l.b16 %v1013
        %v1188 = vunpack.c.h.b16 %v1013
        %v1189 = vunpack.c.l.b16 %v1014
        %v1190 = vunpack.c.h.b16 %v1014
        %v1191 = vunpack.c.l.b16 %v1015
        %v1192 = vunpack.c.h.b16 %v1015
        %v1193 = vunpack.c.l.b16 %v1016
        %v1194 = vunpack.c.h.b16 %v1016
        %v1195 = vunpack.c.l.b16 %v1017
        %v1196 = vunpack.c.h.b16 %v1017
        %v1197 = vunpack.c.l.b16 %v1018
        %v1198 = vunpack.c.h.b16 %v1018
        %v1199 = vunpack.c.l.b16 %v1019
        %v1200 = vunpack.c.h.b16 %v1019
        %v1201 = vunpack.c.l.b16 %v1020
        %v1202 = vunpack.c.h.b16 %v1020
        %v1203 = vunpack.c.l.b16 %v1021
        %v1204 = vunpack.c.h.b16 %v1021
        %v1205 = vunpack.c.l.b16 %v1022
        %v1206 = vunpack.c.h.b16 %v1022
        %v1207 = vunpack.c.l.b16 %v1023
        %v1208 = vunpack.c.h.b16 %v1023
        %v1209 = vunpack.c.l.b16 %v1024
        %v1210 = vunpack.c.h.b16 %v1024
        %v1211 = vunpack.c.l.b16 %v1025
        %v1212 = vunpack.c.h.b16 %v1025
        %v1213 = vunpack.c.l.b16 %v1026
        %v1214 = vunpack.c.h.b16 %v1026
        %v1215 = vunpack.c.l.b16 %v1027
        %v1216 = vunpack.c.h.b16 %v1027
        %v1217 = vunpack.c.l.b16 %v1028
        %v1218 = vunpack.c.h.b16 %v1028
        %v1219 = vunpack.c.l.b16 %v1029
        %v1220 = vunpack.c.h.b16 %v1029
        %v1221 = vunpack.c.l.b16 %v1030
        %v1222 = vunpack.c.h.b16 %v1030
        %v1223 = vunpack.c.l.b16 %v1031
        %v1224 = vunpack.c.h.b16 %v1031
        %v1225 = vunpack.c.l.b16 %v1032
        %v1226 = vunpack.c.h.b16 %v1032
        %v1227 = vunpack.c.l.b16 %v1033
        %v1228 = vunpack.c.h.b16 %v1033
        %v1229 = vunpack.c.l.b16 %v1034
        %v1230 = vunpack.c.h.b16 %v1034
        %v1231 = vunpack.c.l.b16 %v1035
        %v1232 = vunpack.c.h.b16 %v1035
        %v1233 = vunpack.c.l.b16 %v1036
        %v1234 = vunpack.c.h.b16 %v1036
        %v1235 = vunpack.c.l.b16 %v1037
        %v1236 = vunpack.c.h.b16 %v1037
        %v1237 = vunpack.c.l.b16 %v1038
        %v1238 = vunpack.c.h.b16 %v1038
        %v1239 = vunpack.c.l.b16 %v1039
        %v1240 = vunpack.c.h.b16 %v1039
        %v1241 = vunpack.c.l.b16 %v1040
        %v1242 = vunpack.c.h.b16 %v1040
        %v1243 = vunpack.c.l.b16 %v1041
        %v1244 = vunpack.c.h.b16 %v1041
        %v1245 = vunpack.c.l.b16 %v1042
        %v1246 = vunpack.c.h.b16 %v1042
        %v1247 = vunpack.c.l.b16 %v1043
        %v1248 = vunpack.c.h.b16 %v1043
        %v1249 = vunpack.c.l.b16 %v1044
        %v1250 = vunpack.c.h.b16 %v1044
        %v1251 = vunpack.c.l.b16 %v1045
        %v1252 = vunpack.c.h.b16 %v1045
        %v1253 = vunpack.c.l.b16 %v1046
        %v1254 = vunpack.c.h.b16 %v1046
        %v1255 = vunpack.c.l.b16 %v1047
        %v1256 = vunpack.c.h.b16 %v1047
        %v1257 = vunpack.c.l.b16 %v1048
        %v1258 = vunpack.c.h.b16 %v1048
        %v1259 = vunpack.c.l.b16 %v1049
        %v1260 = vunpack.c.h.b16 %v1049
        %v1261 = vunpack.c.l.b16 %v1050
        %v1262 = vunpack.c.h.b16 %v1050
        %v1263 = vunpack.c.l.b16 %v1051
        %v1264 = vunpack.c.h.b16 %v1051
        %v1265 = vunpack.c.l.b16 %v1052
        %v1266 = vunpack.c.h.b16 %v1052
        %v1267 = vunpack.c.l.b16 %v1053
        %v1268 = vunpack.c.h.b16 %v1053
        %v1269 = vunpack.c.l.b16 %v1054
        %v1270 = vunpack.c.h.b16 %v1054
        %v1271 = vunpack.c.l.b16 %v1055
        %v1272 = vunpack.c.h.b16 %v1055
        %v1273 = vunpack.c.l.b16 %v1056
        %v1274 = vunpack.c.h.b16 %v1056
        %v1275 = vunpack.c.l.b16 %v1057
        %v1276 = vunpack.c.h.b16 %v1057
        %v1277 = vunpack.c.l.b16 %v1058
        %v1278 = vunpack.c.h.b16 %v1058
        %v1279 = vunpack.c.l.b16 %v1059
        %v1280 = vunpack.c.h.b16 %v1059
        %v1281 = vunpack.c.l.b16 %v1060
        %v1282 = vunpack.c.h.b16 %v1060
        %v1283 = vunpack.c.l.b16 %v1061
        %v1284 = vunpack.c.h.b16 %v1061
        %v1285 = vunpack.c.l.b16 %v1062
        %v1286 = vunpack.c.h.b16 %v1062
        %v1287 = vunpack.c.l.b16 %v1063
        %v1288 = vunpack.c.h.b16 %v1063
        %v1289 = vunpack.c.l.b16 %v1064
        %v1290 = vunpack.c.h.b16 %v1064
        %v1291 = vunpack.c.l.b16 %v1065
        %v1292 = vunpack.c.h.b16 %v1065
        %v1293 = vunpack.c.l.b16 %v1066
        %v1294 = vunpack.c.h.b16 %v1066
        %v1295 = vunpack.c.l.b16 %v1067
        %v1296 = vunpack.c.h.b16 %v1067
        %v1297 = vunpack.c.l.b16 %v1068
        %v1298 = vunpack.c.h.b16 %v1068
        %v1299 = vunpack.c.l.b16 %v1069
        %v1300 = vunpack.c.h.b16 %v1069
        %v1301 = vunpack.c.l.b16 %v1070
        %v1302 = vunpack.c.h.b16 %v1070
        %v1303 = vunpack.c.l.b16 %v1071
        %v1304 = vunpack.c.h.b16 %v1071
        %v1305 = vunpack.c.l.b16 %v1072
        %v1306 = vunpack.c.h.b16 %v1072
        %v1307 = vpack.c.b16 %v1187, %v1179
        %v1308 = vpack.c.b16 %v1188, %v1180
        %v1309 = vpack.c.b16 %v1189, %v1181
        %v1310 = vpack.c.b16 %v1190, %v1182
        %v1311 = vpack.c.b16 %v1191, %v1183
        %v1312 = vpack.c.b16 %v1192, %v1184
        %v1313 = vpack.c.b16 %v1193, %v1185
        %v1314 = vpack.c.b16 %v1194, %v1186
        %v1315 = vpack.c.b16 %v1203, %v1195
        %v1316 = vpack.c.b16 %v1204, %v1196
        %v1317 = vpack.c.b16 %v1205, %v1197
        %v1318 = vpack.c.b16 %v1206, %v1198
        %v1319 = vpack.c.b16 %v1207, %v1199
        %v1320 = vpack.c.b16 %v1208, %v1200
        %v1321 = vpack.c.b16 %v1209, %v1201
        %v1322 = vpack.c.b16 %v1210, %v1202
        %v1323 = vpack.c.b16 %v1219, %v1211
        %v1324 = vpack.c.b16 %v1220, %v1212
        %v1325 = vpack.c.b16 %v1221, %v1213
        %v1326 = vpack.c.b16 %v1222, %v1214
        %v1327 = vpack.c.b16 %v1223, %v1215
        %v1328 = vpack.c.b16 %v1224, %v1216
        %v1329 = vpack.c.b16 %v1225, %v1217
        %v1330 = vpack.c.b16 %v1226, %v1218
        %v1331 = vpack.c.b16 %v1235, %v1227
        %v1332 = vpack.c.b16 %v1236, %v1228
        %v1333 = vpack.c.b16 %v1237, %v1229
        %v1334 = vpack.c.b16 %v1238, %v1230
        %v1335 = vpack.c.b16 %v1239, %v1231
        %v1336 = vpack.c.b16 %v1240, %v1232
        %v1337 = vpack.c.b16 %v1241, %v1233
        %v1338 = vpack.c.b16 %v1242, %v1234
        %v1339 = vpack.c.b16 %v1251, %v1243
        %v1340 = vpack.c.b16 %v1252, %v1244
        %v1341 = vpack.c.b16 %v1253, %v1245
        %v1342 = vpack.c.b16 %v1254, %v1246
        %v1343 = vpack.c.b16 %v1255, %v1247
        %v1344 = vpack.c.b16 %v1256, %v1248
        %v1345 = vpack.c.b16 %v1257, %v1249
        %v1346 = vpack.c.b16 %v1258, %v1250
        %v1347 = vpack.c.b16 %v1267, %v1259
        %v1348 = vpack.c.b16 %v1268, %v1260
        %v1349 = vpack.c.b16 %v1269, %v1261
        %v1350 = vpack.c.b16 %v1270, %v1262
        %v1351 = vpack.c.b16 %v1271, %v1263
        %v1352 = vpack.c.b16 %v1272, %v1264
        %v1353 = vpack.c.b16 %v1273, %v1265
        %v1354 = vpack.c.b16 %v1274, %v1266
        %v1355 = vpack.c.b16 %v1283, %v1275
        %v1356 = vpack.c.b16 %v1284, %v1276
        %v1357 = vpack.c.b16 %v1285, %v1277
        %v1358 = vpack.c.b16 %v1286, %v1278
        %v1359 = vpack.c.b16 %v1287, %v1279
        %v1360 = vpack.c.b16 %v1288, %v1280
        %v1361 = vpack.c.b16 %v1289, %v1281
        %v1362 = vpack.c.b16 %v1290, %v1282
        %v1363 = vpack.c.b16 %v1299, %v1291
        %v1364 = vpack.c.b16 %v1300, %v1292
        %v1365 = vpack.c.b16 %v1301, %v1293
        %v1366 = vpack.c.b16 %v1302, %v1294
        %v1367 = vpack.c.b16 %v1303, %v1295
        %v1368 = vpack.c.b16 %v1304, %v1296
        %v1369 = vpack.c.b16 %v1305, %v1297
        %v1370 = vpack.c.b16 %v1306, %v1298
        %1435 = vmatprep.subr.bf16.mxu0 %v1364
        %1436 = vmatpush1.bf16.msra.mxu0 %v1363
        %1437 = vmatprep.subr.bf16.mxu0 %v1356
        %1438 = vmatpush1.bf16.msra.mxu0 %v1355
        %1439 = vmatprep.subr.bf16.mxu0 %v1348
        %1440 = vmatpush1.bf16.msra.mxu0 %v1347
        %1441 = vmatprep.subr.bf16.mxu0 %v1340
        %1442 = vmatpush1.bf16.msra.mxu0 %v1339
        %1443 = vmatprep.subr.bf16.mxu0 %v1332
        %1444 = vmatpush1.bf16.msra.mxu0 %v1331
        %1445 = vmatprep.subr.bf16.mxu0 %v1324
        %1446 = vmatpush1.bf16.msra.mxu0 %v1323
        %1447 = vmatprep.subr.bf16.mxu0 %v1316
        %1448 = vmatpush1.bf16.msra.mxu0 %v1315
        %1449 = vmatprep.subr.bf16.mxu0 %v1308
        %1450 = vmatpush1.bf16.msra.mxu0 %v1307
        %1451 = vmatprep.subr.bf16.mxu0 0
        %1452 = vmatpush2.bf16.msra.mxu0 0
        %1453 = vmatprep.subr.bf16.mxu0 0
        %1454 = vmatpush2.bf16.msra.mxu0 0
        %1455 = vmatprep.subr.bf16.mxu0 0
        %1456 = vmatpush2.bf16.msra.mxu0 0
        %1457 = vmatprep.subr.bf16.mxu0 0
        %1458 = vmatpush2.bf16.msra.mxu0 0
        %1459 = vmatprep.subr.bf16.mxu0 0
        %1460 = vmatpush2.bf16.msra.mxu0 0
        %1461 = vmatprep.subr.bf16.mxu0 0
        %1462 = vmatpush2.bf16.msra.mxu0 0
        %1463 = vmatprep.subr.bf16.mxu0 0
        %1464 = vmatpush2.bf16.msra.mxu0 0
        %1465 = vmatprep.subr.bf16.mxu0 0
        %1466 = vmatpush2.bf16.msra.mxu0 0
        %1467 = vmatprep.mubr.bf16.mxu0 0
        %1468 = vmatmul.mubr.bf16.gmra.mxu0 %v1007
        %v1469 = vpop.f32.mrf.mxu0
        %v1470 = vadd.f32 %v1078, %v1469
        %v1471 = vpop.f32.mrf.mxu0
        %v1472 = vadd.f32 %v1082, %v1471
        %v1473 = vpop.f32.mrf.mxu0
        %v1474 = vpop.f32.mrf.mxu0
        %1475 = vdwg.mxu0
        %1476 = vmatprep.subr.bf16.mxu0 %v1366
        %1477 = vmatpush1.bf16.msra.mxu0 %v1365
        %1478 = vmatprep.subr.bf16.mxu0 %v1358
        %1479 = vmatpush1.bf16.msra.mxu0 %v1357
        %1480 = vmatprep.subr.bf16.mxu0 %v1350
        %1481 = vmatpush1.bf16.msra.mxu0 %v1349
        %1482 = vmatprep.subr.bf16.mxu0 %v1342
        %1483 = vmatpush1.bf16.msra.mxu0 %v1341
        %1484 = vmatprep.subr.bf16.mxu0 %v1334
        %1485 = vmatpush1.bf16.msra.mxu0 %v1333
        %1486 = vmatprep.subr.bf16.mxu0 %v1326
        %1487 = vmatpush1.bf16.msra.mxu0 %v1325
        %1488 = vmatprep.subr.bf16.mxu0 %v1318
        %1489 = vmatpush1.bf16.msra.mxu0 %v1317
        %1490 = vmatprep.subr.bf16.mxu0 %v1310
        %1491 = vmatpush1.bf16.msra.mxu0 %v1309
        %1492 = vmatprep.subr.bf16.mxu0 0
        %1493 = vmatpush2.bf16.msra.mxu0 0
        %1494 = vmatprep.subr.bf16.mxu0 0
        %1495 = vmatpush2.bf16.msra.mxu0 0
        %1496 = vmatprep.subr.bf16.mxu0 0
        %1497 = vmatpush2.bf16.msra.mxu0 0
        %1498 = vmatprep.subr.bf16.mxu0 0
        %1499 = vmatpush2.bf16.msra.mxu0 0
        %1500 = vmatprep.subr.bf16.mxu0 0
        %1501 = vmatpush2.bf16.msra.mxu0 0
        %1502 = vmatprep.subr.bf16.mxu0 0
        %1503 = vmatpush2.bf16.msra.mxu0 0
        %1504 = vmatprep.subr.bf16.mxu0 0
        %1505 = vmatpush2.bf16.msra.mxu0 0
        %1506 = vmatprep.subr.bf16.mxu0 0
        %1507 = vmatpush2.bf16.msra.mxu0 0
        %1508 = vmatprep.mubr.bf16.mxu0 0
        %1509 = vmatmul.mubr.bf16.gmra.mxu0 %v1007
        %v1510 = vpop.f32.mrf.mxu0
        %v1511 = vadd.f32 %v1086, %v1510
        %v1512 = vpop.f32.mrf.mxu0
        %v1513 = vadd.f32 %v1090, %v1512
        %v1514 = vpop.f32.mrf.mxu0
        %v1515 = vpop.f32.mrf.mxu0
        %1516 = vdwg.mxu0
        %1517 = vmatprep.subr.bf16.mxu0 %v1368
        %1518 = vmatpush1.bf16.msra.mxu0 %v1367
        %1519 = vmatprep.subr.bf16.mxu0 %v1360
        %1520 = vmatpush1.bf16.msra.mxu0 %v1359
        %1521 = vmatprep.subr.bf16.mxu0 %v1352
        %1522 = vmatpush1.bf16.msra.mxu0 %v1351
        %1523 = vmatprep.subr.bf16.mxu0 %v1344
        %1524 = vmatpush1.bf16.msra.mxu0 %v1343
        %1525 = vmatprep.subr.bf16.mxu0 %v1336
        %1526 = vmatpush1.bf16.msra.mxu0 %v1335
        %1527 = vmatprep.subr.bf16.mxu0 %v1328
        %1528 = vmatpush1.bf16.msra.mxu0 %v1327
        %1529 = vmatprep.subr.bf16.mxu0 %v1320
        %1530 = vmatpush1.bf16.msra.mxu0 %v1319
        %1531 = vmatprep.subr.bf16.mxu0 %v1312
        %1532 = vmatpush1.bf16.msra.mxu0 %v1311
        %1533 = vmatprep.subr.bf16.mxu0 0
        %1534 = vmatpush2.bf16.msra.mxu0 0
        %1535 = vmatprep.subr.bf16.mxu0 0
        %1536 = vmatpush2.bf16.msra.mxu0 0
        %1537 = vmatprep.subr.bf16.mxu0 0
        %1538 = vmatpush2.bf16.msra.mxu0 0
        %1539 = vmatprep.subr.bf16.mxu0 0
        %1540 = vmatpush2.bf16.msra.mxu0 0
        %1541 = vmatprep.subr.bf16.mxu0 0
        %1542 = vmatpush2.bf16.msra.mxu0 0
        %1543 = vmatprep.subr.bf16.mxu0 0
        %1544 = vmatpush2.bf16.msra.mxu0 0
        %1545 = vmatprep.subr.bf16.mxu0 0
        %1546 = vmatpush2.bf16.msra.mxu0 0
        %1547 = vmatprep.subr.bf16.mxu0 0
        %1548 = vmatpush2.bf16.msra.mxu0 0
        %1549 = vmatprep.mubr.bf16.mxu0 0
        %1550 = vmatmul.mubr.bf16.gmra.mxu0 %v1007
        %v1551 = vpop.f32.mrf.mxu0
        %v1552 = vadd.f32 %v1094, %v1551
        %v1553 = vpop.f32.mrf.mxu0
        %v1554 = vadd.f32 %v1098, %v1553
        %v1555 = vpop.f32.mrf.mxu0
        %v1556 = vpop.f32.mrf.mxu0
        %1557 = vdwg.mxu0
        %1558 = vmatprep.subr.bf16.mxu0 %v1370
        %1559 = vmatpush1.bf16.msra.mxu0 %v1369
        %1560 = vmatprep.subr.bf16.mxu0 %v1362
        %1561 = vmatpush1.bf16.msra.mxu0 %v1361
        %1562 = vmatprep.subr.bf16.mxu0 %v1354
        %1563 = vmatpush1.bf16.msra.mxu0 %v1353
        %1564 = vmatprep.subr.bf16.mxu0 %v1346
        %1565 = vmatpush1.bf16.msra.mxu0 %v1345
        %1566 = vmatprep.subr.bf16.mxu0 %v1338
        %1567 = vmatpush1.bf16.msra.mxu0 %v1337
        %1568 = vmatprep.subr.bf16.mxu0 %v1330
        %1569 = vmatpush1.bf16.msra.mxu0 %v1329
        %1570 = vmatprep.subr.bf16.mxu0 %v1322
        %1571 = vmatpush1.bf16.msra.mxu0 %v1321
        %1572 = vmatprep.subr.bf16.mxu0 %v1314
        %1573 = vmatpush1.bf16.msra.mxu0 %v1313
        %1574 = vmatprep.subr.bf16.mxu0 0
        %1575 = vmatpush2.bf16.msra.mxu0 0
        %1576 = vmatprep.subr.bf16.mxu0 0
        %1577 = vmatpush2.bf16.msra.mxu0 0
        %1578 = vmatprep.subr.bf16.mxu0 0
        %1579 = vmatpush2.bf16.msra.mxu0 0
        %1580 = vmatprep.subr.bf16.mxu0 0
        %1581 = vmatpush2.bf16.msra.mxu0 0
        %1582 = vmatprep.subr.bf16.mxu0 0
        %1583 = vmatpush2.bf16.msra.mxu0 0
        %1584 = vmatprep.subr.bf16.mxu0 0
        %1585 = vmatpush2.bf16.msra.mxu0 0
        %1586 = vmatprep.subr.bf16.mxu0 0
        %1587 = vmatpush2.bf16.msra.mxu0 0
        %1588 = vmatprep.subr.bf16.mxu0 0
        %1589 = vmatpush2.bf16.msra.mxu0 0
        %1590 = vmatprep.mubr.bf16.mxu0 0
        %1591 = vmatmul.mubr.bf16.gmra.mxu0 %v1007
        %v1592 = vpop.f32.mrf.mxu0
        %v1593 = vadd.f32 %v1102, %v1592
        %v1594 = vpop.f32.mrf.mxu0
        %v1595 = vadd.f32 %v1106, %v1594
        %v1596 = vpop.f32.mrf.mxu0
        %v1597 = vpop.f32.mrf.mxu0
        %1598 = vdwg.mxu0
        %v1599 = vmax.f32 %v1470, 0.0
        %v1600 = vmax.f32 %v1472, 0.0
        %v1601 = vmax.f32 %v1511, 0.0
        %v1602 = vmax.f32 %v1513, 0.0
        %v1603 = vmax.f32 %v1552, 0.0
        %v1604 = vmax.f32 %v1554, 0.0
        %v1605 = vmax.f32 %v1593, 0.0
        %v1606 = vmax.f32 %v1595, 0.0
        %v1607 = vpack.c.bf16 %v1599, %v1599
        %v1608 = vpack.c.bf16 %v1600, %v1600
        %v1609 = vpack.c.bf16 %v1601, %v1601
        %v1610 = vpack.c.bf16 %v1602, %v1602
        %v1611 = vpack.c.bf16 %v1603, %v1603
        %v1612 = vpack.c.bf16 %v1604, %v1604
        %v1613 = vpack.c.bf16 %v1605, %v1605
        %v1614 = vpack.c.bf16 %v1606, %v1606
        %v1615 = vld [vmem:[#allocation11] sm:$0xf]
        %v1616 = vld [vmem:[#allocation11 + $0x4] sm:$0xf]
        %v1617 = vld [vmem:[#allocation11 + $0x8] sm:$0xf]
        %v1618 = vld [vmem:[#allocation11 + $0xc] sm:$0xf]
        %v1619 = vld [vmem:[#allocation11 + $0x10] sm:$0xf]
        %v1620 = vld [vmem:[#allocation11 + $0x14] sm:$0xf]
        %v1621 = vld [vmem:[#allocation11 + $0x18] sm:$0xf]
        %v1622 = vld [vmem:[#allocation11 + $0x1c] sm:$0xf]
        %v1623 = vld [vmem:[#allocation11 + $0x20] sm:$0xf]
        %v1624 = vld [vmem:[#allocation11 + $0x24] sm:$0xf]
        %v1625 = vld [vmem:[#allocation11 + $0x28] sm:$0xf]
        %v1626 = vld [vmem:[#allocation11 + $0x2c] sm:$0xf]
        %v1627 = vld [vmem:[#allocation11 + $0x30] sm:$0xf]
        %v1628 = vld [vmem:[#allocation11 + $0x34] sm:$0xf]
        %v1629 = vld [vmem:[#allocation11 + $0x38] sm:$0xf]
        %v1630 = vld [vmem:[#allocation11 + $0x3c] sm:$0xf]
        %v1631 = vld [vmem:[#allocation11 + $0x40] sm:$0xf]
        %v1632 = vld [vmem:[#allocation11 + $0x44] sm:$0xf]
        %v1633 = vld [vmem:[#allocation11 + $0x48] sm:$0xf]
        %v1634 = vld [vmem:[#allocation11 + $0x4c] sm:$0xf]
        %v1635 = vld [vmem:[#allocation11 + $0x50] sm:$0xf]
        %v1636 = vld [vmem:[#allocation11 + $0x54] sm:$0xf]
        %v1637 = vld [vmem:[#allocation11 + $0x58] sm:$0xf]
        %v1638 = vld [vmem:[#allocation11 + $0x5c] sm:$0xf]
        %v1639 = vld [vmem:[#allocation11 + $0x60] sm:$0xf]
        %v1640 = vld [vmem:[#allocation11 + $0x64] sm:$0xf]
        %v1641 = vld [vmem:[#allocation11 + $0x68] sm:$0xf]
        %v1642 = vld [vmem:[#allocation11 + $0x6c] sm:$0xf]
        %v1643 = vld [vmem:[#allocation11 + $0x70] sm:$0xf]
        %v1644 = vld [vmem:[#allocation11 + $0x74] sm:$0xf]
        %v1645 = vld [vmem:[#allocation11 + $0x78] sm:$0xf]
        %v1646 = vld [vmem:[#allocation11 + $0x7c] sm:$0xf]
        %v1647 = vld [vmem:[#allocation11 + $0x80] sm:$0xf]
        %v1648 = vld [vmem:[#allocation11 + $0x84] sm:$0xf]
        %v1649 = vld [vmem:[#allocation11 + $0x88] sm:$0xf]
        %v1650 = vld [vmem:[#allocation11 + $0x8c] sm:$0xf]
        %v1651 = vld [vmem:[#allocation11 + $0x90] sm:$0xf]
        %v1652 = vld [vmem:[#allocation11 + $0x94] sm:$0xf]
        %v1653 = vld [vmem:[#allocation11 + $0x98] sm:$0xf]
        %v1654 = vld [vmem:[#allocation11 + $0x9c] sm:$0xf]
        %v1655 = vld [vmem:[#allocation11 + $0xa0] sm:$0xf]
        %v1656 = vld [vmem:[#allocation11 + $0xa4] sm:$0xf]
        %v1657 = vld [vmem:[#allocation11 + $0xa8] sm:$0xf]
        %v1658 = vld [vmem:[#allocation11 + $0xac] sm:$0xf]
        %v1659 = vld [vmem:[#allocation11 + $0xb0] sm:$0xf]
        %v1660 = vld [vmem:[#allocation11 + $0xb4] sm:$0xf]
        %v1661 = vld [vmem:[#allocation11 + $0xb8] sm:$0xf]
        %v1662 = vld [vmem:[#allocation11 + $0xbc] sm:$0xf]
        %v1663 = vld [vmem:[#allocation11 + $0xc0] sm:$0xf]
        %v1664 = vld [vmem:[#allocation11 + $0xc4] sm:$0xf]
        %v1665 = vld [vmem:[#allocation11 + $0xc8] sm:$0xf]
        %v1666 = vld [vmem:[#allocation11 + $0xcc] sm:$0xf]
        %v1667 = vld [vmem:[#allocation11 + $0xd0] sm:$0xf]
        %v1668 = vld [vmem:[#allocation11 + $0xd4] sm:$0xf]
        %v1669 = vld [vmem:[#allocation11 + $0xd8] sm:$0xf]
        %v1670 = vld [vmem:[#allocation11 + $0xdc] sm:$0xf]
        %v1671 = vld [vmem:[#allocation11 + $0xe0] sm:$0xf]
        %v1672 = vld [vmem:[#allocation11 + $0xe4] sm:$0xf]
        %v1673 = vld [vmem:[#allocation11 + $0xe8] sm:$0xf]
        %v1674 = vld [vmem:[#allocation11 + $0xec] sm:$0xf]
        %v1675 = vld [vmem:[#allocation11 + $0xf0] sm:$0xf]
        %v1676 = vld [vmem:[#allocation11 + $0xf4] sm:$0xf]
        %v1677 = vld [vmem:[#allocation11 + $0xf8] sm:$0xf]
        %v1678 = vld [vmem:[#allocation11 + $0xfc] sm:$0xf]
        %v1679 = vld [vmem:[#allocation11 + $0x100] sm:$0xf]
        %v1680 = vld [vmem:[#allocation11 + $0x104] sm:$0xf]
        %v1681 = vld [vmem:[#allocation11 + $0x108] sm:$0xf]
        %v1682 = vld [vmem:[#allocation11 + $0x10c] sm:$0xf]
        %v1683 = vld [vmem:[#allocation11 + $0x110] sm:$0xf]
        %v1684 = vld [vmem:[#allocation11 + $0x114] sm:$0xf]
        %v1685 = vld [vmem:[#allocation11 + $0x118] sm:$0xf]
        %v1686 = vld [vmem:[#allocation11 + $0x11c] sm:$0xf]
        %v1687 = vld [vmem:[#allocation11 + $0x120] sm:$0xf]
        %v1688 = vld [vmem:[#allocation11 + $0x124] sm:$0xf]
        %v1689 = vld [vmem:[#allocation11 + $0x128] sm:$0xf]
        %v1690 = vld [vmem:[#allocation11 + $0x12c] sm:$0xf]
        %v1691 = vld [vmem:[#allocation11 + $0x130] sm:$0xf]
        %v1692 = vld [vmem:[#allocation11 + $0x134] sm:$0xf]
        %v1693 = vld [vmem:[#allocation11 + $0x138] sm:$0xf]
        %v1694 = vld [vmem:[#allocation11 + $0x13c] sm:$0xf]
        %v1695 = vld [vmem:[#allocation11 + $0x140] sm:$0xf]
        %v1696 = vld [vmem:[#allocation11 + $0x144] sm:$0xf]
        %v1697 = vld [vmem:[#allocation11 + $0x148] sm:$0xf]
        %v1698 = vld [vmem:[#allocation11 + $0x14c] sm:$0xf]
        %v1699 = vld [vmem:[#allocation11 + $0x150] sm:$0xf]
        %v1700 = vld [vmem:[#allocation11 + $0x154] sm:$0xf]
        %v1701 = vld [vmem:[#allocation11 + $0x158] sm:$0xf]
        %v1702 = vld [vmem:[#allocation11 + $0x15c] sm:$0xf]
        %v1703 = vld [vmem:[#allocation11 + $0x160] sm:$0xf]
        %v1704 = vld [vmem:[#allocation11 + $0x164] sm:$0xf]
        %v1705 = vld [vmem:[#allocation11 + $0x168] sm:$0xf]
        %v1706 = vld [vmem:[#allocation11 + $0x16c] sm:$0xf]
        %v1707 = vld [vmem:[#allocation11 + $0x170] sm:$0xf]
        %v1708 = vld [vmem:[#allocation11 + $0x174] sm:$0xf]
        %v1709 = vld [vmem:[#allocation11 + $0x178] sm:$0xf]
        %v1710 = vld [vmem:[#allocation11 + $0x17c] sm:$0xf]
        %v1711 = vld [vmem:[#allocation11 + $0x180] sm:$0xf]
        %v1712 = vld [vmem:[#allocation11 + $0x184] sm:$0xf]
        %v1713 = vld [vmem:[#allocation11 + $0x188] sm:$0xf]
        %v1714 = vld [vmem:[#allocation11 + $0x18c] sm:$0xf]
        %v1715 = vld [vmem:[#allocation11 + $0x190] sm:$0xf]
        %v1716 = vld [vmem:[#allocation11 + $0x194] sm:$0xf]
        %v1717 = vld [vmem:[#allocation11 + $0x198] sm:$0xf]
        %v1718 = vld [vmem:[#allocation11 + $0x19c] sm:$0xf]
        %v1719 = vld [vmem:[#allocation11 + $0x1a0] sm:$0xf]
        %v1720 = vld [vmem:[#allocation11 + $0x1a4] sm:$0xf]
        %v1721 = vld [vmem:[#allocation11 + $0x1a8] sm:$0xf]
        %v1722 = vld [vmem:[#allocation11 + $0x1ac] sm:$0xf]
        %v1723 = vld [vmem:[#allocation11 + $0x1b0] sm:$0xf]
        %v1724 = vld [vmem:[#allocation11 + $0x1b4] sm:$0xf]
        %v1725 = vld [vmem:[#allocation11 + $0x1b8] sm:$0xf]
        %v1726 = vld [vmem:[#allocation11 + $0x1bc] sm:$0xf]
        %v1727 = vld [vmem:[#allocation11 + $0x1c0] sm:$0xf]
        %v1728 = vld [vmem:[#allocation11 + $0x1c4] sm:$0xf]
        %v1729 = vld [vmem:[#allocation11 + $0x1c8] sm:$0xf]
        %v1730 = vld [vmem:[#allocation11 + $0x1cc] sm:$0xf]
        %v1731 = vld [vmem:[#allocation11 + $0x1d0] sm:$0xf]
        %v1732 = vld [vmem:[#allocation11 + $0x1d4] sm:$0xf]
        %v1733 = vld [vmem:[#allocation11 + $0x1d8] sm:$0xf]
        %v1734 = vld [vmem:[#allocation11 + $0x1dc] sm:$0xf]
        %v1735 = vld [vmem:[#allocation11 + $0x1e0] sm:$0xf]
        %v1736 = vld [vmem:[#allocation11 + $0x1e4] sm:$0xf]
        %v1737 = vld [vmem:[#allocation11 + $0x1e8] sm:$0xf]
        %v1738 = vld [vmem:[#allocation11 + $0x1ec] sm:$0xf]
        %v1739 = vld [vmem:[#allocation11 + $0x1f0] sm:$0xf]
        %v1740 = vld [vmem:[#allocation11 + $0x1f4] sm:$0xf]
        %v1741 = vld [vmem:[#allocation11 + $0x1f8] sm:$0xf]
        %v1742 = vld [vmem:[#allocation11 + $0x1fc] sm:$0xf]
        %v1743 = vld [vmem:[%s13] sm:$0x1]
        %v1745 = vlaneseq
        %v1746 = vshrl.u32 %v1745, 7
        %v1747 = vsub.s32 0, %v1746
        %v1748 = vrot.slane %v1743, %v1747
        %v1878 = vunpack.c.l.b16 %v1615
        %v1879 = vunpack.c.l.b16 %v1616
        %v1880 = vunpack.c.l.b16 %v1617
        %v1881 = vunpack.c.l.b16 %v1618
        %v1882 = vunpack.c.l.b16 %v1619
        %v1883 = vunpack.c.l.b16 %v1620
        %v1884 = vunpack.c.l.b16 %v1621
        %v1885 = vunpack.c.l.b16 %v1622
        %v1886 = vunpack.c.l.b16 %v1623
        %v1887 = vunpack.c.l.b16 %v1624
        %v1888 = vunpack.c.l.b16 %v1625
        %v1889 = vunpack.c.l.b16 %v1626
        %v1890 = vunpack.c.l.b16 %v1627
        %v1891 = vunpack.c.l.b16 %v1628
        %v1892 = vunpack.c.l.b16 %v1629
        %v1893 = vunpack.c.l.b16 %v1630
        %v1894 = vunpack.c.l.b16 %v1631
        %v1895 = vunpack.c.l.b16 %v1632
        %v1896 = vunpack.c.l.b16 %v1633
        %v1897 = vunpack.c.l.b16 %v1634
        %v1898 = vunpack.c.l.b16 %v1635
        %v1899 = vunpack.c.l.b16 %v1636
        %v1900 = vunpack.c.l.b16 %v1637
        %v1901 = vunpack.c.l.b16 %v1638
        %v1902 = vunpack.c.l.b16 %v1639
        %v1903 = vunpack.c.l.b16 %v1640
        %v1904 = vunpack.c.l.b16 %v1641
        %v1905 = vunpack.c.l.b16 %v1642
        %v1906 = vunpack.c.l.b16 %v1643
        %v1907 = vunpack.c.l.b16 %v1644
        %v1908 = vunpack.c.l.b16 %v1645
        %v1909 = vunpack.c.l.b16 %v1646
        %v1910 = vunpack.c.l.b16 %v1647
        %v1911 = vunpack.c.l.b16 %v1648
        %v1912 = vunpack.c.l.b16 %v1649
        %v1913 = vunpack.c.l.b16 %v1650
        %v1914 = vunpack.c.l.b16 %v1651
        %v1915 = vunpack.c.l.b16 %v1652
        %v1916 = vunpack.c.l.b16 %v1653
        %v1917 = vunpack.c.l.b16 %v1654
        %v1918 = vunpack.c.l.b16 %v1655
        %v1919 = vunpack.c.l.b16 %v1656
        %v1920 = vunpack.c.l.b16 %v1657
        %v1921 = vunpack.c.l.b16 %v1658
        %v1922 = vunpack.c.l.b16 %v1659
        %v1923 = vunpack.c.l.b16 %v1660
        %v1924 = vunpack.c.l.b16 %v1661
        %v1925 = vunpack.c.l.b16 %v1662
        %v1926 = vunpack.c.l.b16 %v1663
        %v1927 = vunpack.c.l.b16 %v1664
        %v1928 = vunpack.c.l.b16 %v1665
        %v1929 = vunpack.c.l.b16 %v1666
        %v1930 = vunpack.c.l.b16 %v1667
        %v1931 = vunpack.c.l.b16 %v1668
        %v1932 = vunpack.c.l.b16 %v1669
        %v1933 = vunpack.c.l.b16 %v1670
        %v1934 = vunpack.c.l.b16 %v1671
        %v1935 = vunpack.c.l.b16 %v1672
        %v1936 = vunpack.c.l.b16 %v1673
        %v1937 = vunpack.c.l.b16 %v1674
        %v1938 = vunpack.c.l.b16 %v1675
        %v1939 = vunpack.c.l.b16 %v1676
        %v1940 = vunpack.c.l.b16 %v1677
        %v1941 = vunpack.c.l.b16 %v1678
        %v1942 = vunpack.c.l.b16 %v1679
        %v1943 = vunpack.c.l.b16 %v1680
        %v1944 = vunpack.c.l.b16 %v1681
        %v1945 = vunpack.c.l.b16 %v1682
        %v1946 = vunpack.c.l.b16 %v1683
        %v1947 = vunpack.c.l.b16 %v1684
        %v1948 = vunpack.c.l.b16 %v1685
        %v1949 = vunpack.c.l.b16 %v1686
        %v1950 = vunpack.c.l.b16 %v1687
        %v1951 = vunpack.c.l.b16 %v1688
        %v1952 = vunpack.c.l.b16 %v1689
        %v1953 = vunpack.c.l.b16 %v1690
        %v1954 = vunpack.c.l.b16 %v1691
        %v1955 = vunpack.c.l.b16 %v1692
        %v1956 = vunpack.c.l.b16 %v1693
        %v1957 = vunpack.c.l.b16 %v1694
        %v1958 = vunpack.c.l.b16 %v1695
        %v1959 = vunpack.c.l.b16 %v1696
        %v1960 = vunpack.c.l.b16 %v1697
        %v1961 = vunpack.c.l.b16 %v1698
        %v1962 = vunpack.c.l.b16 %v1699
        %v1963 = vunpack.c.l.b16 %v1700
        %v1964 = vunpack.c.l.b16 %v1701
        %v1965 = vunpack.c.l.b16 %v1702
        %v1966 = vunpack.c.l.b16 %v1703
        %v1967 = vunpack.c.l.b16 %v1704
        %v1968 = vunpack.c.l.b16 %v1705
        %v1969 = vunpack.c.l.b16 %v1706
        %v1970 = vunpack.c.l.b16 %v1707
        %v1971 = vunpack.c.l.b16 %v1708
        %v1972 = vunpack.c.l.b16 %v1709
        %v1973 = vunpack.c.l.b16 %v1710
        %v1974 = vunpack.c.l.b16 %v1711
        %v1975 = vunpack.c.l.b16 %v1712
        %v1976 = vunpack.c.l.b16 %v1713
        %v1977 = vunpack.c.l.b16 %v1714
        %v1978 = vunpack.c.l.b16 %v1715
        %v1979 = vunpack.c.l.b16 %v1716
        %v1980 = vunpack.c.l.b16 %v1717
        %v1981 = vunpack.c.l.b16 %v1718
        %v1982 = vunpack.c.l.b16 %v1719
        %v1983 = vunpack.c.l.b16 %v1720
        %v1984 = vunpack.c.l.b16 %v1721
        %v1985 = vunpack.c.l.b16 %v1722
        %v1986 = vunpack.c.l.b16 %v1723
        %v1987 = vunpack.c.l.b16 %v1724
        %v1988 = vunpack.c.l.b16 %v1725
        %v1989 = vunpack.c.l.b16 %v1726
        %v1990 = vunpack.c.l.b16 %v1727
        %v1991 = vunpack.c.l.b16 %v1728
        %v1992 = vunpack.c.l.b16 %v1729
        %v1993 = vunpack.c.l.b16 %v1730
        %v1994 = vunpack.c.l.b16 %v1731
        %v1995 = vunpack.c.l.b16 %v1732
        %v1996 = vunpack.c.l.b16 %v1733
        %v1997 = vunpack.c.l.b16 %v1734
        %v1998 = vunpack.c.l.b16 %v1735
        %v1999 = vunpack.c.l.b16 %v1736
        %v2000 = vunpack.c.l.b16 %v1737
        %v2001 = vunpack.c.l.b16 %v1738
        %v2002 = vunpack.c.l.b16 %v1739
        %v2003 = vunpack.c.l.b16 %v1740
        %v2004 = vunpack.c.l.b16 %v1741
        %v2005 = vunpack.c.l.b16 %v1742
        %v2006 = vpack.c.b16 %v1879, %v1878
        %v2007 = vpack.c.b16 %v1881, %v1880
        %v2008 = vpack.c.b16 %v1883, %v1882
        %v2009 = vpack.c.b16 %v1885, %v1884
        %v2010 = vpack.c.b16 %v1887, %v1886
        %v2011 = vpack.c.b16 %v1889, %v1888
        %v2012 = vpack.c.b16 %v1891, %v1890
        %v2013 = vpack.c.b16 %v1893, %v1892
        %v2014 = vpack.c.b16 %v1895, %v1894
        %v2015 = vpack.c.b16 %v1897, %v1896
        %v2016 = vpack.c.b16 %v1899, %v1898
        %v2017 = vpack.c.b16 %v1901, %v1900
        %v2018 = vpack.c.b16 %v1903, %v1902
        %v2019 = vpack.c.b16 %v1905, %v1904
        %v2020 = vpack.c.b16 %v1907, %v1906
        %v2021 = vpack.c.b16 %v1909, %v1908
        %v2022 = vpack.c.b16 %v1911, %v1910
        %v2023 = vpack.c.b16 %v1913, %v1912
        %v2024 = vpack.c.b16 %v1915, %v1914
        %v2025 = vpack.c.b16 %v1917, %v1916
        %v2026 = vpack.c.b16 %v1919, %v1918
        %v2027 = vpack.c.b16 %v1921, %v1920
        %v2028 = vpack.c.b16 %v1923, %v1922
        %v2029 = vpack.c.b16 %v1925, %v1924
        %v2030 = vpack.c.b16 %v1927, %v1926
        %v2031 = vpack.c.b16 %v1929, %v1928
        %v2032 = vpack.c.b16 %v1931, %v1930
        %v2033 = vpack.c.b16 %v1933, %v1932
        %v2034 = vpack.c.b16 %v1935, %v1934
        %v2035 = vpack.c.b16 %v1937, %v1936
        %v2036 = vpack.c.b16 %v1939, %v1938
        %v2037 = vpack.c.b16 %v1941, %v1940
        %v2038 = vpack.c.b16 %v1943, %v1942
        %v2039 = vpack.c.b16 %v1945, %v1944
        %v2040 = vpack.c.b16 %v1947, %v1946
        %v2041 = vpack.c.b16 %v1949, %v1948
        %v2042 = vpack.c.b16 %v1951, %v1950
        %v2043 = vpack.c.b16 %v1953, %v1952
        %v2044 = vpack.c.b16 %v1955, %v1954
        %v2045 = vpack.c.b16 %v1957, %v1956
        %v2046 = vpack.c.b16 %v1959, %v1958
        %v2047 = vpack.c.b16 %v1961, %v1960
        %v2048 = vpack.c.b16 %v1963, %v1962
        %v2049 = vpack.c.b16 %v1965, %v1964
        %v2050 = vpack.c.b16 %v1967, %v1966
        %v2051 = vpack.c.b16 %v1969, %v1968
        %v2052 = vpack.c.b16 %v1971, %v1970
        %v2053 = vpack.c.b16 %v1973, %v1972
        %v2054 = vpack.c.b16 %v1975, %v1974
        %v2055 = vpack.c.b16 %v1977, %v1976
        %v2056 = vpack.c.b16 %v1979, %v1978
        %v2057 = vpack.c.b16 %v1981, %v1980
        %v2058 = vpack.c.b16 %v1983, %v1982
        %v2059 = vpack.c.b16 %v1985, %v1984
        %v2060 = vpack.c.b16 %v1987, %v1986
        %v2061 = vpack.c.b16 %v1989, %v1988
        %v2062 = vpack.c.b16 %v1991, %v1990
        %v2063 = vpack.c.b16 %v1993, %v1992
        %v2064 = vpack.c.b16 %v1995, %v1994
        %v2065 = vpack.c.b16 %v1997, %v1996
        %v2066 = vpack.c.b16 %v1999, %v1998
        %v2067 = vpack.c.b16 %v2001, %v2000
        %v2068 = vpack.c.b16 %v2003, %v2002
        %v2069 = vpack.c.b16 %v2005, %v2004
        %2134 = vmatprep.subr.bf16.mxu0 0
        %2135 = vmatpush1.bf16.msra.mxu0 %v2013
        %2136 = vmatprep.subr.bf16.mxu0 0
        %2137 = vmatpush1.bf16.msra.mxu0 %v2012
        %2138 = vmatprep.subr.bf16.mxu0 0
        %2139 = vmatpush1.bf16.msra.mxu0 %v2011
        %2140 = vmatprep.subr.bf16.mxu0 0
        %2141 = vmatpush1.bf16.msra.mxu0 %v2010
        %2142 = vmatprep.subr.bf16.mxu0 0
        %2143 = vmatpush1.bf16.msra.mxu0 %v2009
        %2144 = vmatprep.subr.bf16.mxu0 0
        %2145 = vmatpush1.bf16.msra.mxu0 %v2008
        %2146 = vmatprep.subr.bf16.mxu0 0
        %2147 = vmatpush1.bf16.msra.mxu0 %v2007
        %2148 = vmatprep.subr.bf16.mxu0 0
        %2149 = vmatpush1.bf16.msra.mxu0 %v2006
        %2150 = vmatprep.subr.bf16.mxu0 0
        %2151 = vmatpush2.bf16.msra.mxu0 %v2021
        %2152 = vmatprep.subr.bf16.mxu0 0
        %2153 = vmatpush2.bf16.msra.mxu0 %v2020
        %2154 = vmatprep.subr.bf16.mxu0 0
        %2155 = vmatpush2.bf16.msra.mxu0 %v2019
        %2156 = vmatprep.subr.bf16.mxu0 0
        %2157 = vmatpush2.bf16.msra.mxu0 %v2018
        %2158 = vmatprep.subr.bf16.mxu0 0
        %2159 = vmatpush2.bf16.msra.mxu0 %v2017
        %2160 = vmatprep.subr.bf16.mxu0 0
        %2161 = vmatpush2.bf16.msra.mxu0 %v2016
        %2162 = vmatprep.subr.bf16.mxu0 0
        %2163 = vmatpush2.bf16.msra.mxu0 %v2015
        %2164 = vmatprep.subr.bf16.mxu0 0
        %2165 = vmatpush2.bf16.msra.mxu0 %v2014
        %2166 = vmatprep.mubr.bf16.mxu0 %v1608
        %2167 = vmatmul.mubr.bf16.gmra.mxu0 %v1607
        %v2168 = vpop.f32.mrf.mxu0
        %v2169 = vadd.f32 %v1748, %v2168
        %v2170 = vpop.f32.mrf.mxu0
        %v2171 = vpop.f32.mrf.mxu0
        %v2172 = vpop.f32.mrf.mxu0
        %2173 = vdwg.mxu0
        %2174 = vmatprep.subr.bf16.mxu0 0
        %2175 = vmatpush1.bf16.msra.mxu0 %v2029
        %2176 = vmatprep.subr.bf16.mxu0 0
        %2177 = vmatpush1.bf16.msra.mxu0 %v2028
        %2178 = vmatprep.subr.bf16.mxu0 0
        %2179 = vmatpush1.bf16.msra.mxu0 %v2027
        %2180 = vmatprep.subr.bf16.mxu0 0
        %2181 = vmatpush1.bf16.msra.mxu0 %v2026
        %2182 = vmatprep.subr.bf16.mxu0 0
        %2183 = vmatpush1.bf16.msra.mxu0 %v2025
        %2184 = vmatprep.subr.bf16.mxu0 0
        %2185 = vmatpush1.bf16.msra.mxu0 %v2024
        %2186 = vmatprep.subr.bf16.mxu0 0
        %2187 = vmatpush1.bf16.msra.mxu0 %v2023
        %2188 = vmatprep.subr.bf16.mxu0 0
        %2189 = vmatpush1.bf16.msra.mxu0 %v2022
        %2190 = vmatprep.subr.bf16.mxu0 0
        %2191 = vmatpush2.bf16.msra.mxu0 %v2037
        %2192 = vmatprep.subr.bf16.mxu0 0
        %2193 = vmatpush2.bf16.msra.mxu0 %v2036
        %2194 = vmatprep.subr.bf16.mxu0 0
        %2195 = vmatpush2.bf16.msra.mxu0 %v2035
        %2196 = vmatprep.subr.bf16.mxu0 0
        %2197 = vmatpush2.bf16.msra.mxu0 %v2034
        %2198 = vmatprep.subr.bf16.mxu0 0
        %2199 = vmatpush2.bf16.msra.mxu0 %v2033
        %2200 = vmatprep.subr.bf16.mxu0 0
        %2201 = vmatpush2.bf16.msra.mxu0 %v2032
        %2202 = vmatprep.subr.bf16.mxu0 0
        %2203 = vmatpush2.bf16.msra.mxu0 %v2031
        %2204 = vmatprep.subr.bf16.mxu0 0
        %2205 = vmatpush2.bf16.msra.mxu0 %v2030
        %2206 = vmatprep.mubr.bf16.mxu0 %v1610
        %2207 = vmatmul.mubr.bf16.gmra.mxu0 %v1609
        %v2208 = vpop.f32.mrf.mxu0
        %v2209 = vadd.f32 %v2169, %v2208
        %v2210 = vpop.f32.mrf.mxu0
        %v2211 = vpop.f32.mrf.mxu0
        %v2212 = vpop.f32.mrf.mxu0
        %2213 = vdwg.mxu0
        %2214 = vmatprep.subr.bf16.mxu0 0
        %2215 = vmatpush1.bf16.msra.mxu0 %v2045
        %2216 = vmatprep.subr.bf16.mxu0 0
        %2217 = vmatpush1.bf16.msra.mxu0 %v2044
        %2218 = vmatprep.subr.bf16.mxu0 0
        %2219 = vmatpush1.bf16.msra.mxu0 %v2043
        %2220 = vmatprep.subr.bf16.mxu0 0
        %2221 = vmatpush1.bf16.msra.mxu0 %v2042
        %2222 = vmatprep.subr.bf16.mxu0 0
        %2223 = vmatpush1.bf16.msra.mxu0 %v2041
        %2224 = vmatprep.subr.bf16.mxu0 0
        %2225 = vmatpush1.bf16.msra.mxu0 %v2040
        %2226 = vmatprep.subr.bf16.mxu0 0
        %2227 = vmatpush1.bf16.msra.mxu0 %v2039
        %2228 = vmatprep.subr.bf16.mxu0 0
        %2229 = vmatpush1.bf16.msra.mxu0 %v2038
        %2230 = vmatprep.subr.bf16.mxu0 0
        %2231 = vmatpush2.bf16.msra.mxu0 %v2053
        %2232 = vmatprep.subr.bf16.mxu0 0
        %2233 = vmatpush2.bf16.msra.mxu0 %v2052
        %2234 = vmatprep.subr.bf16.mxu0 0
        %2235 = vmatpush2.bf16.msra.mxu0 %v2051
        %2236 = vmatprep.subr.bf16.mxu0 0
        %2237 = vmatpush2.bf16.msra.mxu0 %v2050
        %2238 = vmatprep.subr.bf16.mxu0 0
        %2239 = vmatpush2.bf16.msra.mxu0 %v2049
        %2240 = vmatprep.subr.bf16.mxu0 0
        %2241 = vmatpush2.bf16.msra.mxu0 %v2048
        %2242 = vmatprep.subr.bf16.mxu0 0
        %2243 = vmatpush2.bf16.msra.mxu0 %v2047
        %2244 = vmatprep.subr.bf16.mxu0 0
        %2245 = vmatpush2.bf16.msra.mxu0 %v2046
        %2246 = vmatprep.mubr.bf16.mxu0 %v1612
        %2247 = vmatmul.mubr.bf16.gmra.mxu0 %v1611
        %v2248 = vpop.f32.mrf.mxu0
        %v2249 = vadd.f32 %v2209, %v2248
        %v2250 = vpop.f32.mrf.mxu0
        %v2251 = vpop.f32.mrf.mxu0
        %v2252 = vpop.f32.mrf.mxu0
        %2253 = vdwg.mxu0
        %2254 = vmatprep.subr.bf16.mxu0 0
        %2255 = vmatpush1.bf16.msra.mxu0 %v2061
        %2256 = vmatprep.subr.bf16.mxu0 0
        %2257 = vmatpush1.bf16.msra.mxu0 %v2060
        %2258 = vmatprep.subr.bf16.mxu0 0
        %2259 = vmatpush1.bf16.msra.mxu0 %v2059
        %2260 = vmatprep.subr.bf16.mxu0 0
        %2261 = vmatpush1.bf16.msra.mxu0 %v2058
        %2262 = vmatprep.subr.bf16.mxu0 0
        %2263 = vmatpush1.bf16.msra.mxu0 %v2057
        %2264 = vmatprep.subr.bf16.mxu0 0
        %2265 = vmatpush1.bf16.msra.mxu0 %v2056
        %2266 = vmatprep.subr.bf16.mxu0 0
        %2267 = vmatpush1.bf16.msra.mxu0 %v2055
        %2268 = vmatprep.subr.bf16.mxu0 0
        %2269 = vmatpush1.bf16.msra.mxu0 %v2054
        %2270 = vmatprep.subr.bf16.mxu0 0
        %2271 = vmatpush2.bf16.msra.mxu0 %v2069
        %2272 = vmatprep.subr.bf16.mxu0 0
        %2273 = vmatpush2.bf16.msra.mxu0 %v2068
        %2274 = vmatprep.subr.bf16.mxu0 0
        %2275 = vmatpush2.bf16.msra.mxu0 %v2067
        %2276 = vmatprep.subr.bf16.mxu0 0
        %2277 = vmatpush2.bf16.msra.mxu0 %v2066
        %2278 = vmatprep.subr.bf16.mxu0 0
        %2279 = vmatpush2.bf16.msra.mxu0 %v2065
        %2280 = vmatprep.subr.bf16.mxu0 0
        %2281 = vmatpush2.bf16.msra.mxu0 %v2064
        %2282 = vmatprep.subr.bf16.mxu0 0
        %2283 = vmatpush2.bf16.msra.mxu0 %v2063
        %2284 = vmatprep.subr.bf16.mxu0 0
        %2285 = vmatpush2.bf16.msra.mxu0 %v2062
        %2286 = vmatprep.mubr.bf16.mxu0 %v1614
        %2287 = vmatmul.mubr.bf16.gmra.mxu0 %v1613
        %v2288 = vpop.f32.mrf.mxu0
        %v2289 = vadd.f32 %v2249, %v2288
        %v2290 = vpop.f32.mrf.mxu0
        %v2291 = vpop.f32.mrf.mxu0
        %v2292 = vpop.f32.mrf.mxu0
        %2293 = vdwg.mxu0
        %v2294 = vadd.f32 %v979, %v2289
        %2295 = vst [vmem:[%s605] sm:$0xff] %v2294
        %s2296 = sand.u32 %s353, 1
        %s2297 = scalar_lea.sflag [#allocation4], %s2296
        %s2298 = sand.u32 %s353, 1
        %s2299 = smul.addr %s2298, 8
        %s2300 = scalar_lea.vmem [#allocation13], %s2299
        %s2301 = sand.u32 %s379, 1
        %s2302 = scalar_lea.sflag [#allocation15], %s2301
        %s2303 = sand.u32 %s379, 1
        %s2304 = smul.addr %s2303, 8
        %s2305 = scalar_lea.vmem [#allocation14], %s2304
        // Predicated region
        $region101: #{tpu_custom_call.1} parent=75 // pred_check
          %p2306 = pneg %p363
        $region102: #{tpu_custom_call.1} parent=75 // pred_check_branch
          %2308 = sbr.rel (%p2306) target = $region104
        $region103: #{tpu_custom_call.1} parent=75 // pred_region
          %s2310 = ssub.s32 128, 128
          %2311 = vsyncadd %s2297, %s2310
          %s2312 = smul.addr %s41, 128
          %s2313 = scalar_lea.hbm %s14, %s2312
          %s2315 = sshll.u32 %s2300, 4
          %s2316 = int_to_ptr.vmem [resolvable:$true] %s2315
          %2318 = dma.vmem_to_hbm [thread:$0]  %s2316, 128, %s2313, %s2297
        $region104: #{tpu_custom_call.1} parent=75 // pred_fallthru
          _
        // Predicated region
        $region105: #{tpu_custom_call.1} parent=75 // pred_check
          %p2319 = pneg %p389
        $region106: #{tpu_custom_call.1} parent=75 // pred_check_branch
          %2321 = sbr.rel (%p2319) target = $region108
        $region107: #{tpu_custom_call.1} parent=75 // pred_region
          %s2323 = ssub.s32 128, 128
          %2324 = vsyncadd %s2302, %s2323
          %s2325 = smul.addr %s41, 128
          %s2326 = scalar_lea.hbm %s15, %s2325
          %s2328 = sshll.u32 %s2305, 4
          %s2329 = int_to_ptr.vmem [resolvable:$true] %s2328
          %2331 = dma.vmem_to_hbm [thread:$0]  %s2329, 128, %s2326, %s2302
        $region108: #{tpu_custom_call.1} parent=75 // pred_fallthru
          _
      $region76: #{tpu_custom_call.1} parent=5 // pred_fallthru
        _
      %p2332 = scmp.le.s32.totalorder 2, %s36
      // Predicated region
      $region109: #{tpu_custom_call.1} parent=5 // pred_check
        %p2333 = pneg %p2332
      $region110: #{tpu_custom_call.1} parent=5 // pred_check_branch
        %2335 = sbr.rel (%p2333) target = $region112
      $region111: #{tpu_custom_call.1} parent=5 // pred_region
        %s2336 = ssub.s32 %s36, 2
        // Predicated region
        $region113: #{tpu_custom_call.1} parent=111 // pred_check
          %p2337 = pneg %p369
        $region114: #{tpu_custom_call.1} parent=111 // pred_check_branch
          %2339 = sbr.rel (%p2337) target = $region116
        $region115: #{tpu_custom_call.1} parent=111 // pred_region
          %s2340 = sand.u32 %s354, 1
          %s2341 = scalar_lea.sflag [#allocation4], %s2340
          %s2342 = sand.u32 %s354, 1
          %s2343 = smul.addr %s2342, 8
          %s2344 = scalar_lea.vmem [#allocation13], %s2343
          %2345 = dma.done %s2341, 128
        $region116: #{tpu_custom_call.1} parent=111 // pred_fallthru
          _
        // Predicated region
        $region117: #{tpu_custom_call.1} parent=111 // pred_check
          %p2346 = pneg %p395
        $region118: #{tpu_custom_call.1} parent=111 // pred_check_branch
          %2348 = sbr.rel (%p2346) target = $region120
        $region119: #{tpu_custom_call.1} parent=111 // pred_region
          %s2349 = sand.u32 %s380, 1
          %s2350 = scalar_lea.sflag [#allocation15], %s2349
          %s2351 = sand.u32 %s380, 1
          %s2352 = smul.addr %s2351, 8
          %s2353 = scalar_lea.vmem [#allocation14], %s2352
          %2354 = dma.done %s2350, 128
        $region120: #{tpu_custom_call.1} parent=111 // pred_fallthru
          _
      $region112: #{tpu_custom_call.1} parent=5 // pred_fallthru
        _
    $region6: #{tpu_custom_call.1} parent=1 // loop_footer
      %s40 = sadd.s32 1, %s36
    $region7: #{tpu_custom_call.1} parent=1 // loop_footer_branch
      %35 = sbr.rel target = $region3
    $region8: #{tpu_custom_call.1} parent=1 // loop_exit
      _
    %2355 = vsyncpa [#allocation3], 1
    %s2356 = scalar_lea.sflag [#allocation3], 1
    %2357 = vsyncpa %s2356, 1
    %2358 = vsyncpa [#allocation6], 1
    %s2359 = scalar_lea.sflag [#allocation6], 1
    %2360 = vsyncpa %s2359, 1
    %2361 = vsyncpa [#allocation9], 1
    %2362 = vsyncpa [#allocation12], 1
    %2363 = vsyncpa [#allocation4], 1
    %s2364 = scalar_lea.sflag [#allocation4], 1
    %2365 = vsyncpa %s2364, 1
    %2366 = vsyncpa [#allocation15], 1
    %s2367 = scalar_lea.sflag [#allocation15], 1
    %2368 = vsyncpa %s2367, 1

// kernel: tpu_custom_call.1
$region0: #{tpu_custom_call.1}
  #allocation0 [shape = 'u32[]', space=smem, size = 0x4, offset = 0x4, fixed_abs, tag = 'smem constant byte address 0x4 - core index']
  #allocation1 [shape = 'u32[144,128]{1,0:T(1,128)}', space=vmem, size = 0x12000, scoped, tag = 'internal scratch']
  %s0 = inlined_call_operand.hbm [shape: f32[2,8,128], index: 0, kind: input, shape index: {}]
  %s1 = inlined_call_operand.hbm [shape: f32[2,1,8], index: 1, kind: input, shape index: {}]
  %s2 = inlined_call_operand.vmem [shape: f32[1,128], index: 2, kind: input, shape index: {}]
  %s3 = inlined_call_operand.vmem [shape: f32[1,128], index: 3, kind: input, shape index: {}]
  %s4 = inlined_call_operand.hbm [shape: bf16[128,128], index: 4, kind: input, shape index: {}]
  %s5 = inlined_call_operand.vmem [shape: f32[1,128], index: 5, kind: input, shape index: {}]
  %s6 = inlined_call_operand.hbm [shape: bf16[128,128], index: 6, kind: input, shape index: {}]
  %s7 = inlined_call_operand.vmem [shape: f32[1,128], index: 7, kind: input, shape index: {}]
  %s8 = inlined_call_operand.vmem [shape: f32[1,128], index: 8, kind: input, shape index: {}]
  %s9 = inlined_call_operand.vmem [shape: f32[1,128], index: 9, kind: input, shape index: {}]
  %s10 = inlined_call_operand.hbm [shape: bf16[128,1024], index: 10, kind: input, shape index: {}]
  %s11 = inlined_call_operand.vmem [shape: f32[1,1024], index: 11, kind: input, shape index: {}]
  %s12 = inlined_call_operand.hbm [shape: bf16[1024,128], index: 12, kind: input, shape index: {}]
  %s13 = inlined_call_operand.vmem [shape: f32[1,128], index: 13, kind: input, shape index: {}]
  %s14 = inlined_call_operand.hbm [shape: f32[2,8,128], index: 14, kind: output, shape index: {0}]
  %s15 = inlined_call_operand.hbm [shape: f32[2,8,8], index: 15, kind: output, shape index: {1}]
  %16 = xla_tuple %s14, %s15
  %s17 = sld [smem:[#allocation0]]
  $region121: #{tpu_custom_call.1} parent=0
    _
  %s19 = ssub.s32 1, %s17
  %s20 = scalar_select 0, %s19, %s17
  $region1: #{tpu_custom_call.1} parent=0
    #allocation2 [shape = 'u8[8192]{0}', space=vmem, size = 0x2000, scoped, tag = 'input window, operand 0']
    #allocation3 [shape = 's32[2]{0}', space=sflag, size = 0x8, scoped, tag = 'scoped memory for tpu_custom_call.1']
    #allocation4 [shape = 's32[2]{0}', space=sflag, size = 0x8, scoped, tag = 'scoped memory for tpu_custom_call.1']
    #allocation5 [shape = 'u8[1024]{0}', space=vmem, size = 0x400, scoped, tag = 'input window, operand 1']
    #allocation6 [shape = 's32[2]{0}', space=sflag, size = 0x8, scoped, tag = 'scoped memory for tpu_custom_call.1']
    #allocation7 [shape = 'u8[32768]{0}', space=vmem, size = 0x8000, scoped, tag = 'input window, operand 4, single buffered']
    #allocation8 [shape = 'u8[32768]{0}', space=vmem, size = 0x8000, scoped, tag = 'input window, operand 6, single buffered']
    #allocation9 [shape = 's32[1]{0}', space=sflag, size = 0x4, scoped, tag = 'scoped memory for tpu_custom_call.1']
    #allocation10 [shape = 'u8[262144]{0}', space=vmem, size = 0x40000, scoped, tag = 'input window, operand 10, single buffered']
    #allocation11 [shape = 'u8[262144]{0}', space=vmem, size = 0x40000, scoped, tag = 'input window, operand 12, single buffered']
    #allocation12 [shape = 's32[1]{0}', space=sflag, size = 0x4, scoped, tag = 'scoped memory for tpu_custom_call.1']
    #allocation13 [shape = 'u8[8192]{0}', space=vmem, size = 0x2000, scoped, tag = 'output window, operand 0']
    #allocation14 [shape = 'u8[8192]{0}', space=vmem, size = 0x2000, scoped, tag = 'output window, operand 1']
    #allocation15 [shape = 's32[2]{0}', space=sflag, size = 0x8, scoped, tag = 'scoped memory for tpu_custom_call.1']
    %21 = vsyncpa [#allocation3], 0
    %s22 = scalar_lea.sflag [#allocation3], 1
    %23 = vsyncpa %s22, 0
    %24 = vsyncpa [#allocation6], 0
    %s25 = scalar_lea.sflag [#allocation6], 1
    %26 = vsyncpa %s25, 0
    %27 = vsyncpa [#allocation9], 0
    %28 = vsyncpa [#allocation12], 0
    %29 = vsyncpa [#allocation4], 0
    %s30 = scalar_lea.sflag [#allocation4], 1
    %31 = vsyncpa %s30, 0
    %32 = vsyncpa [#allocation15], 0
    %s33 = scalar_lea.sflag [#allocation15], 1
    %34 = vsyncpa %s33, 0
    loop: start=0, step=1, limit=4
    $region2: #{tpu_custom_call.1} parent=1 // loop_pre_header
      _
    $region3: #{tpu_custom_call.1} parent=1 // loop_header
      %s36 = sphi 0, %s40
      %p37 = scmp.ge.s32.totalorder %s36, 4
      %s46 = sphi 0, %s48
      %s49 = sphi 0, %s46
      %s50 = sphi 0, %s49
      %s66 = sphi 0, %s50
      %s72 = sphi 0, %s74
      %s75 = sphi 0, %s72
      %s76 = sphi 0, %s75
      %s92 = sphi 0, %s76
      %s96 = sphi 0, %s96
      %s98 = sphi 0, %s96
      %s99 = sphi 0, %s98
      %s113 = sphi 0, %s99
      %s117 = sphi 0, %s117
      %s119 = sphi 0, %s117
      %s120 = sphi 0, %s119
      %s134 = sphi 0, %s120
      %s138 = sphi 0, %s138
      %s140 = sphi 0, %s138
      %s141 = sphi 0, %s140
      %s155 = sphi 0, %s141
      %s159 = sphi 0, %s159
      %s161 = sphi 0, %s159
      %s162 = sphi 0, %s161
      %s176 = sphi 0, %s162
      %s180 = sphi 0, %s180
      %s182 = sphi 0, %s180
      %s183 = sphi 0, %s182
      %s197 = sphi 0, %s183
      %s201 = sphi 0, %s201
      %s203 = sphi 0, %s201
      %s204 = sphi 0, %s203
      %s218 = sphi 0, %s204
      %s222 = sphi 0, %s222
      %s224 = sphi 0, %s222
      %s225 = sphi 0, %s224
      %s239 = sphi 0, %s225
      %s243 = sphi 0, %s243
      %s245 = sphi 0, %s243
      %s246 = sphi 0, %s245
      %s260 = sphi 0, %s246
      %s264 = sphi 0, %s264
      %s266 = sphi 0, %s264
      %s267 = sphi 0, %s266
      %s281 = sphi 0, %s267
      %s285 = sphi 0, %s285
      %s287 = sphi 0, %s285
      %s288 = sphi 0, %s287
      %s302 = sphi 0, %s288
      %s306 = sphi 0, %s306
      %s308 = sphi 0, %s306
      %s309 = sphi 0, %s308
      %s323 = sphi 0, %s309
      %s327 = sphi 0, %s327
      %s329 = sphi 0, %s327
      %s330 = sphi 0, %s329
      %s344 = sphi 0, %s330
      %s350 = sphi 0, %s352
      %s353 = sphi 0, %s350
      %s354 = sphi 0, %s353
      %s370 = sphi 0, %s354
      %s376 = sphi 0, %s378
      %s379 = sphi 0, %s376
      %s380 = sphi 0, %s379
      %s396 = sphi 0, %s380
    $region4: #{tpu_custom_call.1} parent=1 // loop_header_branch
      %39 = sbr.rel (%p37) target = $region8
    $region5: #{tpu_custom_call.1} parent=1 // loop_body
      %s41 = ssub.s32 %s36, 1
      %s42 = ssub.s32 %s36, 2
      %s43 = sadd.s32 %s36, 1
      %s44 = ssub.s32 %s36, %s43
      %p45 = scmp.eq.s32.totalorder %s44, 0
      %s47 = sadd.s32 %s46, 1
      %s48 = scalar_select %p45, %s46, %s47
      %p51 = pneg %p45
      %p52 = scmp.eq.s32.totalorder %s36, 1
      %p53 = por %p51, %p52
      %p54 = scmp.ne.s32.totalorder %s46, %s49
      %p55 = scmp.eq.s32.totalorder %s36, 0
      %p56 = por %p54, %p55
      %p57 = scmp.ne.s32.totalorder %s46, %s49
      %p58 = scmp.eq.s32.totalorder %s41, 1
      %p59 = por %p57, %p58
      %p60 = scmp.ne.s32.totalorder %s49, %s50
      %p61 = scmp.eq.s32.totalorder %s41, 0
      %p62 = por %p60, %p61
      %p63 = scmp.ne.s32.totalorder %s49, %s50
      %p64 = scmp.eq.s32.totalorder %s42, 1
      %p65 = por %p63, %p64
      %p67 = scmp.ne.s32.totalorder %s50, %s66
      %p68 = scmp.eq.s32.totalorder %s42, 0
      %p69 = por %p67, %p68
      %s70 = ssub.s32 %s36, %s43
      %p71 = scmp.eq.s32.totalorder %s70, 0
      %s73 = sadd.s32 %s72, 1
      %s74 = scalar_select %p71, %s72, %s73
      %p77 = pneg %p71
      %p78 = scmp.eq.s32.totalorder %s36, 1
      %p79 = por %p77, %p78
      %p80 = scmp.ne.s32.totalorder %s72, %s75
      %p81 = scmp.eq.s32.totalorder %s36, 0
      %p82 = por %p80, %p81
      %p83 = scmp.ne.s32.totalorder %s72, %s75
      %p84 = scmp.eq.s32.totalorder %s41, 1
      %p85 = por %p83, %p84
      %p86 = scmp.ne.s32.totalorder %s75, %s76
      %p87 = scmp.eq.s32.totalorder %s41, 0
      %p88 = por %p86, %p87
      %p89 = scmp.ne.s32.totalorder %s75, %s76
      %p90 = scmp.eq.s32.totalorder %s42, 1
      %p91 = por %p89, %p90
      %p93 = scmp.ne.s32.totalorder %s76, %s92
      %p94 = scmp.eq.s32.totalorder %s42, 0
      %p95 = por %p93, %p94
      %s97 = sadd.s32 %s96, 1
      %p100 = scmp.eq.s32.totalorder %s36, 1
      %p101 = scmp.ne.s32.totalorder %s96, %s98
      %p102 = scmp.eq.s32.totalorder %s36, 0
      %p103 = por %p101, %p102
      %p104 = scmp.ne.s32.totalorder %s96, %s98
      %p105 = scmp.eq.s32.totalorder %s41, 1
      %p106 = por %p104, %p105
      %p107 = scmp.ne.s32.totalorder %s98, %s99
      %p108 = scmp.eq.s32.totalorder %s41, 0
      %p109 = por %p107, %p108
      %p110 = scmp.ne.s32.totalorder %s98, %s99
      %p111 = scmp.eq.s32.totalorder %s42, 1
      %p112 = por %p110, %p111
      %p114 = scmp.ne.s32.totalorder %s99, %s113
      %p115 = scmp.eq.s32.totalorder %s42, 0
      %p116 = por %p114, %p115
      %s118 = sadd.s32 %s117, 1
      %p121 = scmp.eq.s32.totalorder %s36, 1
      %p122 = scmp.ne.s32.totalorder %s117, %s119
      %p123 = scmp.eq.s32.totalorder %s36, 0
      %p124 = por %p122, %p123
      %p125 = scmp.ne.s32.totalorder %s117, %s119
      %p126 = scmp.eq.s32.totalorder %s41, 1
      %p127 = por %p125, %p126
      %p128 = scmp.ne.s32.totalorder %s119, %s120
      %p129 = scmp.eq.s32.totalorder %s41, 0
      %p130 = por %p128, %p129
      %p131 = scmp.ne.s32.totalorder %s119, %s120
      %p132 = scmp.eq.s32.totalorder %s42, 1
      %p133 = por %p131, %p132
      %p135 = scmp.ne.s32.totalorder %s120, %s134
      %p136 = scmp.eq.s32.totalorder %s42, 0
      %p137 = por %p135, %p136
      %s139 = sadd.s32 %s138, 1
      %p142 = scmp.eq.s32.totalorder %s36, 1
      %p143 = scmp.ne.s32.totalorder %s138, %s140
      %p144 = scmp.eq.s32.totalorder %s36, 0
      %p145 = por %p143, %p144
      %p146 = scmp.ne.s32.totalorder %s138, %s140
      %p147 = scmp.eq.s32.totalorder %s41, 1
      %p148 = por %p146, %p147
      %p149 = scmp.ne.s32.totalorder %s140, %s141
      %p150 = scmp.eq.s32.totalorder %s41, 0
      %p151 = por %p149, %p150
      %p152 = scmp.ne.s32.totalorder %s140, %s141
      %p153 = scmp.eq.s32.totalorder %s42, 1
      %p154 = por %p152, %p153
      %p156 = scmp.ne.s32.totalorder %s141, %s155
      %p157 = scmp.eq.s32.totalorder %s42, 0
      %p158 = por %p156, %p157
      %s160 = sadd.s32 %s159, 1
      %p163 = scmp.eq.s32.totalorder %s36, 1
      %p164 = scmp.ne.s32.totalorder %s159, %s161
      %p165 = scmp.eq.s32.totalorder %s36, 0
      %p166 = por %p164, %p165
      %p167 = scmp.ne.s32.totalorder %s159, %s161
      %p168 = scmp.eq.s32.totalorder %s41, 1
      %p169 = por %p167, %p168
      %p170 = scmp.ne.s32.totalorder %s161, %s162
      %p171 = scmp.eq.s32.totalorder %s41, 0
      %p172 = por %p170, %p171
      %p173 = scmp.ne.s32.totalorder %s161, %s162
      %p174 = scmp.eq.s32.totalorder %s42, 1
      %p175 = por %p173, %p174
      %p177 = scmp.ne.s32.totalorder %s162, %s176
      %p178 = scmp.eq.s32.totalorder %s42, 0
      %p179 = por %p177, %p178
      %s181 = sadd.s32 %s180, 1
      %p184 = scmp.eq.s32.totalorder %s36, 1
      %p185 = scmp.ne.s32.totalorder %s180, %s182
      %p186 = scmp.eq.s32.totalorder %s36, 0
      %p187 = por %p185, %p186
      %p188 = scmp.ne.s32.totalorder %s180, %s182
      %p189 = scmp.eq.s32.totalorder %s41, 1
      %p190 = por %p188, %p189
      %p191 = scmp.ne.s32.totalorder %s182, %s183
      %p192 = scmp.eq.s32.totalorder %s41, 0
      %p193 = por %p191, %p192
      %p194 = scmp.ne.s32.totalorder %s182, %s183
      %p195 = scmp.eq.s32.totalorder %s42, 1
      %p196 = por %p194, %p195
      %p198 = scmp.ne.s32.totalorder %s183, %s197
      %p199 = scmp.eq.s32.totalorder %s42, 0
      %p200 = por %p198, %p199
      %s202 = sadd.s32 %s201, 1
      %p205 = scmp.eq.s32.totalorder %s36, 1
      %p206 = scmp.ne.s32.totalorder %s201, %s203
      %p207 = scmp.eq.s32.totalorder %s36, 0
      %p208 = por %p206, %p207
      %p209 = scmp.ne.s32.totalorder %s201, %s203
      %p210 = scmp.eq.s32.totalorder %s41, 1
      %p211 = por %p209, %p210
      %p212 = scmp.ne.s32.totalorder %s203, %s204
      %p213 = scmp.eq.s32.totalorder %s41, 0
      %p214 = por %p212, %p213
      %p215 = scmp.ne.s32.totalorder %s203, %s204
      %p216 = scmp.eq.s32.totalorder %s42, 1
      %p217 = por %p215, %p216
      %p219 = scmp.ne.s32.totalorder %s204, %s218
      %p220 = scmp.eq.s32.totalorder %s42, 0
      %p221 = por %p219, %p220
      %s223 = sadd.s32 %s222, 1
      %p226 = scmp.eq.s32.totalorder %s36, 1
      %p227 = scmp.ne.s32.totalorder %s222, %s224
      %p228 = scmp.eq.s32.totalorder %s36, 0
      %p229 = por %p227, %p228
      %p230 = scmp.ne.s32.totalorder %s222, %s224
      %p231 = scmp.eq.s32.totalorder %s41, 1
      %p232 = por %p230, %p231
      %p233 = scmp.ne.s32.totalorder %s224, %s225
      %p234 = scmp.eq.s32.totalorder %s41, 0
      %p235 = por %p233, %p234
      %p236 = scmp.ne.s32.totalorder %s224, %s225
      %p237 = scmp.eq.s32.totalorder %s42, 1
      %p238 = por %p236, %p237
      %p240 = scmp.ne.s32.totalorder %s225, %s239
      %p241 = scmp.eq.s32.totalorder %s42, 0
      %p242 = por %p240, %p241
      %s244 = sadd.s32 %s243, 1
      %p247 = scmp.eq.s32.totalorder %s36, 1
      %p248 = scmp.ne.s32.totalorder %s243, %s245
      %p249 = scmp.eq.s32.totalorder %s36, 0
      %p250 = por %p248, %p249
      %p251 = scmp.ne.s32.totalorder %s243, %s245
      %p252 = scmp.eq.s32.totalorder %s41, 1
      %p253 = por %p251, %p252
      %p254 = scmp.ne.s32.totalorder %s245, %s246
      %p255 = scmp.eq.s32.totalorder %s41, 0
      %p256 = por %p254, %p255
      %p257 = scmp.ne.s32.totalorder %s245, %s246
      %p258 = scmp.eq.s32.totalorder %s42, 1
      %p259 = por %p257, %p258
      %p261 = scmp.ne.s32.totalorder %s246, %s260
      %p262 = scmp.eq.s32.totalorder %s42, 0
      %p263 = por %p261, %p262
      %s265 = sadd.s32 %s264, 1
      %p268 = scmp.eq.s32.totalorder %s36, 1
      %p269 = scmp.ne.s32.totalorder %s264, %s266
      %p270 = scmp.eq.s32.totalorder %s36, 0
      %p271 = por %p269, %p270
      %p272 = scmp.ne.s32.totalorder %s264, %s266
      %p273 = scmp.eq.s32.totalorder %s41, 1
      %p274 = por %p272, %p273
      %p275 = scmp.ne.s32.totalorder %s266, %s267
      %p276 = scmp.eq.s32.totalorder %s41, 0
      %p277 = por %p275, %p276
      %p278 = scmp.ne.s32.totalorder %s266, %s267
      %p279 = scmp.eq.s32.totalorder %s42, 1
      %p280 = por %p278, %p279
      %p282 = scmp.ne.s32.totalorder %s267, %s281
      %p283 = scmp.eq.s32.totalorder %s42, 0
      %p284 = por %p282, %p283
      %s286 = sadd.s32 %s285, 1
      %p289 = scmp.eq.s32.totalorder %s36, 1
      %p290 = scmp.ne.s32.totalorder %s285, %s287
      %p291 = scmp.eq.s32.totalorder %s36, 0
      %p292 = por %p290, %p291
      %p293 = scmp.ne.s32.totalorder %s285, %s287
      %p294 = scmp.eq.s32.totalorder %s41, 1
      %p295 = por %p293, %p294
      %p296 = scmp.ne.s32.totalorder %s287, %s288
      %p297 = scmp.eq.s32.totalorder %s41, 0
      %p298 = por %p296, %p297
      %p299 = scmp.ne.s32.totalorder %s287, %s288
      %p300 = scmp.eq.s32.totalorder %s42, 1
      %p301 = por %p299, %p300
      %p303 = scmp.ne.s32.totalorder %s288, %s302
      %p304 = scmp.eq.s32.totalorder %s42, 0
      %p305 = por %p303, %p304
      %s307 = sadd.s32 %s306, 1
      %p310 = scmp.eq.s32.totalorder %s36, 1
      %p311 = scmp.ne.s32.totalorder %s306, %s308
      %p312 = scmp.eq.s32.totalorder %s36, 0
      %p313 = por %p311, %p312
      %p314 = scmp.ne.s32.totalorder %s306, %s308
      %p315 = scmp.eq.s32.totalorder %s41, 1
      %p316 = por %p314, %p315
      %p317 = scmp.ne.s32.totalorder %s308, %s309
      %p318 = scmp.eq.s32.totalorder %s41, 0
      %p319 = por %p317, %p318
      %p320 = scmp.ne.s32.totalorder %s308, %s309
      %p321 = scmp.eq.s32.totalorder %s42, 1
      %p322 = por %p320, %p321
      %p324 = scmp.ne.s32.totalorder %s309, %s323
      %p325 = scmp.eq.s32.totalorder %s42, 0
      %p326 = por %p324, %p325
      %s328 = sadd.s32 %s327, 1
      %p331 = scmp.eq.s32.totalorder %s36, 1
      %p332 = scmp.ne.s32.totalorder %s327, %s329
      %p333 = scmp.eq.s32.totalorder %s36, 0
      %p334 = por %p332, %p333
      %p335 = scmp.ne.s32.totalorder %s327, %s329
      %p336 = scmp.eq.s32.totalorder %s41, 1
      %p337 = por %p335, %p336
      %p338 = scmp.ne.s32.totalorder %s329, %s330
      %p339 = scmp.eq.s32.totalorder %s41, 0
      %p340 = por %p338, %p339
      %p341 = scmp.ne.s32.totalorder %s329, %s330
      %p342 = scmp.eq.s32.totalorder %s42, 1
      %p343 = por %p341, %p342
      %p345 = scmp.ne.s32.totalorder %s330, %s344
      %p346 = scmp.eq.s32.totalorder %s42, 0
      %p347 = por %p345, %p346
      %s348 = ssub.s32 %s36, %s43
      %p349 = scmp.eq.s32.totalorder %s348, 0
      %s351 = sadd.s32 %s350, 1
      %s352 = scalar_select %p349, %s350, %s351
      %p355 = pneg %p349
      %p356 = scmp.eq.s32.totalorder %s36, 1
      %p357 = por %p355, %p356
      %p358 = scmp.ne.s32.totalorder %s350, %s353
      %p359 = scmp.eq.s32.totalorder %s36, 0
      %p360 = por %p358, %p359
      %p361 = scmp.ne.s32.totalorder %s350, %s353
      %p362 = scmp.eq.s32.totalorder %s41, 1
      %p363 = por %p361, %p362
      %p364 = scmp.ne.s32.totalorder %s353, %s354
      %p365 = scmp.eq.s32.totalorder %s41, 0
      %p366 = por %p364, %p365
      %p367 = scmp.ne.s32.totalorder %s353, %s354
      %p368 = scmp.eq.s32.totalorder %s42, 1
      %p369 = por %p367, %p368
      %p371 = scmp.ne.s32.totalorder %s354, %s370
      %p372 = scmp.eq.s32.totalorder %s42, 0
      %p373 = por %p371, %p372
      %s374 = ssub.s32 %s36, %s43
      %p375 = scmp.eq.s32.totalorder %s374, 0
      %s377 = sadd.s32 %s376, 1
      %s378 = scalar_select %p375, %s376, %s377
      %p381 = pneg %p375
      %p382 = scmp.eq.s32.totalorder %s36, 1
      %p383 = por %p381, %p382
      %p384 = scmp.ne.s32.totalorder %s376, %s379
      %p385 = scmp.eq.s32.totalorder %s36, 0
      %p386 = por %p384, %p385
      %p387 = scmp.ne.s32.totalorder %s376, %s379
      %p388 = scmp.eq.s32.totalorder %s41, 1
      %p389 = por %p387, %p388
      %p390 = scmp.ne.s32.totalorder %s379, %s380
      %p391 = scmp.eq.s32.totalorder %s41, 0
      %p392 = por %p390, %p391
      %p393 = scmp.ne.s32.totalorder %s379, %s380
      %p394 = scmp.eq.s32.totalorder %s42, 1
      %p395 = por %p393, %p394
      %p397 = scmp.ne.s32.totalorder %s380, %s396
      %p398 = scmp.eq.s32.totalorder %s42, 0
      %p399 = por %p397, %p398
      %p400 = scmp.le.s32.totalorder 1, %s36
      %p401 = scmp.lt.s32.totalorder %s36, 3
      %p402 = pnand %p400, %p401
      %p403 = pneg %p402
      // Predicated region
      $region9: #{tpu_custom_call.1} parent=5 // pred_check
        _
      $region10: #{tpu_custom_call.1} parent=5 // pred_check_branch
        %405 = sbr.rel (%p402) target = $region12
      $region11: #{tpu_custom_call.1} parent=5 // pred_region
        %s406 = ssub.s32 %s36, 1
        // Predicated region
        $region13: #{tpu_custom_call.1} parent=11 // pred_check
          %p407 = pneg %p109
        $region14: #{tpu_custom_call.1} parent=11 // pred_check_branch
          %409 = sbr.rel (%p407) target = $region16
        $region15: #{tpu_custom_call.1} parent=11 // pred_region
          _
        $region16: #{tpu_custom_call.1} parent=11 // pred_fallthru
          _
        // Predicated region
        $region17: #{tpu_custom_call.1} parent=11 // pred_check
          %p410 = pneg %p130
        $region18: #{tpu_custom_call.1} parent=11 // pred_check_branch
          %412 = sbr.rel (%p410) target = $region20
        $region19: #{tpu_custom_call.1} parent=11 // pred_region
          _
        $region20: #{tpu_custom_call.1} parent=11 // pred_fallthru
          _
        // Predicated region
        $region21: #{tpu_custom_call.1} parent=11 // pred_check
          %p413 = pneg %p151
        $region22: #{tpu_custom_call.1} parent=11 // pred_check_branch
          %415 = sbr.rel (%p413) target = $region24
        $region23: #{tpu_custom_call.1} parent=11 // pred_region
          %s417 = ssub.s32 1024, 1024
          %418 = vsyncadd [#allocation6], %s417
          %s419 = sshll.u32 [#allocation7], 4
          %s420 = int_to_ptr.vmem [resolvable:$true] %s419
          %425 = dma.hbm_to_vmem [thread:$0]  %s4, 1024, %s420, [#allocation6], 64, 64, 4
        $region24: #{tpu_custom_call.1} parent=11 // pred_fallthru
          _
        // Predicated region
        $region25: #{tpu_custom_call.1} parent=11 // pred_check
          %p426 = pneg %p172
        $region26: #{tpu_custom_call.1} parent=11 // pred_check_branch
          %428 = sbr.rel (%p426) target = $region28
        $region27: #{tpu_custom_call.1} parent=11 // pred_region
          _
        $region28: #{tpu_custom_call.1} parent=11 // pred_fallthru
          _
        // Predicated region
        $region29: #{tpu_custom_call.1} parent=11 // pred_check
          %p429 = pneg %p193
        $region30: #{tpu_custom_call.1} parent=11 // pred_check_branch
          %431 = sbr.rel (%p429) target = $region32
        $region31: #{tpu_custom_call.1} parent=11 // pred_region
          %s433 = ssub.s32 1024, 1024
          %434 = vsyncadd [#allocation9], %s433
          %s435 = sshll.u32 [#allocation8], 4
          %s436 = int_to_ptr.vmem [resolvable:$true] %s435
          %441 = dma.hbm_to_vmem [thread:$0]  %s6, 1024, %s436, [#allocation9], 64, 64, 4
        $region32: #{tpu_custom_call.1} parent=11 // pred_fallthru
          _
        // Predicated region
        $region33: #{tpu_custom_call.1} parent=11 // pred_check
          %p442 = pneg %p214
        $region34: #{tpu_custom_call.1} parent=11 // pred_check_branch
          %444 = sbr.rel (%p442) target = $region36
        $region35: #{tpu_custom_call.1} parent=11 // pred_region
          _
        $region36: #{tpu_custom_call.1} parent=11 // pred_fallthru
          _
        // Predicated region
        $region37: #{tpu_custom_call.1} parent=11 // pred_check
          %p445 = pneg %p235
        $region38: #{tpu_custom_call.1} parent=11 // pred_check_branch
          %447 = sbr.rel (%p445) target = $region40
        $region39: #{tpu_custom_call.1} parent=11 // pred_region
          _
        $region40: #{tpu_custom_call.1} parent=11 // pred_fallthru
          _
        // Predicated region
        $region41: #{tpu_custom_call.1} parent=11 // pred_check
          %p448 = pneg %p256
        $region42: #{tpu_custom_call.1} parent=11 // pred_check_branch
          %450 = sbr.rel (%p448) target = $region44
        $region43: #{tpu_custom_call.1} parent=11 // pred_region
          _
        $region44: #{tpu_custom_call.1} parent=11 // pred_fallthru
          _
        // Predicated region
        $region45: #{tpu_custom_call.1} parent=11 // pred_check
          %p451 = pneg %p277
        $region46: #{tpu_custom_call.1} parent=11 // pred_check_branch
          %453 = sbr.rel (%p451) target = $region48
        $region47: #{tpu_custom_call.1} parent=11 // pred_region
          %s455 = ssub.s32 8192, 8192
          %456 = vsyncadd [#allocation9], %s455
          %s457 = sshll.u32 [#allocation10], 4
          %s458 = int_to_ptr.vmem [resolvable:$true] %s457
          %463 = dma.hbm_to_vmem [thread:$0]  %s10, 8192, %s458, [#allocation9], 512, 512, 32
        $region48: #{tpu_custom_call.1} parent=11 // pred_fallthru
          _
        // Predicated region
        $region49: #{tpu_custom_call.1} parent=11 // pred_check
          %p464 = pneg %p298
        $region50: #{tpu_custom_call.1} parent=11 // pred_check_branch
          %466 = sbr.rel (%p464) target = $region52
        $region51: #{tpu_custom_call.1} parent=11 // pred_region
          _
        $region52: #{tpu_custom_call.1} parent=11 // pred_fallthru
          _
        // Predicated region
        $region53: #{tpu_custom_call.1} parent=11 // pred_check
          %p467 = pneg %p319
        $region54: #{tpu_custom_call.1} parent=11 // pred_check_branch
          %469 = sbr.rel (%p467) target = $region56
        $region55: #{tpu_custom_call.1} parent=11 // pred_region
          %s471 = ssub.s32 8192, 8192
          %472 = vsyncadd [#allocation12], %s471
          %s473 = sshll.u32 [#allocation11], 4
          %s474 = int_to_ptr.vmem [resolvable:$true] %s473
          %479 = dma.hbm_to_vmem [thread:$0]  %s12, 8192, %s474, [#allocation12], 64, 64, 4
        $region56: #{tpu_custom_call.1} parent=11 // pred_fallthru
          _
        // Predicated region
        $region57: #{tpu_custom_call.1} parent=11 // pred_check
          %p480 = pneg %p340
        $region58: #{tpu_custom_call.1} parent=11 // pred_check_branch
          %482 = sbr.rel (%p480) target = $region60
        $region59: #{tpu_custom_call.1} parent=11 // pred_region
          _
        $region60: #{tpu_custom_call.1} parent=11 // pred_fallthru
          _
      $region12: #{tpu_custom_call.1} parent=5 // pred_fallthru
        _
      %p483 = scmp.lt.s32.totalorder %s36, 2
      // Predicated region
      $region61: #{tpu_custom_call.1} parent=5 // pred_check
        %p484 = pneg %p483
      $region62: #{tpu_custom_call.1} parent=5 // pred_check_branch
        %486 = sbr.rel (%p484) target = $region64
      $region63: #{tpu_custom_call.1} parent=5 // pred_region
        // Predicated region
        $region65: #{tpu_custom_call.1} parent=63 // pred_check
          %p487 = pneg %p56
        $region66: #{tpu_custom_call.1} parent=63 // pred_check_branch
          %489 = sbr.rel (%p487) target = $region68
        $region67: #{tpu_custom_call.1} parent=63 // pred_region
          %s490 = sand.u32 %s46, 1
          %s491 = scalar_lea.sflag [#allocation3], %s490
          %s492 = sand.u32 %s46, 1
          %s493 = smul.addr %s492, 8
          %s494 = scalar_lea.vmem [#allocation2], %s493
          %s496 = ssub.s32 128, 128
          %497 = vsyncadd %s491, %s496
          %s498 = smul.addr %s36, 128
          %s499 = scalar_lea.hbm %s0, %s498
          %s501 = sshll.u32 %s494, 4
          %s502 = int_to_ptr.vmem [resolvable:$true] %s501
          %504 = dma.hbm_to_vmem [thread:$0]  %s499, 128, %s502, %s491
        $region68: #{tpu_custom_call.1} parent=63 // pred_fallthru
          _
        // Predicated region
        $region69: #{tpu_custom_call.1} parent=63 // pred_check
          %p505 = pneg %p82
        $region70: #{tpu_custom_call.1} parent=63 // pred_check_branch
          %507 = sbr.rel (%p505) target = $region72
        $region71: #{tpu_custom_call.1} parent=63 // pred_region
          %s508 = sand.u32 %s36, 1
          %s509 = scalar_lea.sflag [#allocation6], %s508
          %s510 = sand.u32 %s72, 1
          %s511 = scalar_lea.vmem [#allocation5], %s510
          %s513 = ssub.s32 16, 16
          %514 = vsyncadd %s509, %s513
          %s515 = smul.addr %s36, 16
          %s516 = scalar_lea.hbm %s1, %s515
          %s518 = sshll.u32 %s511, 4
          %s519 = int_to_ptr.vmem [resolvable:$true] %s518
          %521 = dma.hbm_to_vmem [thread:$0]  %s516, 16, %s519, %s509
        $region72: #{tpu_custom_call.1} parent=63 // pred_fallthru
          _
      $region64: #{tpu_custom_call.1} parent=5 // pred_fallthru
        _
      %p522 = scmp.le.s32.totalorder 1, %s36
      %p523 = scmp.lt.s32.totalorder %s36, 3
      %p524 = pnand %p522, %p523
      %p525 = pneg %p524
      // Predicated region
      $region73: #{tpu_custom_call.1} parent=5 // pred_check
        _
      $region74: #{tpu_custom_call.1} parent=5 // pred_check_branch
        %527 = sbr.rel (%p524) target = $region76
      $region75: #{tpu_custom_call.1} parent=5 // pred_region
        %s528 = ssub.s32 %s36, 1
        %s529 = sand.u32 %s49, 1
        %s530 = scalar_lea.sflag [#allocation3], %s529
        %s531 = sand.u32 %s49, 1
        %s532 = smul.addr %s531, 8
        %s533 = scalar_lea.vmem [#allocation2], %s532
        // Predicated region
        $region77: #{tpu_custom_call.1} parent=75 // pred_check
          %p534 = pneg %p62
        $region78: #{tpu_custom_call.1} parent=75 // pred_check_branch
          %536 = sbr.rel (%p534) target = $region80
        $region79: #{tpu_custom_call.1} parent=75 // pred_region
          %537 = dma.done %s530, 128
        $region80: #{tpu_custom_call.1} parent=75 // pred_fallthru
          _
        %s538 = sand.u32 %s41, 1
        %s539 = scalar_lea.sflag [#allocation6], %s538
        %s540 = sand.u32 %s75, 1
        %s541 = scalar_lea.vmem [#allocation5], %s540
        // Predicated region
        $region81: #{tpu_custom_call.1} parent=75 // pred_check
          %p542 = pneg %p88
        $region82: #{tpu_custom_call.1} parent=75 // pred_check_branch
          %544 = sbr.rel (%p542) target = $region84
        $region83: #{tpu_custom_call.1} parent=75 // pred_region
          %545 = dma.done %s539, 16
        $region84: #{tpu_custom_call.1} parent=75 // pred_fallthru
          _
        // Predicated region
        $region85: #{tpu_custom_call.1} parent=75 // pred_check
          %p546 = pneg %p151
        $region86: #{tpu_custom_call.1} parent=75 // pred_check_branch
          %548 = sbr.rel (%p546) target = $region88
        $region87: #{tpu_custom_call.1} parent=75 // pred_region
          %549 = dma.done [#allocation6], 1024
        $region88: #{tpu_custom_call.1} parent=75 // pred_fallthru
          _
        // Predicated region
        $region89: #{tpu_custom_call.1} parent=75 // pred_check
          %p550 = pneg %p193
        $region90: #{tpu_custom_call.1} parent=75 // pred_check_branch
          %552 = sbr.rel (%p550) target = $region92
        $region91: #{tpu_custom_call.1} parent=75 // pred_region
          %553 = dma.done [#allocation9], 1024
        $region92: #{tpu_custom_call.1} parent=75 // pred_fallthru
          _
        // Predicated region
        $region93: #{tpu_custom_call.1} parent=75 // pred_check
          %p554 = pneg %p277
        $region94: #{tpu_custom_call.1} parent=75 // pred_check_branch
          %556 = sbr.rel (%p554) target = $region96
        $region95: #{tpu_custom_call.1} parent=75 // pred_region
          %557 = dma.done [#allocation9], 8192
        $region96: #{tpu_custom_call.1} parent=75 // pred_fallthru
          _
        // Predicated region
        $region97: #{tpu_custom_call.1} parent=75 // pred_check
          %p558 = pneg %p319
        $region98: #{tpu_custom_call.1} parent=75 // pred_check_branch
          %560 = sbr.rel (%p558) target = $region100
        $region99: #{tpu_custom_call.1} parent=75 // pred_region
          %561 = dma.done [#allocation12], 8192
        $region100: #{tpu_custom_call.1} parent=75 // pred_fallthru
          _
        %s562 = sand.u32 %s49, 1
        %s563 = scalar_lea.sflag [#allocation3], %s562
        %s564 = sand.u32 %s49, 1
        %s565 = smul.addr %s564, 8
        %s566 = scalar_lea.vmem [#allocation2], %s565
        %p567 = pneg %p62
        %p568 = pneg %p59
        %s569 = sand.u32 %s41, 1
        %s570 = scalar_lea.sflag [#allocation6], %s569
        %s571 = sand.u32 %s75, 1
        %s572 = scalar_lea.vmem [#allocation5], %s571
        %p573 = pneg %p88
        %p574 = pneg %p85
        %p575 = pneg %p109
        %p576 = pneg %p106
        %p577 = pneg %p130
        %p578 = pneg %p127
        %p579 = pneg %p151
        %p580 = pneg %p148
        %p581 = pneg %p172
        %p582 = pneg %p169
        %p583 = pneg %p193
        %p584 = pneg %p190
        %p585 = pneg %p214
        %p586 = pneg %p211
        %p587 = pneg %p235
        %p588 = pneg %p232
        %p589 = pneg %p256
        %p590 = pneg %p253
        %p591 = pneg %p277
        %p592 = pneg %p274
        %p593 = pneg %p298
        %p594 = pneg %p295
        %p595 = pneg %p319
        %p596 = pneg %p316
        %p597 = pneg %p340
        %p598 = pneg %p337
        %p599 = pneg %p366
        %p600 = pneg %p363
        %s601 = sand.u32 %s353, 1
        %s602 = scalar_lea.sflag [#allocation4], %s601
        %s603 = sand.u32 %s353, 1
        %s604 = smul.addr %s603, 8
        %s605 = scalar_lea.vmem [#allocation13], %s604
        %p606 = pneg %p392
        %p607 = pneg %p389
        %s608 = sand.u32 %s379, 1
        %s609 = scalar_lea.sflag [#allocation15], %s608
        %s610 = sand.u32 %s379, 1
        %s611 = smul.addr %s610, 8
        %s612 = scalar_lea.vmem [#allocation14], %s611
        %v614 = vld [vmem:[%s533] sm:$0xff]
        %v615 = vld [vmem:[%s541] sm:$0x1]
        %v616 = vsub.f32 %v615, 1.0
        %v617 = vmul.f32 %v616, 1e+09
        %618 = vadd.xlane.f32.xlu0 %v614
        %v619 = vpop.xlane.xlu0 %618
        %v620 = vrcp.pop 128.0
        %v621 = vmul.f32 %v619, %v620
        %v622 = vsub.f32 %v614, %v621
        %v623 = vmul.f32 %v622, %v622
        %624 = vadd.xlane.f32.xlu0 %v623
        %v625 = vpop.xlane.xlu0 %624
        %v626 = vmul.f32 %v625, %v620
        %v627 = vadd.f32 %v626, 1e-05
        %v628 = vrsqrt.pop %v627
        %v629 = vmul.f32 %v622, %v628
        %v630 = vld [vmem:[%s2] sm:$0x1]
        %v632 = vlaneseq
        %v633 = vshrl.u32 %v632, 7
        %v634 = vsub.s32 0, %v633
        %v635 = vrot.slane %v630, %v634
        %v637 = vmul.f32 %v629, %v635
        %v638 = vld [vmem:[%s3] sm:$0x1]
        %v640 = vlaneseq
        %v641 = vshrl.u32 %v640, 7
        %v642 = vsub.s32 0, %v641
        %v643 = vrot.slane %v638, %v642
        %v645 = vadd.f32 %v637, %v643
        %v646 = vpack.c.bf16 %v645, %v645
        %v647 = vld [vmem:[#allocation7] sm:$0xf]
        %v648 = vld [vmem:[#allocation7 + $0x4] sm:$0xf]
        %v649 = vld [vmem:[#allocation7 + $0x8] sm:$0xf]
        %v650 = vld [vmem:[#allocation7 + $0xc] sm:$0xf]
        %v651 = vld [vmem:[#allocation7 + $0x10] sm:$0xf]
        %v652 = vld [vmem:[#allocation7 + $0x14] sm:$0xf]
        %v653 = vld [vmem:[#allocation7 + $0x18] sm:$0xf]
        %v654 = vld [vmem:[#allocation7 + $0x1c] sm:$0xf]
        %v655 = vld [vmem:[#allocation7 + $0x20] sm:$0xf]
        %v656 = vld [vmem:[#allocation7 + $0x24] sm:$0xf]
        %v657 = vld [vmem:[#allocation7 + $0x28] sm:$0xf]
        %v658 = vld [vmem:[#allocation7 + $0x2c] sm:$0xf]
        %v659 = vld [vmem:[#allocation7 + $0x30] sm:$0xf]
        %v660 = vld [vmem:[#allocation7 + $0x34] sm:$0xf]
        %v661 = vld [vmem:[#allocation7 + $0x38] sm:$0xf]
        %v662 = vld [vmem:[#allocation7 + $0x3c] sm:$0xf]
        %v663 = vld [vmem:[%s5] sm:$0x1]
        %v665 = vlaneseq
        %v666 = vshrl.u32 %v665, 7
        %v667 = vsub.s32 0, %v666
        %v668 = vrot.slane %v663, %v667
        %v686 = vunpack.c.l.b16 %v647
        %v687 = vunpack.c.l.b16 %v648
        %v688 = vunpack.c.l.b16 %v649
        %v689 = vunpack.c.l.b16 %v650
        %v690 = vunpack.c.l.b16 %v651
        %v691 = vunpack.c.l.b16 %v652
        %v692 = vunpack.c.l.b16 %v653
        %v693 = vunpack.c.l.b16 %v654
        %v694 = vunpack.c.l.b16 %v655
        %v695 = vunpack.c.l.b16 %v656
        %v696 = vunpack.c.l.b16 %v657
        %v697 = vunpack.c.l.b16 %v658
        %v698 = vunpack.c.l.b16 %v659
        %v699 = vunpack.c.l.b16 %v660
        %v700 = vunpack.c.l.b16 %v661
        %v701 = vunpack.c.l.b16 %v662
        %v702 = vpack.c.b16 %v687, %v686
        %v703 = vpack.c.b16 %v689, %v688
        %v704 = vpack.c.b16 %v691, %v690
        %v705 = vpack.c.b16 %v693, %v692
        %v706 = vpack.c.b16 %v695, %v694
        %v707 = vpack.c.b16 %v697, %v696
        %v708 = vpack.c.b16 %v699, %v698
        %v709 = vpack.c.b16 %v701, %v700
        %718 = vmatprep.subr.bf16.mxu0 0
        %719 = vmatpush1.bf16.msra.mxu0 %v709
        %720 = vmatprep.subr.bf16.mxu0 0
        %721 = vmatpush1.bf16.msra.mxu0 %v708
        %722 = vmatprep.subr.bf16.mxu0 0
        %723 = vmatpush1.bf16.msra.mxu0 %v707
        %724 = vmatprep.subr.bf16.mxu0 0
        %725 = vmatpush1.bf16.msra.mxu0 %v706
        %726 = vmatprep.subr.bf16.mxu0 0
        %727 = vmatpush1.bf16.msra.mxu0 %v705
        %728 = vmatprep.subr.bf16.mxu0 0
        %729 = vmatpush1.bf16.msra.mxu0 %v704
        %730 = vmatprep.subr.bf16.mxu0 0
        %731 = vmatpush1.bf16.msra.mxu0 %v703
        %732 = vmatprep.subr.bf16.mxu0 0
        %733 = vmatpush1.bf16.msra.mxu0 %v702
        %734 = vmatprep.subr.bf16.mxu0 0
        %735 = vmatpush2.bf16.msra.mxu0 0
        %736 = vmatprep.subr.bf16.mxu0 0
        %737 = vmatpush2.bf16.msra.mxu0 0
        %738 = vmatprep.subr.bf16.mxu0 0
        %739 = vmatpush2.bf16.msra.mxu0 0
        %740 = vmatprep.subr.bf16.mxu0 0
        %741 = vmatpush2.bf16.msra.mxu0 0
        %742 = vmatprep.subr.bf16.mxu0 0
        %743 = vmatpush2.bf16.msra.mxu0 0
        %744 = vmatprep.subr.bf16.mxu0 0
        %745 = vmatpush2.bf16.msra.mxu0 0
        %746 = vmatprep.subr.bf16.mxu0 0
        %747 = vmatpush2.bf16.msra.mxu0 0
        %748 = vmatprep.subr.bf16.mxu0 0
        %749 = vmatpush2.bf16.msra.mxu0 0
        %750 = vmatprep.mubr.bf16.mxu0 0
        %751 = vmatmul.mubr.bf16.gmra.mxu0 %v646
        %v752 = vpop.f32.mrf.mxu0
        %v753 = vadd.f32 %v668, %v752
        %v754 = vpop.f32.mrf.mxu0
        %v755 = vpop.f32.mrf.mxu0
        %v756 = vpop.f32.mrf.mxu0
        %757 = vdwg.mxu0
        %v758 = vpack.c.bf16 %v753, %v753
        %759 = vmatprep.subr.bf16.mxu0 0
        %760 = vmatpush1.bf16.xpose.msra.mxu0 0
        %761 = vmatprep.subr.bf16.mxu0 0
        %762 = vmatpush1.bf16.xpose.msra.mxu0 0
        %763 = vmatprep.subr.bf16.mxu0 0
        %764 = vmatpush1.bf16.xpose.msra.mxu0 0
        %765 = vmatprep.subr.bf16.mxu0 0
        %766 = vmatpush1.bf16.xpose.msra.mxu0 0
        %767 = vmatprep.subr.bf16.mxu0 0
        %768 = vmatpush1.bf16.xpose.msra.mxu0 0
        %769 = vmatprep.subr.bf16.mxu0 0
        %770 = vmatpush1.bf16.xpose.msra.mxu0 0
        %771 = vmatprep.subr.bf16.mxu0 0
        %772 = vmatpush1.bf16.xpose.msra.mxu0 0
        %773 = vmatprep.subr.bf16.mxu0 0
        %774 = vmatpush1.bf16.xpose.msra.mxu0 %v758
        %775 = vmatprep.subr.bf16.mxu0 0
        %776 = vmatpush2.bf16.xpose.msra.mxu0 0
        %777 = vmatprep.subr.bf16.mxu0 0
        %778 = vmatpush2.bf16.xpose.msra.mxu0 0
        %779 = vmatprep.subr.bf16.mxu0 0
        %780 = vmatpush2.bf16.xpose.msra.mxu0 0
        %781 = vmatprep.subr.bf16.mxu0 0
        %782 = vmatpush2.bf16.xpose.msra.mxu0 0
        %783 = vmatprep.subr.bf16.mxu0 0
        %784 = vmatpush2.bf16.xpose.msra.mxu0 0
        %785 = vmatprep.subr.bf16.mxu0 0
        %786 = vmatpush2.bf16.xpose.msra.mxu0 0
        %787 = vmatprep.subr.bf16.mxu0 0
        %788 = vmatpush2.bf16.xpose.msra.mxu0 0
        %789 = vmatprep.subr.bf16.mxu0 0
        %790 = vmatpush2.bf16.xpose.msra.mxu0 0
        %791 = vmatprep.mubr.bf16.mxu0 0
        %792 = vmatmul.mubr.bf16.gmra.mxu0 %v758
        %v793 = vpop.f32.mrf.mxu0
        %v794 = vadd.f32 0.0, %v793
        %v795 = vpop.f32.mrf.mxu0
        %v796 = vpop.f32.mrf.mxu0
        %v797 = vpop.f32.mrf.mxu0
        %798 = vdwg.mxu0
        %v799 = vmul.f32 %v794, 0.088388346
        %v801 = vlaneseq
        %v802 = vshrl.u32 %v801, 7
        %v803 = vsub.s32 0, %v802
        %v804 = vrot.slane %v617, %v803
        %v806 = vadd.f32 %v799, %v804
        %vm807 = vcmask 64512
        %v808 = vsel %vm807, %v806, -inf
        %809 = vmax.xlane.f32.xlu0 %v808
        %v810 = vpop.xlane.xlu0 %809
        %v811 = vsub.f32 %v806, %v810
        %v812 = vmul.f32 %v811, 1.442695
        %v813 = vpow.pop %v812
        %v814 = vsel %vm807, %v813, 0.0
        %815 = vadd.xlane.f32.xlu0 %v814
        %v816 = vpop.xlane.xlu0 %815
        %v817 = vrcp.pop %v816
        %v818 = vmul.f32 %v813, %v817
        %v819 = vpack.c.bf16 %v818, %v818
        %v821 = vsel %vm807, %v819, 0
        %vm823 = vcmask 1043456
        %v825 = vsel %vm823, %v758, 0
        %827 = vmatprep.subr.bf16.mxu0 0
        %828 = vmatpush1.bf16.msra.mxu0 0
        %829 = vmatprep.subr.bf16.mxu0 0
        %830 = vmatpush1.bf16.msra.mxu0 0
        %831 = vmatprep.subr.bf16.mxu0 0
        %832 = vmatpush1.bf16.msra.mxu0 0
        %833 = vmatprep.subr.bf16.mxu0 0
        %834 = vmatpush1.bf16.msra.mxu0 0
        %835 = vmatprep.subr.bf16.mxu0 0
        %836 = vmatpush1.bf16.msra.mxu0 0
        %837 = vmatprep.subr.bf16.mxu0 0
        %838 = vmatpush1.bf16.msra.mxu0 0
        %839 = vmatprep.subr.bf16.mxu0 0
        %840 = vmatpush1.bf16.msra.mxu0 0
        %841 = vmatprep.subr.bf16.mxu0 0
        %842 = vmatpush1.bf16.msra.mxu0 %v825
        %843 = vmatprep.subr.bf16.mxu0 0
        %844 = vmatpush2.bf16.msra.mxu0 0
        %845 = vmatprep.subr.bf16.mxu0 0
        %846 = vmatpush2.bf16.msra.mxu0 0
        %847 = vmatprep.subr.bf16.mxu0 0
        %848 = vmatpush2.bf16.msra.mxu0 0
        %849 = vmatprep.subr.bf16.mxu0 0
        %850 = vmatpush2.bf16.msra.mxu0 0
        %851 = vmatprep.subr.bf16.mxu0 0
        %852 = vmatpush2.bf16.msra.mxu0 0
        %853 = vmatprep.subr.bf16.mxu0 0
        %854 = vmatpush2.bf16.msra.mxu0 0
        %855 = vmatprep.subr.bf16.mxu0 0
        %856 = vmatpush2.bf16.msra.mxu0 0
        %857 = vmatprep.subr.bf16.mxu0 0
        %858 = vmatpush2.bf16.msra.mxu0 0
        %859 = vmatprep.mubr.bf16.mxu0 0
        %860 = vmatmul.mubr.bf16.gmra.mxu0 %v821
        %v861 = vpop.f32.mrf.mxu0
        %v862 = vadd.f32 0.0, %v861
        %v863 = vpop.f32.mrf.mxu0
        %v864 = vpop.f32.mrf.mxu0
        %v865 = vpop.f32.mrf.mxu0
        %866 = vdwg.mxu0
        %v867 = vpack.c.bf16 %v862, %v862
        %v868 = vld [vmem:[#allocation8] sm:$0xf]
        %v869 = vld [vmem:[#allocation8 + $0x4] sm:$0xf]
        %v870 = vld [vmem:[#allocation8 + $0x8] sm:$0xf]
        %v871 = vld [vmem:[#allocation8 + $0xc] sm:$0xf]
        %v872 = vld [vmem:[#allocation8 + $0x10] sm:$0xf]
        %v873 = vld [vmem:[#allocation8 + $0x14] sm:$0xf]
        %v874 = vld [vmem:[#allocation8 + $0x18] sm:$0xf]
        %v875 = vld [vmem:[#allocation8 + $0x1c] sm:$0xf]
        %v876 = vld [vmem:[#allocation8 + $0x20] sm:$0xf]
        %v877 = vld [vmem:[#allocation8 + $0x24] sm:$0xf]
        %v878 = vld [vmem:[#allocation8 + $0x28] sm:$0xf]
        %v879 = vld [vmem:[#allocation8 + $0x2c] sm:$0xf]
        %v880 = vld [vmem:[#allocation8 + $0x30] sm:$0xf]
        %v881 = vld [vmem:[#allocation8 + $0x34] sm:$0xf]
        %v882 = vld [vmem:[#allocation8 + $0x38] sm:$0xf]
        %v883 = vld [vmem:[#allocation8 + $0x3c] sm:$0xf]
        %v884 = vld [vmem:[%s7] sm:$0x1]
        %v886 = vlaneseq
        %v887 = vshrl.u32 %v886, 7
        %v888 = vsub.s32 0, %v887
        %v889 = vrot.slane %v884, %v888
        %v907 = vunpack.c.l.b16 %v868
        %v908 = vunpack.c.l.b16 %v869
        %v909 = vunpack.c.l.b16 %v870
        %v910 = vunpack.c.l.b16 %v871
        %v911 = vunpack.c.l.b16 %v872
        %v912 = vunpack.c.l.b16 %v873
        %v913 = vunpack.c.l.b16 %v874
        %v914 = vunpack.c.l.b16 %v875
        %v915 = vunpack.c.l.b16 %v876
        %v916 = vunpack.c.l.b16 %v877
        %v917 = vunpack.c.l.b16 %v878
        %v918 = vunpack.c.l.b16 %v879
        %v919 = vunpack.c.l.b16 %v880
        %v920 = vunpack.c.l.b16 %v881
        %v921 = vunpack.c.l.b16 %v882
        %v922 = vunpack.c.l.b16 %v883
        %v923 = vpack.c.b16 %v908, %v907
        %v924 = vpack.c.b16 %v910, %v909
        %v925 = vpack.c.b16 %v912, %v911
        %v926 = vpack.c.b16 %v914, %v913
        %v927 = vpack.c.b16 %v916, %v915
        %v928 = vpack.c.b16 %v918, %v917
        %v929 = vpack.c.b16 %v920, %v919
        %v930 = vpack.c.b16 %v922, %v921
        %939 = vmatprep.subr.bf16.mxu0 0
        %940 = vmatpush1.bf16.msra.mxu0 %v930
        %941 = vmatprep.subr.bf16.mxu0 0
        %942 = vmatpush1.bf16.msra.mxu0 %v929
        %943 = vmatprep.subr.bf16.mxu0 0
        %944 = vmatpush1.bf16.msra.mxu0 %v928
        %945 = vmatprep.subr.bf16.mxu0 0
        %946 = vmatpush1.bf16.msra.mxu0 %v927
        %947 = vmatprep.subr.bf16.mxu0 0
        %948 = vmatpush1.bf16.msra.mxu0 %v926
        %949 = vmatprep.subr.bf16.mxu0 0
        %950 = vmatpush1.bf16.msra.mxu0 %v925
        %951 = vmatprep.subr.bf16.mxu0 0
        %952 = vmatpush1.bf16.msra.mxu0 %v924
        %953 = vmatprep.subr.bf16.mxu0 0
        %954 = vmatpush1.bf16.msra.mxu0 %v923
        %955 = vmatprep.subr.bf16.mxu0 0
        %956 = vmatpush2.bf16.msra.mxu0 0
        %957 = vmatprep.subr.bf16.mxu0 0
        %958 = vmatpush2.bf16.msra.mxu0 0
        %959 = vmatprep.subr.bf16.mxu0 0
        %960 = vmatpush2.bf16.msra.mxu0 0
        %961 = vmatprep.subr.bf16.mxu0 0
        %962 = vmatpush2.bf16.msra.mxu0 0
        %963 = vmatprep.subr.bf16.mxu0 0
        %964 = vmatpush2.bf16.msra.mxu0 0
        %965 = vmatprep.subr.bf16.mxu0 0
        %966 = vmatpush2.bf16.msra.mxu0 0
        %967 = vmatprep.subr.bf16.mxu0 0
        %968 = vmatpush2.bf16.msra.mxu0 0
        %969 = vmatprep.subr.bf16.mxu0 0
        %970 = vmatpush2.bf16.msra.mxu0 0
        %971 = vmatprep.mubr.bf16.mxu0 0
        %972 = vmatmul.mubr.bf16.gmra.mxu0 %v867
        %v973 = vpop.f32.mrf.mxu0
        %v974 = vadd.f32 %v889, %v973
        %v975 = vpop.f32.mrf.mxu0
        %v976 = vpop.f32.mrf.mxu0
        %v977 = vpop.f32.mrf.mxu0
        %978 = vdwg.mxu0
        %v979 = vadd.f32 %v614, %v974
        %980 = vadd.xlane.f32.xlu0 %v979
        %v981 = vpop.xlane.xlu0 %980
        %v982 = vmul.f32 %v981, %v620
        %v983 = vsub.f32 %v979, %v982
        %v984 = vmul.f32 %v983, %v983
        %985 = vadd.xlane.f32.xlu0 %v984
        %v986 = vpop.xlane.xlu0 %985
        %v987 = vmul.f32 %v986, %v620
        %v988 = vadd.f32 %v987, 1e-05
        %v989 = vrsqrt.pop %v988
        %v990 = vmul.f32 %v983, %v989
        %v991 = vld [vmem:[%s8] sm:$0x1]
        %v993 = vlaneseq
        %v994 = vshrl.u32 %v993, 7
        %v995 = vsub.s32 0, %v994
        %v996 = vrot.slane %v991, %v995
        %v998 = vmul.f32 %v990, %v996
        %v999 = vld [vmem:[%s9] sm:$0x1]
        %v1001 = vlaneseq
        %v1002 = vshrl.u32 %v1001, 7
        %v1003 = vsub.s32 0, %v1002
        %v1004 = vrot.slane %v999, %v1003
        %v1006 = vadd.f32 %v998, %v1004
        %v1007 = vpack.c.bf16 %v1006, %v1006
        %1008 = vst.msk [vmem:[%s612] sm:$0xff] %vm807, %v818
        %v1009 = vld [vmem:[#allocation10] sm:$0xff]
        %v1010 = vld [vmem:[#allocation10 + $0x8] sm:$0xff]
        %v1011 = vld [vmem:[#allocation10 + $0x10] sm:$0xff]
        %v1012 = vld [vmem:[#allocation10 + $0x18] sm:$0xff]
        %v1013 = vld [vmem:[#allocation10 + $0x20] sm:$0xff]
        %v1014 = vld [vmem:[#allocation10 + $0x28] sm:$0xff]
        %v1015 = vld [vmem:[#allocation10 + $0x30] sm:$0xff]
        %v1016 = vld [vmem:[#allocation10 + $0x38] sm:$0xff]
        %v1017 = vld [vmem:[#allocation10 + $0x40] sm:$0xff]
        %v1018 = vld [vmem:[#allocation10 + $0x48] sm:$0xff]
        %v1019 = vld [vmem:[#allocation10 + $0x50] sm:$0xff]
        %v1020 = vld [vmem:[#allocation10 + $0x58] sm:$0xff]
        %v1021 = vld [vmem:[#allocation10 + $0x60] sm:$0xff]
        %v1022 = vld [vmem:[#allocation10 + $0x68] sm:$0xff]
        %v1023 = vld [vmem:[#allocation10 + $0x70] sm:$0xff]
        %v1024 = vld [vmem:[#allocation10 + $0x78] sm:$0xff]
        %v1025 = vld [vmem:[#allocation10 + $0x80] sm:$0xff]
        %v1026 = vld [vmem:[#allocation10 + $0x88] sm:$0xff]
        %v1027 = vld [vmem:[#allocation10 + $0x90] sm:$0xff]
        %v1028 = vld [vmem:[#allocation10 + $0x98] sm:$0xff]
        %v1029 = vld [vmem:[#allocation10 + $0xa0] sm:$0xff]
        %v1030 = vld [vmem:[#allocation10 + $0xa8] sm:$0xff]
        %v1031 = vld [vmem:[#allocation10 + $0xb0] sm:$0xff]
        %v1032 = vld [vmem:[#allocation10 + $0xb8] sm:$0xff]
        %v1033 = vld [vmem:[#allocation10 + $0xc0] sm:$0xff]
        %v1034 = vld [vmem:[#allocation10 + $0xc8] sm:$0xff]
        %v1035 = vld [vmem:[#allocation10 + $0xd0] sm:$0xff]
        %v1036 = vld [vmem:[#allocation10 + $0xd8] sm:$0xff]
        %v1037 = vld [vmem:[#allocation10 + $0xe0] sm:$0xff]
        %v1038 = vld [vmem:[#allocation10 + $0xe8] sm:$0xff]
        %v1039 = vld [vmem:[#allocation10 + $0xf0] sm:$0xff]
        %v1040 = vld [vmem:[#allocation10 + $0xf8] sm:$0xff]
        %v1041 = vld [vmem:[#allocation10 + $0x100] sm:$0xff]
        %v1042 = vld [vmem:[#allocation10 + $0x108] sm:$0xff]
        %v1043 = vld [vmem:[#allocation10 + $0x110] sm:$0xff]
        %v1044 = vld [vmem:[#allocation10 + $0x118] sm:$0xff]
        %v1045 = vld [vmem:[#allocation10 + $0x120] sm:$0xff]
        %v1046 = vld [vmem:[#allocation10 + $0x128] sm:$0xff]
        %v1047 = vld [vmem:[#allocation10 + $0x130] sm:$0xff]
        %v1048 = vld [vmem:[#allocation10 + $0x138] sm:$0xff]
        %v1049 = vld [vmem:[#allocation10 + $0x140] sm:$0xff]
        %v1050 = vld [vmem:[#allocation10 + $0x148] sm:$0xff]
        %v1051 = vld [vmem:[#allocation10 + $0x150] sm:$0xff]
        %v1052 = vld [vmem:[#allocation10 + $0x158] sm:$0xff]
        %v1053 = vld [vmem:[#allocation10 + $0x160] sm:$0xff]
        %v1054 = vld [vmem:[#allocation10 + $0x168] sm:$0xff]
        %v1055 = vld [vmem:[#allocation10 + $0x170] sm:$0xff]
        %v1056 = vld [vmem:[#allocation10 + $0x178] sm:$0xff]
        %v1057 = vld [vmem:[#allocation10 + $0x180] sm:$0xff]
        %v1058 = vld [vmem:[#allocation10 + $0x188] sm:$0xff]
        %v1059 = vld [vmem:[#allocation10 + $0x190] sm:$0xff]
        %v1060 = vld [vmem:[#allocation10 + $0x198] sm:$0xff]
        %v1061 = vld [vmem:[#allocation10 + $0x1a0] sm:$0xff]
        %v1062 = vld [vmem:[#allocation10 + $0x1a8] sm:$0xff]
        %v1063 = vld [vmem:[#allocation10 + $0x1b0] sm:$0xff]
        %v1064 = vld [vmem:[#allocation10 + $0x1b8] sm:$0xff]
        %v1065 = vld [vmem:[#allocation10 + $0x1c0] sm:$0xff]
        %v1066 = vld [vmem:[#allocation10 + $0x1c8] sm:$0xff]
        %v1067 = vld [vmem:[#allocation10 + $0x1d0] sm:$0xff]
        %v1068 = vld [vmem:[#allocation10 + $0x1d8] sm:$0xff]
        %v1069 = vld [vmem:[#allocation10 + $0x1e0] sm:$0xff]
        %v1070 = vld [vmem:[#allocation10 + $0x1e8] sm:$0xff]
        %v1071 = vld [vmem:[#allocation10 + $0x1f0] sm:$0xff]
        %v1072 = vld [vmem:[#allocation10 + $0x1f8] sm:$0xff]
        %v1073 = vld [vmem:[%s11] sm:$0xff]
        %v1075 = vlaneseq
        %v1076 = vshrl.u32 %v1075, 7
        %v1077 = vsub.s32 0, %v1076
        %v1078 = vrot.slane %v1073, %v1077
        %v1079 = vlaneseq
        %v1080 = vshrl.u32 %v1079, 7
        %v1081 = vsub.s32 1, %v1080
        %v1082 = vrot.slane %v1073, %v1081
        %v1083 = vlaneseq
        %v1084 = vshrl.u32 %v1083, 7
        %v1085 = vsub.s32 2, %v1084
        %v1086 = vrot.slane %v1073, %v1085
        %v1087 = vlaneseq
        %v1088 = vshrl.u32 %v1087, 7
        %v1089 = vsub.s32 3, %v1088
        %v1090 = vrot.slane %v1073, %v1089
        %v1091 = vlaneseq
        %v1092 = vshrl.u32 %v1091, 7
        %v1093 = vsub.s32 4, %v1092
        %v1094 = vrot.slane %v1073, %v1093
        %v1095 = vlaneseq
        %v1096 = vshrl.u32 %v1095, 7
        %v1097 = vsub.s32 5, %v1096
        %v1098 = vrot.slane %v1073, %v1097
        %v1099 = vlaneseq
        %v1100 = vshrl.u32 %v1099, 7
        %v1101 = vsub.s32 6, %v1100
        %v1102 = vrot.slane %v1073, %v1101
        %v1103 = vlaneseq
        %v1104 = vshrl.u32 %v1103, 7
        %v1105 = vsub.s32 7, %v1104
        %v1106 = vrot.slane %v1073, %v1105
        %v1179 = vunpack.c.l.b16 %v1009
        %v1180 = vunpack.c.h.b16 %v1009
        %v1181 = vunpack.c.l.b16 %v1010
        %v1182 = vunpack.c.h.b16 %v1010
        %v1183 = vunpack.c.l.b16 %v1011
        %v1184 = vunpack.c.h.b16 %v1011
        %v1185 = vunpack.c.l.b16 %v1012
        %v1186 = vunpack.c.h.b16 %v1012
        %v1187 = vunpack.c.l.b16 %v1013
        %v1188 = vunpack.c.h.b16 %v1013
        %v1189 = vunpack.c.l.b16 %v1014
        %v1190 = vunpack.c.h.b16 %v1014
        %v1191 = vunpack.c.l.b16 %v1015
        %v1192 = vunpack.c.h.b16 %v1015
        %v1193 = vunpack.c.l.b16 %v1016
        %v1194 = vunpack.c.h.b16 %v1016
        %v1195 = vunpack.c.l.b16 %v1017
        %v1196 = vunpack.c.h.b16 %v1017
        %v1197 = vunpack.c.l.b16 %v1018
        %v1198 = vunpack.c.h.b16 %v1018
        %v1199 = vunpack.c.l.b16 %v1019
        %v1200 = vunpack.c.h.b16 %v1019
        %v1201 = vunpack.c.l.b16 %v1020
        %v1202 = vunpack.c.h.b16 %v1020
        %v1203 = vunpack.c.l.b16 %v1021
        %v1204 = vunpack.c.h.b16 %v1021
        %v1205 = vunpack.c.l.b16 %v1022
        %v1206 = vunpack.c.h.b16 %v1022
        %v1207 = vunpack.c.l.b16 %v1023
        %v1208 = vunpack.c.h.b16 %v1023
        %v1209 = vunpack.c.l.b16 %v1024
        %v1210 = vunpack.c.h.b16 %v1024
        %v1211 = vunpack.c.l.b16 %v1025
        %v1212 = vunpack.c.h.b16 %v1025
        %v1213 = vunpack.c.l.b16 %v1026
        %v1214 = vunpack.c.h.b16 %v1026
        %v1215 = vunpack.c.l.b16 %v1027
        %v1216 = vunpack.c.h.b16 %v1027
        %v1217 = vunpack.c.l.b16 %v1028
        %v1218 = vunpack.c.h.b16 %v1028
        %v1219 = vunpack.c.l.b16 %v1029
        %v1220 = vunpack.c.h.b16 %v1029
        %v1221 = vunpack.c.l.b16 %v1030
        %v1222 = vunpack.c.h.b16 %v1030
        %v1223 = vunpack.c.l.b16 %v1031
        %v1224 = vunpack.c.h.b16 %v1031
        %v1225 = vunpack.c.l.b16 %v1032
        %v1226 = vunpack.c.h.b16 %v1032
        %v1227 = vunpack.c.l.b16 %v1033
        %v1228 = vunpack.c.h.b16 %v1033
        %v1229 = vunpack.c.l.b16 %v1034
        %v1230 = vunpack.c.h.b16 %v1034
        %v1231 = vunpack.c.l.b16 %v1035
        %v1232 = vunpack.c.h.b16 %v1035
        %v1233 = vunpack.c.l.b16 %v1036
        %v1234 = vunpack.c.h.b16 %v1036
        %v1235 = vunpack.c.l.b16 %v1037
        %v1236 = vunpack.c.h.b16 %v1037
        %v1237 = vunpack.c.l.b16 %v1038
        %v1238 = vunpack.c.h.b16 %v1038
        %v1239 = vunpack.c.l.b16 %v1039
        %v1240 = vunpack.c.h.b16 %v1039
        %v1241 = vunpack.c.l.b16 %v1040
        %v1242 = vunpack.c.h.b16 %v1040
        %v1243 = vunpack.c.l.b16 %v1041
        %v1244 = vunpack.c.h.b16 %v1041
        %v1245 = vunpack.c.l.b16 %v1042
        %v1246 = vunpack.c.h.b16 %v1042
        %v1247 = vunpack.c.l.b16 %v1043
        %v1248 = vunpack.c.h.b16 %v1043
        %v1249 = vunpack.c.l.b16 %v1044
        %v1250 = vunpack.c.h.b16 %v1044
        %v1251 = vunpack.c.l.b16 %v1045
        %v1252 = vunpack.c.h.b16 %v1045
        %v1253 = vunpack.c.l.b16 %v1046
        %v1254 = vunpack.c.h.b16 %v1046
        %v1255 = vunpack.c.l.b16 %v1047
        %v1256 = vunpack.c.h.b16 %v1047
        %v1257 = vunpack.c.l.b16 %v1048
        %v1258 = vunpack.c.h.b16 %v1048
        %v1259 = vunpack.c.l.b16 %v1049
        %v1260 = vunpack.c.h.b16 %v1049
        %v1261 = vunpack.c.l.b16 %v1050
        %v1262 = vunpack.c.h.b16 %v1050
        %v1263 = vunpack.c.l.b16 %v1051
        %v1264 = vunpack.c.h.b16 %v1051
        %v1265 = vunpack.c.l.b16 %v1052
        %v1266 = vunpack.c.h.b16 %v1052
        %v1267 = vunpack.c.l.b16 %v1053
        %v1268 = vunpack.c.h.b16 %v1053
        %v1269 = vunpack.c.l.b16 %v1054
        %v1270 = vunpack.c.h.b16 %v1054
        %v1271 = vunpack.c.l.b16 %v1055
        %v1272 = vunpack.c.h.b16 %v1055
        %v1273 = vunpack.c.l.b16 %v1056
        %v1274 = vunpack.c.h.b16 %v1056
        %v1275 = vunpack.c.l.b16 %v1057
        %v1276 = vunpack.c.h.b16 %v1057
        %v1277 = vunpack.c.l.b16 %v1058
        %v1278 = vunpack.c.h.b16 %v1058
        %v1279 = vunpack.c.l.b16 %v1059
        %v1280 = vunpack.c.h.b16 %v1059
        %v1281 = vunpack.c.l.b16 %v1060
        %v1282 = vunpack.c.h.b16 %v1060
        %v1283 = vunpack.c.l.b16 %v1061
        %v1284 = vunpack.c.h.b16 %v1061
        %v1285 = vunpack.c.l.b16 %v1062
        %v1286 = vunpack.c.h.b16 %v1062
        %v1287 = vunpack.c.l.b16 %v1063
        %v1288 = vunpack.c.h.b16 %v1063
        %v1289 = vunpack.c.l.b16 %v1064
        %v1290 = vunpack.c.h.b16 %v1064
        %v1291 = vunpack.c.l.b16 %v1065
        %v1292 = vunpack.c.h.b16 %v1065
        %v1293 = vunpack.c.l.b16 %v1066
        %v1294 = vunpack.c.h.b16 %v1066
        %v1295 = vunpack.c.l.b16 %v1067
        %v1296 = vunpack.c.h.b16 %v1067
        %v1297 = vunpack.c.l.b16 %v1068
        %v1298 = vunpack.c.h.b16 %v1068
        %v1299 = vunpack.c.l.b16 %v1069
        %v1300 = vunpack.c.h.b16 %v1069
        %v1301 = vunpack.c.l.b16 %v1070
        %v1302 = vunpack.c.h.b16 %v1070
        %v1303 = vunpack.c.l.b16 %v1071
        %v1304 = vunpack.c.h.b16 %v1071
        %v1305 = vunpack.c.l.b16 %v1072
        %v1306 = vunpack.c.h.b16 %v1072
        %v1307 = vpack.c.b16 %v1187, %v1179
        %v1308 = vpack.c.b16 %v1188, %v1180
        %v1309 = vpack.c.b16 %v1189, %v1181
        %v1310 = vpack.c.b16 %v1190, %v1182
        %v1311 = vpack.c.b16 %v1191, %v1183
        %v1312 = vpack.c.b16 %v1192, %v1184
        %v1313 = vpack.c.b16 %v1193, %v1185
        %v1314 = vpack.c.b16 %v1194, %v1186
        %v1315 = vpack.c.b16 %v1203, %v1195
        %v1316 = vpack.c.b16 %v1204, %v1196
        %v1317 = vpack.c.b16 %v1205, %v1197
        %v1318 = vpack.c.b16 %v1206, %v1198
        %v1319 = vpack.c.b16 %v1207, %v1199
        %v1320 = vpack.c.b16 %v1208, %v1200
        %v1321 = vpack.c.b16 %v1209, %v1201
        %v1322 = vpack.c.b16 %v1210, %v1202
        %v1323 = vpack.c.b16 %v1219, %v1211
        %v1324 = vpack.c.b16 %v1220, %v1212
        %v1325 = vpack.c.b16 %v1221, %v1213
        %v1326 = vpack.c.b16 %v1222, %v1214
        %v1327 = vpack.c.b16 %v1223, %v1215
        %v1328 = vpack.c.b16 %v1224, %v1216
        %v1329 = vpack.c.b16 %v1225, %v1217
        %v1330 = vpack.c.b16 %v1226, %v1218
        %v1331 = vpack.c.b16 %v1235, %v1227
        %v1332 = vpack.c.b16 %v1236, %v1228
        %v1333 = vpack.c.b16 %v1237, %v1229
        %v1334 = vpack.c.b16 %v1238, %v1230
        %v1335 = vpack.c.b16 %v1239, %v1231
        %v1336 = vpack.c.b16 %v1240, %v1232
        %v1337 = vpack.c.b16 %v1241, %v1233
        %v1338 = vpack.c.b16 %v1242, %v1234
        %v1339 = vpack.c.b16 %v1251, %v1243
        %v1340 = vpack.c.b16 %v1252, %v1244
        %v1341 = vpack.c.b16 %v1253, %v1245
        %v1342 = vpack.c.b16 %v1254, %v1246
        %v1343 = vpack.c.b16 %v1255, %v1247
        %v1344 = vpack.c.b16 %v1256, %v1248
        %v1345 = vpack.c.b16 %v1257, %v1249
        %v1346 = vpack.c.b16 %v1258, %v1250
        %v1347 = vpack.c.b16 %v1267, %v1259
        %v1348 = vpack.c.b16 %v1268, %v1260
        %v1349 = vpack.c.b16 %v1269, %v1261
        %v1350 = vpack.c.b16 %v1270, %v1262
        %v1351 = vpack.c.b16 %v1271, %v1263
        %v1352 = vpack.c.b16 %v1272, %v1264
        %v1353 = vpack.c.b16 %v1273, %v1265
        %v1354 = vpack.c.b16 %v1274, %v1266
        %v1355 = vpack.c.b16 %v1283, %v1275
        %v1356 = vpack.c.b16 %v1284, %v1276
        %v1357 = vpack.c.b16 %v1285, %v1277
        %v1358 = vpack.c.b16 %v1286, %v1278
        %v1359 = vpack.c.b16 %v1287, %v1279
        %v1360 = vpack.c.b16 %v1288, %v1280
        %v1361 = vpack.c.b16 %v1289, %v1281
        %v1362 = vpack.c.b16 %v1290, %v1282
        %v1363 = vpack.c.b16 %v1299, %v1291
        %v1364 = vpack.c.b16 %v1300, %v1292
        %v1365 = vpack.c.b16 %v1301, %v1293
        %v1366 = vpack.c.b16 %v1302, %v1294
        %v1367 = vpack.c.b16 %v1303, %v1295
        %v1368 = vpack.c.b16 %v1304, %v1296
        %v1369 = vpack.c.b16 %v1305, %v1297
        %v1370 = vpack.c.b16 %v1306, %v1298
        %1435 = vmatprep.subr.bf16.mxu0 %v1364
        %1436 = vmatpush1.bf16.msra.mxu0 %v1363
        %1437 = vmatprep.subr.bf16.mxu0 %v1356
        %1438 = vmatpush1.bf16.msra.mxu0 %v1355
        %1439 = vmatprep.subr.bf16.mxu0 %v1348
        %1440 = vmatpush1.bf16.msra.mxu0 %v1347
        %1441 = vmatprep.subr.bf16.mxu0 %v1340
        %1442 = vmatpush1.bf16.msra.mxu0 %v1339
        %1443 = vmatprep.subr.bf16.mxu0 %v1332
        %1444 = vmatpush1.bf16.msra.mxu0 %v1331
        %1445 = vmatprep.subr.bf16.mxu0 %v1324
        %1446 = vmatpush1.bf16.msra.mxu0 %v1323
        %1447 = vmatprep.subr.bf16.mxu0 %v1316
        %1448 = vmatpush1.bf16.msra.mxu0 %v1315
        %1449 = vmatprep.subr.bf16.mxu0 %v1308
        %1450 = vmatpush1.bf16.msra.mxu0 %v1307
        %1451 = vmatprep.subr.bf16.mxu0 0
        %1452 = vmatpush2.bf16.msra.mxu0 0
        %1453 = vmatprep.subr.bf16.mxu0 0
        %1454 = vmatpush2.bf16.msra.mxu0 0
        %1455 = vmatprep.subr.bf16.mxu0 0
        %1456 = vmatpush2.bf16.msra.mxu0 0
        %1457 = vmatprep.subr.bf16.mxu0 0
        %1458 = vmatpush2.bf16.msra.mxu0 0
        %1459 = vmatprep.subr.bf16.mxu0 0
        %1460 = vmatpush2.bf16.msra.mxu0 0
        %1461 = vmatprep.subr.bf16.mxu0 0
        %1462 = vmatpush2.bf16.msra.mxu0 0
        %1463 = vmatprep.subr.bf16.mxu0 0
        %1464 = vmatpush2.bf16.msra.mxu0 0
        %1465 = vmatprep.subr.bf16.mxu0 0
        %1466 = vmatpush2.bf16.msra.mxu0 0
        %1467 = vmatprep.mubr.bf16.mxu0 0
        %1468 = vmatmul.mubr.bf16.gmra.mxu0 %v1007
        %v1469 = vpop.f32.mrf.mxu0
        %v1470 = vadd.f32 %v1078, %v1469
        %v1471 = vpop.f32.mrf.mxu0
        %v1472 = vadd.f32 %v1082, %v1471
        %v1473 = vpop.f32.mrf.mxu0
        %v1474 = vpop.f32.mrf.mxu0
        %1475 = vdwg.mxu0
        %1476 = vmatprep.subr.bf16.mxu0 %v1366
        %1477 = vmatpush1.bf16.msra.mxu0 %v1365
        %1478 = vmatprep.subr.bf16.mxu0 %v1358
        %1479 = vmatpush1.bf16.msra.mxu0 %v1357
        %1480 = vmatprep.subr.bf16.mxu0 %v1350
        %1481 = vmatpush1.bf16.msra.mxu0 %v1349
        %1482 = vmatprep.subr.bf16.mxu0 %v1342
        %1483 = vmatpush1.bf16.msra.mxu0 %v1341
        %1484 = vmatprep.subr.bf16.mxu0 %v1334
        %1485 = vmatpush1.bf16.msra.mxu0 %v1333
        %1486 = vmatprep.subr.bf16.mxu0 %v1326
        %1487 = vmatpush1.bf16.msra.mxu0 %v1325
        %1488 = vmatprep.subr.bf16.mxu0 %v1318
        %1489 = vmatpush1.bf16.msra.mxu0 %v1317
        %1490 = vmatprep.subr.bf16.mxu0 %v1310
        %1491 = vmatpush1.bf16.msra.mxu0 %v1309
        %1492 = vmatprep.subr.bf16.mxu0 0
        %1493 = vmatpush2.bf16.msra.mxu0 0
        %1494 = vmatprep.subr.bf16.mxu0 0
        %1495 = vmatpush2.bf16.msra.mxu0 0
        %1496 = vmatprep.subr.bf16.mxu0 0
        %1497 = vmatpush2.bf16.msra.mxu0 0
        %1498 = vmatprep.subr.bf16.mxu0 0
        %1499 = vmatpush2.bf16.msra.mxu0 0
        %1500 = vmatprep.subr.bf16.mxu0 0
        %1501 = vmatpush2.bf16.msra.mxu0 0
        %1502 = vmatprep.subr.bf16.mxu0 0
        %1503 = vmatpush2.bf16.msra.mxu0 0
        %1504 = vmatprep.subr.bf16.mxu0 0
        %1505 = vmatpush2.bf16.msra.mxu0 0
        %1506 = vmatprep.subr.bf16.mxu0 0
        %1507 = vmatpush2.bf16.msra.mxu0 0
        %1508 = vmatprep.mubr.bf16.mxu0 0
        %1509 = vmatmul.mubr.bf16.gmra.mxu0 %v1007
        %v1510 = vpop.f32.mrf.mxu0
        %v1511 = vadd.f32 %v1086, %v1510
        %v1512 = vpop.f32.mrf.mxu0
        %v1513 = vadd.f32 %v1090, %v1512
        %v1514 = vpop.f32.mrf.mxu0
        %v1515 = vpop.f32.mrf.mxu0
        %1516 = vdwg.mxu0
        %1517 = vmatprep.subr.bf16.mxu0 %v1368
        %1518 = vmatpush1.bf16.msra.mxu0 %v1367
        %1519 = vmatprep.subr.bf16.mxu0 %v1360
        %1520 = vmatpush1.bf16.msra.mxu0 %v1359
        %1521 = vmatprep.subr.bf16.mxu0 %v1352
        %1522 = vmatpush1.bf16.msra.mxu0 %v1351
        %1523 = vmatprep.subr.bf16.mxu0 %v1344
        %1524 = vmatpush1.bf16.msra.mxu0 %v1343
        %1525 = vmatprep.subr.bf16.mxu0 %v1336
        %1526 = vmatpush1.bf16.msra.mxu0 %v1335
        %1527 = vmatprep.subr.bf16.mxu0 %v1328
        %1528 = vmatpush1.bf16.msra.mxu0 %v1327
        %1529 = vmatprep.subr.bf16.mxu0 %v1320
        %1530 = vmatpush1.bf16.msra.mxu0 %v1319
        %1531 = vmatprep.subr.bf16.mxu0 %v1312
        %1532 = vmatpush1.bf16.msra.mxu0 %v1311
        %1533 = vmatprep.subr.bf16.mxu0 0
        %1534 = vmatpush2.bf16.msra.mxu0 0
        %1535 = vmatprep.subr.bf16.mxu0 0
        %1536 = vmatpush2.bf16.msra.mxu0 0
        %1537 = vmatprep.subr.bf16.mxu0 0
        %1538 = vmatpush2.bf16.msra.mxu0 0
        %1539 = vmatprep.subr.bf16.mxu0 0
        %1540 = vmatpush2.bf16.msra.mxu0 0
        %1541 = vmatprep.subr.bf16.mxu0 0
        %1542 = vmatpush2.bf16.msra.mxu0 0
        %1543 = vmatprep.subr.bf16.mxu0 0
        %1544 = vmatpush2.bf16.msra.mxu0 0
        %1545 = vmatprep.subr.bf16.mxu0 0
        %1546 = vmatpush2.bf16.msra.mxu0 0
        %1547 = vmatprep.subr.bf16.mxu0 0
        %1548 = vmatpush2.bf16.msra.mxu0 0
        %1549 = vmatprep.mubr.bf16.mxu0 0
        %1550 = vmatmul.mubr.bf16.gmra.mxu0 %v1007
        %v1551 = vpop.f32.mrf.mxu0
        %v1552 = vadd.f32 %v1094, %v1551
        %v1553 = vpop.f32.mrf.mxu0
        %v1554 = vadd.f32 %v1098, %v1553
        %v1555 = vpop.f32.mrf.mxu0
        %v1556 = vpop.f32.mrf.mxu0
        %1557 = vdwg.mxu0
        %1558 = vmatprep.subr.bf16.mxu0 %v1370
        %1559 = vmatpush1.bf16.msra.mxu0 %v1369
        %1560 = vmatprep.subr.bf16.mxu0 %v1362
        %1561 = vmatpush1.bf16.msra.mxu0 %v1361
        %1562 = vmatprep.subr.bf16.mxu0 %v1354
        %1563 = vmatpush1.bf16.msra.mxu0 %v1353
        %1564 = vmatprep.subr.bf16.mxu0 %v1346
        %1565 = vmatpush1.bf16.msra.mxu0 %v1345
        %1566 = vmatprep.subr.bf16.mxu0 %v1338
        %1567 = vmatpush1.bf16.msra.mxu0 %v1337
        %1568 = vmatprep.subr.bf16.mxu0 %v1330
        %1569 = vmatpush1.bf16.msra.mxu0 %v1329
        %1570 = vmatprep.subr.bf16.mxu0 %v1322
        %1571 = vmatpush1.bf16.msra.mxu0 %v1321
        %1572 = vmatprep.subr.bf16.mxu0 %v1314
        %1573 = vmatpush1.bf16.msra.mxu0 %v1313
        %1574 = vmatprep.subr.bf16.mxu0 0
        %1575 = vmatpush2.bf16.msra.mxu0 0
        %1576 = vmatprep.subr.bf16.mxu0 0
        %1577 = vmatpush2.bf16.msra.mxu0 0
        %1578 = vmatprep.subr.bf16.mxu0 0
        %1579 = vmatpush2.bf16.msra.mxu0 0
        %1580 = vmatprep.subr.bf16.mxu0 0
        %1581 = vmatpush2.bf16.msra.mxu0 0
        %1582 = vmatprep.subr.bf16.mxu0 0
        %1583 = vmatpush2.bf16.msra.mxu0 0
        %1584 = vmatprep.subr.bf16.mxu0 0
        %1585 = vmatpush2.bf16.msra.mxu0 0
        %1586 = vmatprep.subr.bf16.mxu0 0
        %1587 = vmatpush2.bf16.msra.mxu0 0
        %1588 = vmatprep.subr.bf16.mxu0 0
        %1589 = vmatpush2.bf16.msra.mxu0 0
        %1590 = vmatprep.mubr.bf16.mxu0 0
        %1591 = vmatmul.mubr.bf16.gmra.mxu0 %v1007
        %v1592 = vpop.f32.mrf.mxu0
        %v1593 = vadd.f32 %v1102, %v1592
        %v1594 = vpop.f32.mrf.mxu0
        %v1595 = vadd.f32 %v1106, %v1594
        %v1596 = vpop.f32.mrf.mxu0
        %v1597 = vpop.f32.mrf.mxu0
        %1598 = vdwg.mxu0
        %v1599 = vmax.f32 %v1470, 0.0
        %v1600 = vmax.f32 %v1472, 0.0
        %v1601 = vmax.f32 %v1511, 0.0
        %v1602 = vmax.f32 %v1513, 0.0
        %v1603 = vmax.f32 %v1552, 0.0
        %v1604 = vmax.f32 %v1554, 0.0
        %v1605 = vmax.f32 %v1593, 0.0
        %v1606 = vmax.f32 %v1595, 0.0
        %v1607 = vpack.c.bf16 %v1599, %v1599
        %v1608 = vpack.c.bf16 %v1600, %v1600
        %v1609 = vpack.c.bf16 %v1601, %v1601
        %v1610 = vpack.c.bf16 %v1602, %v1602
        %v1611 = vpack.c.bf16 %v1603, %v1603
        %v1612 = vpack.c.bf16 %v1604, %v1604
        %v1613 = vpack.c.bf16 %v1605, %v1605
        %v1614 = vpack.c.bf16 %v1606, %v1606
        %v1615 = vld [vmem:[#allocation11] sm:$0xf]
        %v1616 = vld [vmem:[#allocation11 + $0x4] sm:$0xf]
        %v1617 = vld [vmem:[#allocation11 + $0x8] sm:$0xf]
        %v1618 = vld [vmem:[#allocation11 + $0xc] sm:$0xf]
        %v1619 = vld [vmem:[#allocation11 + $0x10] sm:$0xf]
        %v1620 = vld [vmem:[#allocation11 + $0x14] sm:$0xf]
        %v1621 = vld [vmem:[#allocation11 + $0x18] sm:$0xf]
        %v1622 = vld [vmem:[#allocation11 + $0x1c] sm:$0xf]
        %v1623 = vld [vmem:[#allocation11 + $0x20] sm:$0xf]
        %v1624 = vld [vmem:[#allocation11 + $0x24] sm:$0xf]
        %v1625 = vld [vmem:[#allocation11 + $0x28] sm:$0xf]
        %v1626 = vld [vmem:[#allocation11 + $0x2c] sm:$0xf]
        %v1627 = vld [vmem:[#allocation11 + $0x30] sm:$0xf]
        %v1628 = vld [vmem:[#allocation11 + $0x34] sm:$0xf]
        %v1629 = vld [vmem:[#allocation11 + $0x38] sm:$0xf]
        %v1630 = vld [vmem:[#allocation11 + $0x3c] sm:$0xf]
        %v1631 = vld [vmem:[#allocation11 + $0x40] sm:$0xf]
        %v1632 = vld [vmem:[#allocation11 + $0x44] sm:$0xf]
        %v1633 = vld [vmem:[#allocation11 + $0x48] sm:$0xf]
        %v1634 = vld [vmem:[#allocation11 + $0x4c] sm:$0xf]
        %v1635 = vld [vmem:[#allocation11 + $0x50] sm:$0xf]
        %v1636 = vld [vmem:[#allocation11 + $0x54] sm:$0xf]
        %v1637 = vld [vmem:[#allocation11 + $0x58] sm:$0xf]
        %v1638 = vld [vmem:[#allocation11 + $0x5c] sm:$0xf]
        %v1639 = vld [vmem:[#allocation11 + $0x60] sm:$0xf]
        %v1640 = vld [vmem:[#allocation11 + $0x64] sm:$0xf]
        %v1641 = vld [vmem:[#allocation11 + $0x68] sm:$0xf]
        %v1642 = vld [vmem:[#allocation11 + $0x6c] sm:$0xf]
        %v1643 = vld [vmem:[#allocation11 + $0x70] sm:$0xf]
        %v1644 = vld [vmem:[#allocation11 + $0x74] sm:$0xf]
        %v1645 = vld [vmem:[#allocation11 + $0x78] sm:$0xf]
        %v1646 = vld [vmem:[#allocation11 + $0x7c] sm:$0xf]
        %v1647 = vld [vmem:[#allocation11 + $0x80] sm:$0xf]
        %v1648 = vld [vmem:[#allocation11 + $0x84] sm:$0xf]
        %v1649 = vld [vmem:[#allocation11 + $0x88] sm:$0xf]
        %v1650 = vld [vmem:[#allocation11 + $0x8c] sm:$0xf]
        %v1651 = vld [vmem:[#allocation11 + $0x90] sm:$0xf]
        %v1652 = vld [vmem:[#allocation11 + $0x94] sm:$0xf]
        %v1653 = vld [vmem:[#allocation11 + $0x98] sm:$0xf]
        %v1654 = vld [vmem:[#allocation11 + $0x9c] sm:$0xf]
        %v1655 = vld [vmem:[#allocation11 + $0xa0] sm:$0xf]
        %v1656 = vld [vmem:[#allocation11 + $0xa4] sm:$0xf]
        %v1657 = vld [vmem:[#allocation11 + $0xa8] sm:$0xf]
        %v1658 = vld [vmem:[#allocation11 + $0xac] sm:$0xf]
        %v1659 = vld [vmem:[#allocation11 + $0xb0] sm:$0xf]
        %v1660 = vld [vmem:[#allocation11 + $0xb4] sm:$0xf]
        %v1661 = vld [vmem:[#allocation11 + $0xb8] sm:$0xf]
        %v1662 = vld [vmem:[#allocation11 + $0xbc] sm:$0xf]
        %v1663 = vld [vmem:[#allocation11 + $0xc0] sm:$0xf]
        %v1664 = vld [vmem:[#allocation11 + $0xc4] sm:$0xf]
        %v1665 = vld [vmem:[#allocation11 + $0xc8] sm:$0xf]
        %v1666 = vld [vmem:[#allocation11 + $0xcc] sm:$0xf]
        %v1667 = vld [vmem:[#allocation11 + $0xd0] sm:$0xf]
        %v1668 = vld [vmem:[#allocation11 + $0xd4] sm:$0xf]
        %v1669 = vld [vmem:[#allocation11 + $0xd8] sm:$0xf]
        %v1670 = vld [vmem:[#allocation11 + $0xdc] sm:$0xf]
        %v1671 = vld [vmem:[#allocation11 + $0xe0] sm:$0xf]
        %v1672 = vld [vmem:[#allocation11 + $0xe4] sm:$0xf]
        %v1673 = vld [vmem:[#allocation11 + $0xe8] sm:$0xf]
        %v1674 = vld [vmem:[#allocation11 + $0xec] sm:$0xf]
        %v1675 = vld [vmem:[#allocation11 + $0xf0] sm:$0xf]
        %v1676 = vld [vmem:[#allocation11 + $0xf4] sm:$0xf]
        %v1677 = vld [vmem:[#allocation11 + $0xf8] sm:$0xf]
        %v1678 = vld [vmem:[#allocation11 + $0xfc] sm:$0xf]
        %v1679 = vld [vmem:[#allocation11 + $0x100] sm:$0xf]
        %v1680 = vld [vmem:[#allocation11 + $0x104] sm:$0xf]
        %v1681 = vld [vmem:[#allocation11 + $0x108] sm:$0xf]
        %v1682 = vld [vmem:[#allocation11 + $0x10c] sm:$0xf]
        %v1683 = vld [vmem:[#allocation11 + $0x110] sm:$0xf]
        %v1684 = vld [vmem:[#allocation11 + $0x114] sm:$0xf]
        %v1685 = vld [vmem:[#allocation11 + $0x118] sm:$0xf]
        %v1686 = vld [vmem:[#allocation11 + $0x11c] sm:$0xf]
        %v1687 = vld [vmem:[#allocation11 + $0x120] sm:$0xf]
        %v1688 = vld [vmem:[#allocation11 + $0x124] sm:$0xf]
        %v1689 = vld [vmem:[#allocation11 + $0x128] sm:$0xf]
        %v1690 = vld [vmem:[#allocation11 + $0x12c] sm:$0xf]
        %v1691 = vld [vmem:[#allocation11 + $0x130] sm:$0xf]
        %v1692 = vld [vmem:[#allocation11 + $0x134] sm:$0xf]
        %v1693 = vld [vmem:[#allocation11 + $0x138] sm:$0xf]
        %v1694 = vld [vmem:[#allocation11 + $0x13c] sm:$0xf]
        %v1695 = vld [vmem:[#allocation11 + $0x140] sm:$0xf]
        %v1696 = vld [vmem:[#allocation11 + $0x144] sm:$0xf]
        %v1697 = vld [vmem:[#allocation11 + $0x148] sm:$0xf]
        %v1698 = vld [vmem:[#allocation11 + $0x14c] sm:$0xf]
        %v1699 = vld [vmem:[#allocation11 + $0x150] sm:$0xf]
        %v1700 = vld [vmem:[#allocation11 + $0x154] sm:$0xf]
        %v1701 = vld [vmem:[#allocation11 + $0x158] sm:$0xf]
        %v1702 = vld [vmem:[#allocation11 + $0x15c] sm:$0xf]
        %v1703 = vld [vmem:[#allocation11 + $0x160] sm:$0xf]
        %v1704 = vld [vmem:[#allocation11 + $0x164] sm:$0xf]
        %v1705 = vld [vmem:[#allocation11 + $0x168] sm:$0xf]
        %v1706 = vld [vmem:[#allocation11 + $0x16c] sm:$0xf]
        %v1707 = vld [vmem:[#allocation11 + $0x170] sm:$0xf]
        %v1708 = vld [vmem:[#allocation11 + $0x174] sm:$0xf]
        %v1709 = vld [vmem:[#allocation11 + $0x178] sm:$0xf]
        %v1710 = vld [vmem:[#allocation11 + $0x17c] sm:$0xf]
        %v1711 = vld [vmem:[#allocation11 + $0x180] sm:$0xf]
        %v1712 = vld [vmem:[#allocation11 + $0x184] sm:$0xf]
        %v1713 = vld [vmem:[#allocation11 + $0x188] sm:$0xf]
        %v1714 = vld [vmem:[#allocation11 + $0x18c] sm:$0xf]
        %v1715 = vld [vmem:[#allocation11 + $0x190] sm:$0xf]
        %v1716 = vld [vmem:[#allocation11 + $0x194] sm:$0xf]
        %v1717 = vld [vmem:[#allocation11 + $0x198] sm:$0xf]
        %v1718 = vld [vmem:[#allocation11 + $0x19c] sm:$0xf]
        %v1719 = vld [vmem:[#allocation11 + $0x1a0] sm:$0xf]
        %v1720 = vld [vmem:[#allocation11 + $0x1a4] sm:$0xf]
        %v1721 = vld [vmem:[#allocation11 + $0x1a8] sm:$0xf]
        %v1722 = vld [vmem:[#allocation11 + $0x1ac] sm:$0xf]
        %v1723 = vld [vmem:[#allocation11 + $0x1b0] sm:$0xf]
        %v1724 = vld [vmem:[#allocation11 + $0x1b4] sm:$0xf]
        %v1725 = vld [vmem:[#allocation11 + $0x1b8] sm:$0xf]
        %v1726 = vld [vmem:[#allocation11 + $0x1bc] sm:$0xf]
        %v1727 = vld [vmem:[#allocation11 + $0x1c0] sm:$0xf]
        %v1728 = vld [vmem:[#allocation11 + $0x1c4] sm:$0xf]
        %v1729 = vld [vmem:[#allocation11 + $0x1c8] sm:$0xf]
        %v1730 = vld [vmem:[#allocation11 + $0x1cc] sm:$0xf]
        %v1731 = vld [vmem:[#allocation11 + $0x1d0] sm:$0xf]
        %v1732 = vld [vmem:[#allocation11 + $0x1d4] sm:$0xf]
        %v1733 = vld [vmem:[#allocation11 + $0x1d8] sm:$0xf]
        %v1734 = vld [vmem:[#allocation11 + $0x1dc] sm:$0xf]
        %v1735 = vld [vmem:[#allocation11 + $0x1e0] sm:$0xf]
        %v1736 = vld [vmem:[#allocation11 + $0x1e4] sm:$0xf]
        %v1737 = vld [vmem:[#allocation11 + $0x1e8] sm:$0xf]
        %v1738 = vld [vmem:[#allocation11 + $0x1ec] sm:$0xf]
        %v1739 = vld [vmem:[#allocation11 + $0x1f0] sm:$0xf]
        %v1740 = vld [vmem:[#allocation11 + $0x1f4] sm:$0xf]
        %v1741 = vld [vmem:[#allocation11 + $0x1f8] sm:$0xf]
        %v1742 = vld [vmem:[#allocation11 + $0x1fc] sm:$0xf]
        %v1743 = vld [vmem:[%s13] sm:$0x1]
        %v1745 = vlaneseq
        %v1746 = vshrl.u32 %v1745, 7
        %v1747 = vsub.s32 0, %v1746
        %v1748 = vrot.slane %v1743, %v1747
        %v1878 = vunpack.c.l.b16 %v1615
        %v1879 = vunpack.c.l.b16 %v1616
        %v1880 = vunpack.c.l.b16 %v1617
        %v1881 = vunpack.c.l.b16 %v1618
        %v1882 = vunpack.c.l.b16 %v1619
        %v1883 = vunpack.c.l.b16 %v1620
        %v1884 = vunpack.c.l.b16 %v1621
        %v1885 = vunpack.c.l.b16 %v1622
        %v1886 = vunpack.c.l.b16 %v1623
        %v1887 = vunpack.c.l.b16 %v1624
        %v1888 = vunpack.c.l.b16 %v1625
        %v1889 = vunpack.c.l.b16 %v1626
        %v1890 = vunpack.c.l.b16 %v1627
        %v1891 = vunpack.c.l.b16 %v1628
        %v1892 = vunpack.c.l.b16 %v1629
        %v1893 = vunpack.c.l.b16 %v1630
        %v1894 = vunpack.c.l.b16 %v1631
        %v1895 = vunpack.c.l.b16 %v1632
        %v1896 = vunpack.c.l.b16 %v1633
        %v1897 = vunpack.c.l.b16 %v1634
        %v1898 = vunpack.c.l.b16 %v1635
        %v1899 = vunpack.c.l.b16 %v1636
        %v1900 = vunpack.c.l.b16 %v1637
        %v1901 = vunpack.c.l.b16 %v1638
        %v1902 = vunpack.c.l.b16 %v1639
        %v1903 = vunpack.c.l.b16 %v1640
        %v1904 = vunpack.c.l.b16 %v1641
        %v1905 = vunpack.c.l.b16 %v1642
        %v1906 = vunpack.c.l.b16 %v1643
        %v1907 = vunpack.c.l.b16 %v1644
        %v1908 = vunpack.c.l.b16 %v1645
        %v1909 = vunpack.c.l.b16 %v1646
        %v1910 = vunpack.c.l.b16 %v1647
        %v1911 = vunpack.c.l.b16 %v1648
        %v1912 = vunpack.c.l.b16 %v1649
        %v1913 = vunpack.c.l.b16 %v1650
        %v1914 = vunpack.c.l.b16 %v1651
        %v1915 = vunpack.c.l.b16 %v1652
        %v1916 = vunpack.c.l.b16 %v1653
        %v1917 = vunpack.c.l.b16 %v1654
        %v1918 = vunpack.c.l.b16 %v1655
        %v1919 = vunpack.c.l.b16 %v1656
        %v1920 = vunpack.c.l.b16 %v1657
        %v1921 = vunpack.c.l.b16 %v1658
        %v1922 = vunpack.c.l.b16 %v1659
        %v1923 = vunpack.c.l.b16 %v1660
        %v1924 = vunpack.c.l.b16 %v1661
        %v1925 = vunpack.c.l.b16 %v1662
        %v1926 = vunpack.c.l.b16 %v1663
        %v1927 = vunpack.c.l.b16 %v1664
        %v1928 = vunpack.c.l.b16 %v1665
        %v1929 = vunpack.c.l.b16 %v1666
        %v1930 = vunpack.c.l.b16 %v1667
        %v1931 = vunpack.c.l.b16 %v1668
        %v1932 = vunpack.c.l.b16 %v1669
        %v1933 = vunpack.c.l.b16 %v1670
        %v1934 = vunpack.c.l.b16 %v1671
        %v1935 = vunpack.c.l.b16 %v1672
        %v1936 = vunpack.c.l.b16 %v1673
        %v1937 = vunpack.c.l.b16 %v1674
        %v1938 = vunpack.c.l.b16 %v1675
        %v1939 = vunpack.c.l.b16 %v1676
        %v1940 = vunpack.c.l.b16 %v1677
        %v1941 = vunpack.c.l.b16 %v1678
        %v1942 = vunpack.c.l.b16 %v1679
        %v1943 = vunpack.c.l.b16 %v1680
        %v1944 = vunpack.c.l.b16 %v1681
        %v1945 = vunpack.c.l.b16 %v1682
        %v1946 = vunpack.c.l.b16 %v1683
        %v1947 = vunpack.c.l.b16 %v1684
        %v1948 = vunpack.c.l.b16 %v1685
        %v1949 = vunpack.c.l.b16 %v1686
        %v1950 = vunpack.c.l.b16 %v1687
        %v1951 = vunpack.c.l.b16 %v1688
        %v1952 = vunpack.c.l.b16 %v1689
        %v1953 = vunpack.c.l.b16 %v1690
        %v1954 = vunpack.c.l.b16 %v1691
        %v1955 = vunpack.c.l.b16 %v1692
        %v1956 = vunpack.c.l.b16 %v1693
        %v1957 = vunpack.c.l.b16 %v1694
        %v1958 = vunpack.c.l.b16 %v1695
        %v1959 = vunpack.c.l.b16 %v1696
        %v1960 = vunpack.c.l.b16 %v1697
        %v1961 = vunpack.c.l.b16 %v1698
        %v1962 = vunpack.c.l.b16 %v1699
        %v1963 = vunpack.c.l.b16 %v1700
        %v1964 = vunpack.c.l.b16 %v1701
        %v1965 = vunpack.c.l.b16 %v1702
        %v1966 = vunpack.c.l.b16 %v1703
        %v1967 = vunpack.c.l.b16 %v1704
        %v1968 = vunpack.c.l.b16 %v1705
        %v1969 = vunpack.c.l.b16 %v1706
        %v1970 = vunpack.c.l.b16 %v1707
        %v1971 = vunpack.c.l.b16 %v1708
        %v1972 = vunpack.c.l.b16 %v1709
        %v1973 = vunpack.c.l.b16 %v1710
        %v1974 = vunpack.c.l.b16 %v1711
        %v1975 = vunpack.c.l.b16 %v1712
        %v1976 = vunpack.c.l.b16 %v1713
        %v1977 = vunpack.c.l.b16 %v1714
        %v1978 = vunpack.c.l.b16 %v1715
        %v1979 = vunpack.c.l.b16 %v1716
        %v1980 = vunpack.c.l.b16 %v1717
        %v1981 = vunpack.c.l.b16 %v1718
        %v1982 = vunpack.c.l.b16 %v1719
        %v1983 = vunpack.c.l.b16 %v1720
        %v1984 = vunpack.c.l.b16 %v1721
        %v1985 = vunpack.c.l.b16 %v1722
        %v1986 = vunpack.c.l.b16 %v1723
        %v1987 = vunpack.c.l.b16 %v1724
        %v1988 = vunpack.c.l.b16 %v1725
        %v1989 = vunpack.c.l.b16 %v1726
        %v1990 = vunpack.c.l.b16 %v1727
        %v1991 = vunpack.c.l.b16 %v1728
        %v1992 = vunpack.c.l.b16 %v1729
        %v1993 = vunpack.c.l.b16 %v1730
        %v1994 = vunpack.c.l.b16 %v1731
        %v1995 = vunpack.c.l.b16 %v1732
        %v1996 = vunpack.c.l.b16 %v1733
        %v1997 = vunpack.c.l.b16 %v1734
        %v1998 = vunpack.c.l.b16 %v1735
        %v1999 = vunpack.c.l.b16 %v1736
        %v2000 = vunpack.c.l.b16 %v1737
        %v2001 = vunpack.c.l.b16 %v1738
        %v2002 = vunpack.c.l.b16 %v1739
        %v2003 = vunpack.c.l.b16 %v1740
        %v2004 = vunpack.c.l.b16 %v1741
        %v2005 = vunpack.c.l.b16 %v1742
        %v2006 = vpack.c.b16 %v1879, %v1878
        %v2007 = vpack.c.b16 %v1881, %v1880
        %v2008 = vpack.c.b16 %v1883, %v1882
        %v2009 = vpack.c.b16 %v1885, %v1884
        %v2010 = vpack.c.b16 %v1887, %v1886
        %v2011 = vpack.c.b16 %v1889, %v1888
        %v2012 = vpack.c.b16 %v1891, %v1890
        %v2013 = vpack.c.b16 %v1893, %v1892
        %v2014 = vpack.c.b16 %v1895, %v1894
        %v2015 = vpack.c.b16 %v1897, %v1896
        %v2016 = vpack.c.b16 %v1899, %v1898
        %v2017 = vpack.c.b16 %v1901, %v1900
        %v2018 = vpack.c.b16 %v1903, %v1902
        %v2019 = vpack.c.b16 %v1905, %v1904
        %v2020 = vpack.c.b16 %v1907, %v1906
        %v2021 = vpack.c.b16 %v1909, %v1908
        %v2022 = vpack.c.b16 %v1911, %v1910
        %v2023 = vpack.c.b16 %v1913, %v1912
        %v2024 = vpack.c.b16 %v1915, %v1914
        %v2025 = vpack.c.b16 %v1917, %v1916
        %v2026 = vpack.c.b16 %v1919, %v1918
        %v2027 = vpack.c.b16 %v1921, %v1920
        %v2028 = vpack.c.b16 %v1923, %v1922
        %v2029 = vpack.c.b16 %v1925, %v1924
        %v2030 = vpack.c.b16 %v1927, %v1926
        %v2031 = vpack.c.b16 %v1929, %v1928
        %v2032 = vpack.c.b16 %v1931, %v1930
        %v2033 = vpack.c.b16 %v1933, %v1932
        %v2034 = vpack.c.b16 %v1935, %v1934
        %v2035 = vpack.c.b16 %v1937, %v1936
        %v2036 = vpack.c.b16 %v1939, %v1938
        %v2037 = vpack.c.b16 %v1941, %v1940
        %v2038 = vpack.c.b16 %v1943, %v1942
        %v2039 = vpack.c.b16 %v1945, %v1944
        %v2040 = vpack.c.b16 %v1947, %v1946
        %v2041 = vpack.c.b16 %v1949, %v1948
        %v2042 = vpack.c.b16 %v1951, %v1950
        %v2043 = vpack.c.b16 %v1953, %v1952
        %v2044 = vpack.c.b16 %v1955, %v1954
        %v2045 = vpack.c.b16 %v1957, %v1956
        %v2046 = vpack.c.b16 %v1959, %v1958
        %v2047 = vpack.c.b16 %v1961, %v1960
        %v2048 = vpack.c.b16 %v1963, %v1962
        %v2049 = vpack.c.b16 %v1965, %v1964
        %v2050 = vpack.c.b16 %v1967, %v1966
        %v2051 = vpack.c.b16 %v1969, %v1968
        %v2052 = vpack.c.b16 %v1971, %v1970
        %v2053 = vpack.c.b16 %v1973, %v1972
        %v2054 = vpack.c.b16 %v1975, %v1974
        %v2055 = vpack.c.b16 %v1977, %v1976
        %v2056 = vpack.c.b16 %v1979, %v1978
        %v2057 = vpack.c.b16 %v1981, %v1980
        %v2058 = vpack.c.b16 %v1983, %v1982
        %v2059 = vpack.c.b16 %v1985, %v1984
        %v2060 = vpack.c.b16 %v1987, %v1986
        %v2061 = vpack.c.b16 %v1989, %v1988
        %v2062 = vpack.c.b16 %v1991, %v1990
        %v2063 = vpack.c.b16 %v1993, %v1992
        %v2064 = vpack.c.b16 %v1995, %v1994
        %v2065 = vpack.c.b16 %v1997, %v1996
        %v2066 = vpack.c.b16 %v1999, %v1998
        %v2067 = vpack.c.b16 %v2001, %v2000
        %v2068 = vpack.c.b16 %v2003, %v2002
        %v2069 = vpack.c.b16 %v2005, %v2004
        %2134 = vmatprep.subr.bf16.mxu0 0
        %2135 = vmatpush1.bf16.msra.mxu0 %v2013
        %2136 = vmatprep.subr.bf16.mxu0 0
        %2137 = vmatpush1.bf16.msra.mxu0 %v2012
        %2138 = vmatprep.subr.bf16.mxu0 0
        %2139 = vmatpush1.bf16.msra.mxu0 %v2011
        %2140 = vmatprep.subr.bf16.mxu0 0
        %2141 = vmatpush1.bf16.msra.mxu0 %v2010
        %2142 = vmatprep.subr.bf16.mxu0 0
        %2143 = vmatpush1.bf16.msra.mxu0 %v2009
        %2144 = vmatprep.subr.bf16.mxu0 0
        %2145 = vmatpush1.bf16.msra.mxu0 %v2008
        %2146 = vmatprep.subr.bf16.mxu0 0
        %2147 = vmatpush1.bf16.msra.mxu0 %v2007
        %2148 = vmatprep.subr.bf16.mxu0 0
        %2149 = vmatpush1.bf16.msra.mxu0 %v2006
        %2150 = vmatprep.subr.bf16.mxu0 0
        %2151 = vmatpush2.bf16.msra.mxu0 %v2021
        %2152 = vmatprep.subr.bf16.mxu0 0
        %2153 = vmatpush2.bf16.msra.mxu0 %v2020
        %2154 = vmatprep.subr.bf16.mxu0 0
        %2155 = vmatpush2.bf16.msra.mxu0 %v2019
        %2156 = vmatprep.subr.bf16.mxu0 0
        %2157 = vmatpush2.bf16.msra.mxu0 %v2018
        %2158 = vmatprep.subr.bf16.mxu0 0
        %2159 = vmatpush2.bf16.msra.mxu0 %v2017
        %2160 = vmatprep.subr.bf16.mxu0 0
        %2161 = vmatpush2.bf16.msra.mxu0 %v2016
        %2162 = vmatprep.subr.bf16.mxu0 0
        %2163 = vmatpush2.bf16.msra.mxu0 %v2015
        %2164 = vmatprep.subr.bf16.mxu0 0
        %2165 = vmatpush2.bf16.msra.mxu0 %v2014
        %2166 = vmatprep.mubr.bf16.mxu0 %v1608
        %2167 = vmatmul.mubr.bf16.gmra.mxu0 %v1607
        %v2168 = vpop.f32.mrf.mxu0
        %v2169 = vadd.f32 %v1748, %v2168
        %v2170 = vpop.f32.mrf.mxu0
        %v2171 = vpop.f32.mrf.mxu0
        %v2172 = vpop.f32.mrf.mxu0
        %2173 = vdwg.mxu0
        %2174 = vmatprep.subr.bf16.mxu0 0
        %2175 = vmatpush1.bf16.msra.mxu0 %v2029
        %2176 = vmatprep.subr.bf16.mxu0 0
        %2177 = vmatpush1.bf16.msra.mxu0 %v2028
        %2178 = vmatprep.subr.bf16.mxu0 0
        %2179 = vmatpush1.bf16.msra.mxu0 %v2027
        %2180 = vmatprep.subr.bf16.mxu0 0
        %2181 = vmatpush1.bf16.msra.mxu0 %v2026
        %2182 = vmatprep.subr.bf16.mxu0 0
        %2183 = vmatpush1.bf16.msra.mxu0 %v2025
        %2184 = vmatprep.subr.bf16.mxu0 0
        %2185 = vmatpush1.bf16.msra.mxu0 %v2024
        %2186 = vmatprep.subr.bf16.mxu0 0
        %2187 = vmatpush1.bf16.msra.mxu0 %v2023
        %2188 = vmatprep.subr.bf16.mxu0 0
        %2189 = vmatpush1.bf16.msra.mxu0 %v2022
        %2190 = vmatprep.subr.bf16.mxu0 0
        %2191 = vmatpush2.bf16.msra.mxu0 %v2037
        %2192 = vmatprep.subr.bf16.mxu0 0
        %2193 = vmatpush2.bf16.msra.mxu0 %v2036
        %2194 = vmatprep.subr.bf16.mxu0 0
        %2195 = vmatpush2.bf16.msra.mxu0 %v2035
        %2196 = vmatprep.subr.bf16.mxu0 0
        %2197 = vmatpush2.bf16.msra.mxu0 %v2034
        %2198 = vmatprep.subr.bf16.mxu0 0
        %2199 = vmatpush2.bf16.msra.mxu0 %v2033
        %2200 = vmatprep.subr.bf16.mxu0 0
        %2201 = vmatpush2.bf16.msra.mxu0 %v2032
        %2202 = vmatprep.subr.bf16.mxu0 0
        %2203 = vmatpush2.bf16.msra.mxu0 %v2031
        %2204 = vmatprep.subr.bf16.mxu0 0
        %2205 = vmatpush2.bf16.msra.mxu0 %v2030
        %2206 = vmatprep.mubr.bf16.mxu0 %v1610
        %2207 = vmatmul.mubr.bf16.gmra.mxu0 %v1609
        %v2208 = vpop.f32.mrf.mxu0
        %v2209 = vadd.f32 %v2169, %v2208
        %v2210 = vpop.f32.mrf.mxu0
        %v2211 = vpop.f32.mrf.mxu0
        %v2212 = vpop.f32.mrf.mxu0
        %2213 = vdwg.mxu0
        %2214 = vmatprep.subr.bf16.mxu0 0
        %2215 = vmatpush1.bf16.msra.mxu0 %v2045
        %2216 = vmatprep.subr.bf16.mxu0 0
        %2217 = vmatpush1.bf16.msra.mxu0 %v2044
        %2218 = vmatprep.subr.bf16.mxu0 0
        %2219 = vmatpush1.bf16.msra.mxu0 %v2043
        %2220 = vmatprep.subr.bf16.mxu0 0
        %2221 = vmatpush1.bf16.msra.mxu0 %v2042
        %2222 = vmatprep.subr.bf16.mxu0 0
        %2223 = vmatpush1.bf16.msra.mxu0 %v2041
        %2224 = vmatprep.subr.bf16.mxu0 0
        %2225 = vmatpush1.bf16.msra.mxu0 %v2040
        %2226 = vmatprep.subr.bf16.mxu0 0
        %2227 = vmatpush1.bf16.msra.mxu0 %v2039
        %2228 = vmatprep.subr.bf16.mxu0 0
        %2229 = vmatpush1.bf16.msra.mxu0 %v2038
        %2230 = vmatprep.subr.bf16.mxu0 0
        %2231 = vmatpush2.bf16.msra.mxu0 %v2053
        %2232 = vmatprep.subr.bf16.mxu0 0
        %2233 = vmatpush2.bf16.msra.mxu0 %v2052
        %2234 = vmatprep.subr.bf16.mxu0 0
        %2235 = vmatpush2.bf16.msra.mxu0 %v2051
        %2236 = vmatprep.subr.bf16.mxu0 0
        %2237 = vmatpush2.bf16.msra.mxu0 %v2050
        %2238 = vmatprep.subr.bf16.mxu0 0
        %2239 = vmatpush2.bf16.msra.mxu0 %v2049
        %2240 = vmatprep.subr.bf16.mxu0 0
        %2241 = vmatpush2.bf16.msra.mxu0 %v2048
        %2242 = vmatprep.subr.bf16.mxu0 0
        %2243 = vmatpush2.bf16.msra.mxu0 %v2047
        %2244 = vmatprep.subr.bf16.mxu0 0
        %2245 = vmatpush2.bf16.msra.mxu0 %v2046
        %2246 = vmatprep.mubr.bf16.mxu0 %v1612
        %2247 = vmatmul.mubr.bf16.gmra.mxu0 %v1611
        %v2248 = vpop.f32.mrf.mxu0
        %v2249 = vadd.f32 %v2209, %v2248
        %v2250 = vpop.f32.mrf.mxu0
        %v2251 = vpop.f32.mrf.mxu0
        %v2252 = vpop.f32.mrf.mxu0
        %2253 = vdwg.mxu0
        %2254 = vmatprep.subr.bf16.mxu0 0
        %2255 = vmatpush1.bf16.msra.mxu0 %v2061
        %2256 = vmatprep.subr.bf16.mxu0 0
        %2257 = vmatpush1.bf16.msra.mxu0 %v2060
        %2258 = vmatprep.subr.bf16.mxu0 0
        %2259 = vmatpush1.bf16.msra.mxu0 %v2059
        %2260 = vmatprep.subr.bf16.mxu0 0
        %2261 = vmatpush1.bf16.msra.mxu0 %v2058
        %2262 = vmatprep.subr.bf16.mxu0 0
        %2263 = vmatpush1.bf16.msra.mxu0 %v2057
        %2264 = vmatprep.subr.bf16.mxu0 0
        %2265 = vmatpush1.bf16.msra.mxu0 %v2056
        %2266 = vmatprep.subr.bf16.mxu0 0
        %2267 = vmatpush1.bf16.msra.mxu0 %v2055
        %2268 = vmatprep.subr.bf16.mxu0 0
        %2269 = vmatpush1.bf16.msra.mxu0 %v2054
        %2270 = vmatprep.subr.bf16.mxu0 0
        %2271 = vmatpush2.bf16.msra.mxu0 %v2069
        %2272 = vmatprep.subr.bf16.mxu0 0
        %2273 = vmatpush2.bf16.msra.mxu0 %v2068
        %2274 = vmatprep.subr.bf16.mxu0 0
        %2275 = vmatpush2.bf16.msra.mxu0 %v2067
        %2276 = vmatprep.subr.bf16.mxu0 0
        %2277 = vmatpush2.bf16.msra.mxu0 %v2066
        %2278 = vmatprep.subr.bf16.mxu0 0
        %2279 = vmatpush2.bf16.msra.mxu0 %v2065
        %2280 = vmatprep.subr.bf16.mxu0 0
        %2281 = vmatpush2.bf16.msra.mxu0 %v2064
        %2282 = vmatprep.subr.bf16.mxu0 0
        %2283 = vmatpush2.bf16.msra.mxu0 %v2063
        %2284 = vmatprep.subr.bf16.mxu0 0
        %2285 = vmatpush2.bf16.msra.mxu0 %v2062
        %2286 = vmatprep.mubr.bf16.mxu0 %v1614
        %2287 = vmatmul.mubr.bf16.gmra.mxu0 %v1613
        %v2288 = vpop.f32.mrf.mxu0
        %v2289 = vadd.f32 %v2249, %v2288
        %v2290 = vpop.f32.mrf.mxu0
        %v2291 = vpop.f32.mrf.mxu0
        %v2292 = vpop.f32.mrf.mxu0
        %2293 = vdwg.mxu0
        %v2294 = vadd.f32 %v979, %v2289
        %2295 = vst [vmem:[%s605] sm:$0xff] %v2294
        %s2296 = sand.u32 %s353, 1
        %s2297 = scalar_lea.sflag [#allocation4], %s2296
        %s2298 = sand.u32 %s353, 1
        %s2299 = smul.addr %s2298, 8
        %s2300 = scalar_lea.vmem [#allocation13], %s2299
        %s2301 = sand.u32 %s379, 1
        %s2302 = scalar_lea.sflag [#allocation15], %s2301
        %s2303 = sand.u32 %s379, 1
        %s2304 = smul.addr %s2303, 8
        %s2305 = scalar_lea.vmem [#allocation14], %s2304
        // Predicated region
        $region101: #{tpu_custom_call.1} parent=75 // pred_check
          %p2306 = pneg %p363
        $region102: #{tpu_custom_call.1} parent=75 // pred_check_branch
          %2308 = sbr.rel (%p2306) target = $region104
        $region103: #{tpu_custom_call.1} parent=75 // pred_region
          %s2310 = ssub.s32 128, 128
          %2311 = vsyncadd %s2297, %s2310
          %s2312 = smul.addr %s41, 128
          %s2313 = scalar_lea.hbm %s14, %s2312
          %s2315 = sshll.u32 %s2300, 4
          %s2316 = int_to_ptr.vmem [resolvable:$true] %s2315
          %2318 = dma.vmem_to_hbm [thread:$0]  %s2316, 128, %s2313, %s2297
        $region104: #{tpu_custom_call.1} parent=75 // pred_fallthru
          _
        // Predicated region
        $region105: #{tpu_custom_call.1} parent=75 // pred_check
          %p2319 = pneg %p389
        $region106: #{tpu_custom_call.1} parent=75 // pred_check_branch
          %2321 = sbr.rel (%p2319) target = $region108
        $region107: #{tpu_custom_call.1} parent=75 // pred_region
          %s2323 = ssub.s32 128, 128
          %2324 = vsyncadd %s2302, %s2323
          %s2325 = smul.addr %s41, 128
          %s2326 = scalar_lea.hbm %s15, %s2325
          %s2328 = sshll.u32 %s2305, 4
          %s2329 = int_to_ptr.vmem [resolvable:$true] %s2328
          %2331 = dma.vmem_to_hbm [thread:$0]  %s2329, 128, %s2326, %s2302
        $region108: #{tpu_custom_call.1} parent=75 // pred_fallthru
          _
      $region76: #{tpu_custom_call.1} parent=5 // pred_fallthru
        _
      %p2332 = scmp.le.s32.totalorder 2, %s36
      // Predicated region
      $region109: #{tpu_custom_call.1} parent=5 // pred_check
        %p2333 = pneg %p2332
      $region110: #{tpu_custom_call.1} parent=5 // pred_check_branch
        %2335 = sbr.rel (%p2333) target = $region112
      $region111: #{tpu_custom_call.1} parent=5 // pred_region
        %s2336 = ssub.s32 %s36, 2
        // Predicated region
        $region113: #{tpu_custom_call.1} parent=111 // pred_check
          %p2337 = pneg %p369
        $region114: #{tpu_custom_call.1} parent=111 // pred_check_branch
          %2339 = sbr.rel (%p2337) target = $region116
        $region115: #{tpu_custom_call.1} parent=111 // pred_region
          %s2340 = sand.u32 %s354, 1
          %s2341 = scalar_lea.sflag [#allocation4], %s2340
          %s2342 = sand.u32 %s354, 1
          %s2343 = smul.addr %s2342, 8
          %s2344 = scalar_lea.vmem [#allocation13], %s2343
          %2345 = dma.done %s2341, 128
        $region116: #{tpu_custom_call.1} parent=111 // pred_fallthru
          _
        // Predicated region
        $region117: #{tpu_custom_call.1} parent=111 // pred_check
          %p2346 = pneg %p395
        $region118: #{tpu_custom_call.1} parent=111 // pred_check_branch
          %2348 = sbr.rel (%p2346) target = $region120
        $region119: #{tpu_custom_call.1} parent=111 // pred_region
          %s2349 = sand.u32 %s380, 1
          %s2350 = scalar_lea.sflag [#allocation15], %s2349
          %s2351 = sand.u32 %s380, 1
          %s2352 = smul.addr %s2351, 8
          %s2353 = scalar_lea.vmem [#allocation14], %s2352
          %2354 = dma.done %s2350, 128
        $region120: #{tpu_custom_call.1} parent=111 // pred_fallthru
          _
      $region112: #{tpu_custom_call.1} parent=5 // pred_fallthru
        _
    $region6: #{tpu_custom_call.1} parent=1 // loop_footer
      %s40 = sadd.s32 1, %s36
    $region7: #{tpu_custom_call.1} parent=1 // loop_footer_branch
      %35 = sbr.rel target = $region3
    $region8: #{tpu_custom_call.1} parent=1 // loop_exit
      _
    %2355 = vsyncpa [#allocation3], 1
    %s2356 = scalar_lea.sflag [#allocation3], 1
    %2357 = vsyncpa %s2356, 1
    %2358 = vsyncpa [#allocation6], 1
    %s2359 = scalar_lea.sflag [#allocation6], 1
    %2360 = vsyncpa %s2359, 1
    %2361 = vsyncpa [#allocation9], 1
    %2362 = vsyncpa [#allocation12], 1
    %2363 = vsyncpa [#allocation4], 1
    %s2364 = scalar_lea.sflag [#allocation4], 1
    %2365 = vsyncpa %s2364, 1
    %2366 = vsyncpa [#allocation15], 1
    %s2367 = scalar_lea.sflag [#allocation15], 1
    %2368 = vsyncpa %s2367, 1

</llo_original>
